<compile_context>
chip_gen: v7x
topology: tpu7x:2x2x1
jax: 0.10.0
libtpu: 0.0.40
codegen_flags: <defaults>
</compile_context>

<pallas_src>
import functools

import jax
import jax.numpy as jnp
from jax.experimental import pallas as pl
from jax.experimental.pallas import tpu as pltpu


def _round_up(n, m):
    return ((n + m - 1) // m) * m


def _mlp_kernel(x_ref, w1_ref, b1_ref, w2_ref, b2_ref, w3_ref, b3_ref, o_ref):
    # x arrives f32; cast to bf16 on the VPU (hidden under MXU work) instead of a
    # separate XLA convert pass over the activations in HBM.
    x = x_ref[...].astype(jnp.bfloat16)                                # [tile, d_in_p]
    # fc1 + ReLU  (bf16 operands, f32 accumulate, f32 bias add)
    h1 = jnp.dot(x, w1_ref[...], preferred_element_type=jnp.float32) + b1_ref[...]
    h1 = jnp.maximum(h1, 0.0).astype(jnp.bfloat16)
    # fc2 + ReLU
    h2 = jnp.dot(h1, w2_ref[...], preferred_element_type=jnp.float32) + b2_ref[...]
    h2 = jnp.maximum(h2, 0.0).astype(jnp.bfloat16)
    # fc3 (no activation)
    out = jnp.dot(h2, w3_ref[...], preferred_element_type=jnp.float32) + b3_ref[...]
    o_ref[...] = out.astype(o_ref.dtype)


def prepare_params(params):
    """One-time weight preparation (do this at init, NOT per forward call).

    Pads the input-feature and embedding dims up to multiples of 128 so all
    matmul operands / the output block are (8,128)-aligned and lane-dense, and
    casts the matmul weights to bf16 (MXU-native). Biases stay float32.

    Returns (prepared_dict, embedding_dim).
    """
    w1 = jnp.asarray(params["w1"], jnp.float32)
    b1 = jnp.asarray(params["b1"], jnp.float32).reshape(1, -1)
    w2 = jnp.asarray(params["w2"], jnp.float32)
    b2 = jnp.asarray(params["b2"], jnp.float32).reshape(1, -1)
    w3 = jnp.asarray(params["w3"], jnp.float32)
    b3 = jnp.asarray(params["b3"], jnp.float32).reshape(1, -1)

    d_in = w1.shape[0]
    emb = w3.shape[1]
    d_in_p = _round_up(d_in, 128)
    emb_p = _round_up(emb, 128)

    if d_in_p != d_in:
        w1 = jnp.pad(w1, ((0, d_in_p - d_in), (0, 0)))
    if emb_p != emb:
        w3 = jnp.pad(w3, ((0, 0), (0, emb_p - emb)))
        b3 = jnp.pad(b3, ((0, 0), (0, emb_p - emb)))

    prepared = {
        "w1": w1.astype(jnp.bfloat16), "b1": b1,
        "w2": w2.astype(jnp.bfloat16), "b2": b2,
        "w3": w3.astype(jnp.bfloat16), "b3": b3,
    }
    return prepared, emb


@functools.partial(
    jax.jit,
    static_argnames=("emb", "batch_tile", "out_dtype", "min_grid_steps"),
)
def spectrum_encoder_forward(x, prepared, *, emb, batch_tile=1024,
                             out_dtype=jnp.float32, min_grid_steps=1):
    """Fused MLP forward.

    x:         [B, D_in] float32 (unpadded)
    prepared:  output dict of prepare_params() (padded, bf16 weights, f32 biases)
    emb:       original embedding_dim (static; used to strip lane padding)
    min_grid_steps: set to 2 on v7x so the 'parallel' batch axis can shard
                    across both TensorCores; leave 1 on v5e/v6e.
    out_dtype: jnp.float32 (module semantics) or jnp.bfloat16 if downstream
               tolerates it (halves output writeback / VMEM).
    """
    w1, b1 = prepared["w1"], prepared["b1"]
    w2, b2 = prepared["w2"], prepared["b2"]
    w3, b3 = prepared["w3"], prepared["b3"]

    B, d_in = x.shape
    d_in_p, h1 = w1.shape
    h2 = w2.shape[1]
    emb_p = w3.shape[1]

    # Pad x's feature dim to match the (already padded) w1 rows; pad cols are
    # zeros on both operands so they contribute nothing.
    if d_in_p != d_in:
        x = jnp.pad(x, ((0, 0), (0, d_in_p - d_in)))

    # Batch tiling: big tiles so MXU work >> per-step overhead; pad ragged batches.
    tile = min(_round_up(batch_tile, 256), _round_up(B, 128))
    if min_grid_steps > 1 and B >= 256 * min_grid_steps:
        # v7x megacore: guarantee >= min_grid_steps grid steps, keep tiles >= 256.
        per_core = _round_up(-(-B // min_grid_steps), 128)
        tile = min(tile, max(per_core, 256))
    B_p = _round_up(B, tile)
    if B_p != B:
        x = jnp.pad(x, ((0, B_p - B), (0, 0)))

    grid = (B_p // tile,)

    resident = pl.Buffered(1)   # constant index map -> single-buffer, stays resident
    in_specs = [
        pl.BlockSpec((tile, d_in_p), lambda i: (i, 0)),                          # x (streamed, f32)
        pl.BlockSpec((d_in_p, h1), lambda i: (0, 0), pipeline_mode=resident),    # w1
        pl.BlockSpec((1, h1), lambda i: (0, 0), pipeline_mode=resident),         # b1
        pl.BlockSpec((h1, h2), lambda i: (0, 0), pipeline_mode=resident),        # w2
        pl.BlockSpec((1, h2), lambda i: (0, 0), pipeline_mode=resident),         # b2
        pl.BlockSpec((h2, emb_p), lambda i: (0, 0), pipeline_mode=resident),     # w3
        pl.BlockSpec((1, emb_p), lambda i: (0, 0), pipeline_mode=resident),      # b3
    ]
    out_specs = pl.BlockSpec((tile, emb_p), lambda i: (i, 0))                    # lane-dense

    out_itemsize = jnp.dtype(out_dtype).itemsize
    w_elems = d_in_p * h1 + h1 * h2 + h2 * emb_p
    b_elems = h1 + h2 + emb_p

    # VMEM footprint: x f32 double-buffered, out double-buffered, weights/biases
    # single-buffered (Buffered(1)). Give ~1.5x headroom for compiler scratch.
    vmem_needed = (
        2 * tile * d_in_p * 4
        + 2 * tile * emb_p * out_itemsize
        + w_elems * 2
        + b_elems * 4 * 8   # (1, h) blocks pad to 8 sublanes
    )
    vmem_limit = min(max(32 << 20, int(vmem_needed * 1.5) + (2 << 20)), 100 << 20)

    flops = 2 * B_p * w_elems
    bytes_accessed = (
        B_p * d_in_p * 4            # f32 activations in
        + w_elems * 2               # bf16 weights (read once, resident)
        + b_elems * 4               # f32 biases
        + B_p * emb_p * out_itemsize
    )
    cost = pl.CostEstimate(flops=flops, transcendentals=0,
                           bytes_accessed=bytes_accessed)

    out = pl.pallas_call(
        _mlp_kernel,
        out_shape=jax.ShapeDtypeStruct((B_p, emb_p), out_dtype),
        grid_spec=pltpu.PrefetchScalarGridSpec(
            num_scalar_prefetch=0,
            grid=grid,
            in_specs=in_specs,
            out_specs=out_specs,
        ),
        compiler_params=pltpu.CompilerParams(
            dimension_semantics=("parallel",),
            vmem_limit_bytes=vmem_limit,
        ),
        cost_estimate=cost,
    )(x, w1, b1, w2, b2, w3, b3)

    # Strip batch / embedding padding.
    return out[:B, :emb]


def init_params(key, input_size, embedding_dim):
    """Deterministic synthetic init matching nn.Linear shapes.

    PyTorch stores W as [out, in]; we store the transpose [in, out]."""
    dims = [(input_size, 512), (512, 256), (256, embedding_dim)]
    params = {}
    for idx, (din, dout) in enumerate(dims, start=1):
        key, kw, kb = jax.random.split(key, 3)
        bound = 1.0 / jnp.sqrt(jnp.float32(din))
        params[f"w{idx}"] = jax.random.uniform(
            kw, (din, dout), jnp.float32, minval=-bound, maxval=bound
        )
        params[f"b{idx}"] = jax.random.uniform(
            kb, (1, dout), jnp.float32, minval=-bound, maxval=bound
        )
    return params


def reference_forward(x, params, compute_dtype=jnp.float32):
    """Pure-JAX reference on the RAW (unpadded, f32) params. With
    compute_dtype=bf16 it mirrors the kernel's bf16-operand / f32-accumulate
    precision exactly."""
    def dense(a, w, b):
        y = jnp.dot(
            a.astype(compute_dtype),
            w.astype(compute_dtype),
            preferred_element_type=jnp.float32,
        )
        return y + b.astype(jnp.float32)

    h = jnp.maximum(dense(x, params["w1"], params["b1"]), 0.0)
    h = jnp.maximum(dense(h, params["w2"], params["b2"]), 0.0)
    return dense(h, params["w3"], params["b3"])


if __name__ == "__main__":
    # Module defaults: 1024 -> 512 -> 256 -> 128. Ragged small batch exercises
    # the batch-padding path.
    INPUT_SIZE = 1024
    EMBEDDING_DIM = 128
    BATCH = 10

    key = jax.random.PRNGKey(0)
    key, kx = jax.random.split(key)
    x = jax.random.normal(kx, (BATCH, INPUT_SIZE), jnp.float32)
    raw_params = init_params(key, INPUT_SIZE, EMBEDDING_DIM)

    # One-time weight prep (padding + bf16 cast) outside the hot path.
    prepared, emb = prepare_params(raw_params)
    prepared = jax.tree_util.tree_map(jax.block_until_ready, prepared)

    out = spectrum_encoder_forward(x, prepared, emb=emb)
    out = jax.block_until_ready(out)
    assert out.shape == (BATCH, EMBEDDING_DIM)

    # Tight check vs a precision-matched (bf16 operand, f32 accum) reference.
    ref_bf16 = reference_forward(x, raw_params, compute_dtype=jnp.bfloat16)
    assert jnp.allclose(out, ref_bf16, atol=2e-3, rtol=2e-3)

    # Loose check vs the full-f32 reference (bf16 operand rounding ~1e-2 rel).
    ref_f32 = reference_forward(x, raw_params, compute_dtype=jnp.float32)
    assert jnp.allclose(out, ref_f32, atol=5e-2, rtol=5e-2)

    print("KERNEL_OK")
</pallas_src>

<mosaic_0001>
module attributes {stable_mosaic.version = 11 : i64} {
  func.func @_mlp_kernel(%arg0: i32, %arg1: memref<128x1024xf32, #tpu.memory_space<vmem>>, %arg2: memref<1024x512xbf16, #tpu.memory_space<vmem>>, %arg3: memref<1x512xf32, #tpu.memory_space<vmem>>, %arg4: memref<512x256xbf16, #tpu.memory_space<vmem>>, %arg5: memref<1x256xf32, #tpu.memory_space<vmem>>, %arg6: memref<256x128xbf16, #tpu.memory_space<vmem>>, %arg7: memref<1x128xf32, #tpu.memory_space<vmem>>, %arg8: memref<128x128xf32, #tpu.memory_space<vmem>>) attributes {dimension_semantics = [#tpu.dimension_semantics<parallel>], iteration_bounds = array<i64: 1>, scalar_prefetch = 0 : i64, scratch_operands = 0 : i64, tpu.core_type = #tpu.core_type<tc>, window_params = [{transform_indices = @transform_0, window_bounds = array<i64: 128, 1024>}, {pipeline_mode = #tpu.pipeline_mode<synchronous>, transform_indices = @transform_1, window_bounds = array<i64: 1024, 512>}, {pipeline_mode = #tpu.pipeline_mode<synchronous>, transform_indices = @transform_2, window_bounds = array<i64: 1, 512>}, {pipeline_mode = #tpu.pipeline_mode<synchronous>, transform_indices = @transform_3, window_bounds = array<i64: 512, 256>}, {pipeline_mode = #tpu.pipeline_mode<synchronous>, transform_indices = @transform_4, window_bounds = array<i64: 1, 256>}, {pipeline_mode = #tpu.pipeline_mode<synchronous>, transform_indices = @transform_5, window_bounds = array<i64: 256, 128>}, {pipeline_mode = #tpu.pipeline_mode<synchronous>, transform_indices = @transform_6, window_bounds = array<i64: 1, 128>}, {transform_indices = @transform_7, window_bounds = array<i64: 128, 128>}]} {
    %c0 = arith.constant 0 : index
    %c0_0 = arith.constant 0 : index
    %0 = vector.load %arg1[%c0, %c0_0] : memref<128x1024xf32, #tpu.memory_space<vmem>>, vector<128x1024xf32>
    %1 = arith.truncf %0 : vector<128x1024xf32> to vector<128x1024xbf16>
    %c0_1 = arith.constant 0 : index
    %c0_2 = arith.constant 0 : index
    %2 = vector.load %arg2[%c0_1, %c0_2] : memref<1024x512xbf16, #tpu.memory_space<vmem>>, vector<1024x512xbf16>
    %cst = arith.constant dense<0.000000e+00> : vector<128x512xf32>
    %3 = tpu.matmul %1, %2, %cst {dimension_numbers = #tpu.dot_dimension_numbers<[1], [0], [0], [1], [0, 0, 1, 1], [], []>} : vector<128x1024xbf16>, vector<1024x512xbf16>, vector<128x512xf32> -> vector<128x512xf32>
    %c0_3 = arith.constant 0 : index
    %c0_4 = arith.constant 0 : index
    %4 = vector.load %arg3[%c0_3, %c0_4] : memref<1x512xf32, #tpu.memory_space<vmem>>, vector<1x512xf32>
    %5 = vector.broadcast %4 : vector<1x512xf32> to vector<128x512xf32>
    %6 = arith.addf %3, %5 : vector<128x512xf32>
    %cst_5 = arith.constant 0.000000e+00 : f32
    %7 = vector.broadcast %cst_5 : f32 to vector<128x512xf32>
    %8 = arith.maximumf %6, %7 : vector<128x512xf32>
    %9 = arith.truncf %8 : vector<128x512xf32> to vector<128x512xbf16>
    %c0_6 = arith.constant 0 : index
    %c0_7 = arith.constant 0 : index
    %10 = vector.load %arg4[%c0_6, %c0_7] : memref<512x256xbf16, #tpu.memory_space<vmem>>, vector<512x256xbf16>
    %cst_8 = arith.constant dense<0.000000e+00> : vector<128x256xf32>
    %11 = tpu.matmul %9, %10, %cst_8 {dimension_numbers = #tpu.dot_dimension_numbers<[1], [0], [0], [1], [0, 0, 1, 1], [], []>} : vector<128x512xbf16>, vector<512x256xbf16>, vector<128x256xf32> -> vector<128x256xf32>
    %c0_9 = arith.constant 0 : index
    %c0_10 = arith.constant 0 : index
    %12 = vector.load %arg5[%c0_9, %c0_10] : memref<1x256xf32, #tpu.memory_space<vmem>>, vector<1x256xf32>
    %13 = vector.broadcast %12 : vector<1x256xf32> to vector<128x256xf32>
    %14 = arith.addf %11, %13 : vector<128x256xf32>
    %cst_11 = arith.constant 0.000000e+00 : f32
    %15 = vector.broadcast %cst_11 : f32 to vector<128x256xf32>
    %16 = arith.maximumf %14, %15 : vector<128x256xf32>
    %17 = arith.truncf %16 : vector<128x256xf32> to vector<128x256xbf16>
    %c0_12 = arith.constant 0 : index
    %c0_13 = arith.constant 0 : index
    %18 = vector.load %arg6[%c0_12, %c0_13] : memref<256x128xbf16, #tpu.memory_space<vmem>>, vector<256x128xbf16>
    %cst_14 = arith.constant dense<0.000000e+00> : vector<128x128xf32>
    %19 = tpu.matmul %17, %18, %cst_14 {dimension_numbers = #tpu.dot_dimension_numbers<[1], [0], [0], [1], [0, 0, 1, 1], [], []>} : vector<128x256xbf16>, vector<256x128xbf16>, vector<128x128xf32> -> vector<128x128xf32>
    %c0_15 = arith.constant 0 : index
    %c0_16 = arith.constant 0 : index
    %20 = vector.load %arg7[%c0_15, %c0_16] : memref<1x128xf32, #tpu.memory_space<vmem>>, vector<1x128xf32>
    %21 = vector.broadcast %20 : vector<1x128xf32> to vector<128x128xf32>
    %22 = arith.addf %19, %21 : vector<128x128xf32>
    %c0_17 = arith.constant 0 : index
    %c0_18 = arith.constant 0 : index
    %23 = vector.load %arg8[%c0_17, %c0_18] : memref<128x128xf32, #tpu.memory_space<vmem>>, vector<128x128xf32>
    tpu.vector_store %arg8[%c0_17, %c0_18], %22 {strides = array<i32>} : memref<128x128xf32, #tpu.memory_space<vmem>>, vector<128x128xf32>,
    return
  }
  func.func @transform_0(%arg0: i32) -> (i32, i32) {
    %c0_i32 = arith.constant 0 : i32
    %c0_i32_0 = arith.constant 0 : i32
    return %arg0, %c0_i32 : i32, i32
  }
  func.func @transform_1(%arg0: i32) -> (i32, i32) {
    %c0_i32 = arith.constant 0 : i32
    %c0_i32_0 = arith.constant 0 : i32
    %c0_i32_1 = arith.constant 0 : i32
    return %c0_i32, %c0_i32_0 : i32, i32
  }
  func.func @transform_2(%arg0: i32) -> (i32, i32) {
    %c0_i32 = arith.constant 0 : i32
    %c0_i32_0 = arith.constant 0 : i32
    %c0_i32_1 = arith.constant 0 : i32
    return %c0_i32, %c0_i32_0 : i32, i32
  }
  func.func @transform_3(%arg0: i32) -> (i32, i32) {
    %c0_i32 = arith.constant 0 : i32
    %c0_i32_0 = arith.constant 0 : i32
    %c0_i32_1 = arith.constant 0 : i32
    return %c0_i32, %c0_i32_0 : i32, i32
  }
  func.func @transform_4(%arg0: i32) -> (i32, i32) {
    %c0_i32 = arith.constant 0 : i32
    %c0_i32_0 = arith.constant 0 : i32
    %c0_i32_1 = arith.constant 0 : i32
    return %c0_i32, %c0_i32_0 : i32, i32
  }
  func.func @transform_5(%arg0: i32) -> (i32, i32) {
    %c0_i32 = arith.constant 0 : i32
    %c0_i32_0 = arith.constant 0 : i32
    %c0_i32_1 = arith.constant 0 : i32
    return %c0_i32, %c0_i32_0 : i32, i32
  }
  func.func @transform_6(%arg0: i32) -> (i32, i32) {
    %c0_i32 = arith.constant 0 : i32
    %c0_i32_0 = arith.constant 0 : i32
    %c0_i32_1 = arith.constant 0 : i32
    return %c0_i32, %c0_i32_0 : i32, i32
  }
  func.func @transform_7(%arg0: i32) -> (i32, i32) {
    %c0_i32 = arith.constant 0 : i32
    %c0_i32_0 = arith.constant 0 : i32
    return %arg0, %c0_i32 : i32, i32
  }
}

</mosaic_0001>

<llo_original>
// kernel: spectrum_encoder_forward.1
$region0: #{spectrum_encoder_forward.1}
  #allocation0 [shape = 'u32[]', space=smem, size = 0x4, offset = 0x4, fixed_abs, tag = 'smem constant byte address 0x4 - core index']
  #allocation1 [shape = 'u32[144,128]{1,0:T(1,128)}', space=vmem, size = 0x12000, scoped, tag = 'internal scratch']
  %s0 = inlined_call_operand.vmem [shape: f32[128,1024], index: 0, kind: input, shape index: {}]
  %s1 = inlined_call_operand.hbm [shape: bf16[1024,512], index: 1, kind: input, shape index: {}]
  %s2 = inlined_call_operand.vmem [shape: f32[1,512], index: 2, kind: input, shape index: {}]
  %s3 = inlined_call_operand.vmem [shape: bf16[512,256], index: 3, kind: input, shape index: {}]
  %s4 = inlined_call_operand.vmem [shape: f32[1,256], index: 4, kind: input, shape index: {}]
  %s5 = inlined_call_operand.vmem [shape: bf16[256,128], index: 5, kind: input, shape index: {}]
  %s6 = inlined_call_operand.vmem [shape: f32[1,128], index: 6, kind: input, shape index: {}]
  %s7 = inlined_call_operand.vmem [shape: f32[128,128], index: 7, kind: output, shape index: {}]
  %s8 = sld [smem:[#allocation0]]
  $region42: #{spectrum_encoder_forward.1} parent=0
    _
  %s10 = ssub.s32 1, %s8
  %s11 = scalar_select 0, %s10, %s8
  $region1: #{spectrum_encoder_forward.1} parent=0
    #allocation2 [shape = 'u8[1048576]{0}', space=vmem, size = 0x100000, scoped, tag = 'input window, operand 1, single buffered']
    #allocation3 [shape = 's32[1]{0}', space=sflag, size = 0x4, scoped, tag = 'scoped memory for spectrum_encoder_forward.1']
    %12 = vsyncpa [#allocation3], 0
    // Predicated region
    $region2: #{spectrum_encoder_forward.1} parent=1 // pred_check
      _
    $region3: #{spectrum_encoder_forward.1} parent=1 // pred_check_branch
      %14 = sbr.rel (0) target = $region5
    $region4: #{spectrum_encoder_forward.1} parent=1 // pred_region
      _
    $region5: #{spectrum_encoder_forward.1} parent=1 // pred_fallthru
      _
    // Predicated region
    $region6: #{spectrum_encoder_forward.1} parent=1 // pred_check
      _
    $region7: #{spectrum_encoder_forward.1} parent=1 // pred_check_branch
      %16 = sbr.rel (0) target = $region9
    $region8: #{spectrum_encoder_forward.1} parent=1 // pred_region
      %s18 = ssub.s32 32768, 32768
      %19 = vsyncadd [#allocation3], %s18
      %s20 = sshll.u32 [#allocation2], 4
      %s21 = int_to_ptr.vmem [resolvable:$true] %s20
      %26 = dma.hbm_to_vmem [thread:$0]  %s1, 32768, %s21, [#allocation3], 256, 256, 16
    $region9: #{spectrum_encoder_forward.1} parent=1 // pred_fallthru
      _
    // Predicated region
    $region10: #{spectrum_encoder_forward.1} parent=1 // pred_check
      _
    $region11: #{spectrum_encoder_forward.1} parent=1 // pred_check_branch
      %28 = sbr.rel (0) target = $region13
    $region12: #{spectrum_encoder_forward.1} parent=1 // pred_region
      _
    $region13: #{spectrum_encoder_forward.1} parent=1 // pred_fallthru
      _
    // Predicated region
    $region14: #{spectrum_encoder_forward.1} parent=1 // pred_check
      _
    $region15: #{spectrum_encoder_forward.1} parent=1 // pred_check_branch
      %30 = sbr.rel (0) target = $region17
    $region16: #{spectrum_encoder_forward.1} parent=1 // pred_region
      _
    $region17: #{spectrum_encoder_forward.1} parent=1 // pred_fallthru
      _
    // Predicated region
    $region18: #{spectrum_encoder_forward.1} parent=1 // pred_check
      _
    $region19: #{spectrum_encoder_forward.1} parent=1 // pred_check_branch
      %32 = sbr.rel (0) target = $region21
    $region20: #{spectrum_encoder_forward.1} parent=1 // pred_region
      _
    $region21: #{spectrum_encoder_forward.1} parent=1 // pred_fallthru
      _
    // Predicated region
    $region22: #{spectrum_encoder_forward.1} parent=1 // pred_check
      _
    $region23: #{spectrum_encoder_forward.1} parent=1 // pred_check_branch
      %34 = sbr.rel (0) target = $region25
    $region24: #{spectrum_encoder_forward.1} parent=1 // pred_region
      _
    $region25: #{spectrum_encoder_forward.1} parent=1 // pred_fallthru
      _
    // Predicated region
    $region26: #{spectrum_encoder_forward.1} parent=1 // pred_check
      _
    $region27: #{spectrum_encoder_forward.1} parent=1 // pred_check_branch
      %36 = sbr.rel (0) target = $region29
    $region28: #{spectrum_encoder_forward.1} parent=1 // pred_region
      _
    $region29: #{spectrum_encoder_forward.1} parent=1 // pred_fallthru
      _
    // Predicated region
    $region30: #{spectrum_encoder_forward.1} parent=1 // pred_check
      _
    $region31: #{spectrum_encoder_forward.1} parent=1 // pred_check_branch
      %38 = sbr.rel (0) target = $region33
    $region32: #{spectrum_encoder_forward.1} parent=1 // pred_region
      %39 = dma.done [#allocation3], 32768
    $region33: #{spectrum_encoder_forward.1} parent=1 // pred_fallthru
      _
    %v41 = vld [vmem:[%s0] sm:$0xff]
    %v42 = vld [vmem:[%s0 + $0x8] sm:$0xff]
    %v43 = vld [vmem:[%s0 + $0x10] sm:$0xff]
    %v44 = vld [vmem:[%s0 + $0x18] sm:$0xff]
    %v45 = vld [vmem:[%s0 + $0x20] sm:$0xff]
    %v46 = vld [vmem:[%s0 + $0x28] sm:$0xff]
    %v47 = vld [vmem:[%s0 + $0x30] sm:$0xff]
    %v48 = vld [vmem:[%s0 + $0x38] sm:$0xff]
    %v49 = vld [vmem:[%s0 + $0x40] sm:$0xff]
    %v50 = vld [vmem:[%s0 + $0x48] sm:$0xff]
    %v51 = vld [vmem:[%s0 + $0x50] sm:$0xff]
    %v52 = vld [vmem:[%s0 + $0x58] sm:$0xff]
    %v53 = vld [vmem:[%s0 + $0x60] sm:$0xff]
    %v54 = vld [vmem:[%s0 + $0x68] sm:$0xff]
    %v55 = vld [vmem:[%s0 + $0x70] sm:$0xff]
    %v56 = vld [vmem:[%s0 + $0x78] sm:$0xff]
    %v57 = vld [vmem:[%s0 + $0x80] sm:$0xff]
    %v58 = vld [vmem:[%s0 + $0x88] sm:$0xff]
    %v59 = vld [vmem:[%s0 + $0x90] sm:$0xff]
    %v60 = vld [vmem:[%s0 + $0x98] sm:$0xff]
    %v61 = vld [vmem:[%s0 + $0xa0] sm:$0xff]
    %v62 = vld [vmem:[%s0 + $0xa8] sm:$0xff]
    %v63 = vld [vmem:[%s0 + $0xb0] sm:$0xff]
    %v64 = vld [vmem:[%s0 + $0xb8] sm:$0xff]
    %v65 = vld [vmem:[%s0 + $0xc0] sm:$0xff]
    %v66 = vld [vmem:[%s0 + $0xc8] sm:$0xff]
    %v67 = vld [vmem:[%s0 + $0xd0] sm:$0xff]
    %v68 = vld [vmem:[%s0 + $0xd8] sm:$0xff]
    %v69 = vld [vmem:[%s0 + $0xe0] sm:$0xff]
    %v70 = vld [vmem:[%s0 + $0xe8] sm:$0xff]
    %v71 = vld [vmem:[%s0 + $0xf0] sm:$0xff]
    %v72 = vld [vmem:[%s0 + $0xf8] sm:$0xff]
    %v73 = vld [vmem:[%s0 + $0x100] sm:$0xff]
    %v74 = vld [vmem:[%s0 + $0x108] sm:$0xff]
    %v75 = vld [vmem:[%s0 + $0x110] sm:$0xff]
    %v76 = vld [vmem:[%s0 + $0x118] sm:$0xff]
    %v77 = vld [vmem:[%s0 + $0x120] sm:$0xff]
    %v78 = vld [vmem:[%s0 + $0x128] sm:$0xff]
    %v79 = vld [vmem:[%s0 + $0x130] sm:$0xff]
    %v80 = vld [vmem:[%s0 + $0x138] sm:$0xff]
    %v81 = vld [vmem:[%s0 + $0x140] sm:$0xff]
    %v82 = vld [vmem:[%s0 + $0x148] sm:$0xff]
    %v83 = vld [vmem:[%s0 + $0x150] sm:$0xff]
    %v84 = vld [vmem:[%s0 + $0x158] sm:$0xff]
    %v85 = vld [vmem:[%s0 + $0x160] sm:$0xff]
    %v86 = vld [vmem:[%s0 + $0x168] sm:$0xff]
    %v87 = vld [vmem:[%s0 + $0x170] sm:$0xff]
    %v88 = vld [vmem:[%s0 + $0x178] sm:$0xff]
    %v89 = vld [vmem:[%s0 + $0x180] sm:$0xff]
    %v90 = vld [vmem:[%s0 + $0x188] sm:$0xff]
    %v91 = vld [vmem:[%s0 + $0x190] sm:$0xff]
    %v92 = vld [vmem:[%s0 + $0x198] sm:$0xff]
    %v93 = vld [vmem:[%s0 + $0x1a0] sm:$0xff]
    %v94 = vld [vmem:[%s0 + $0x1a8] sm:$0xff]
    %v95 = vld [vmem:[%s0 + $0x1b0] sm:$0xff]
    %v96 = vld [vmem:[%s0 + $0x1b8] sm:$0xff]
    %v97 = vld [vmem:[%s0 + $0x1c0] sm:$0xff]
    %v98 = vld [vmem:[%s0 + $0x1c8] sm:$0xff]
    %v99 = vld [vmem:[%s0 + $0x1d0] sm:$0xff]
    %v100 = vld [vmem:[%s0 + $0x1d8] sm:$0xff]
    %v101 = vld [vmem:[%s0 + $0x1e0] sm:$0xff]
    %v102 = vld [vmem:[%s0 + $0x1e8] sm:$0xff]
    %v103 = vld [vmem:[%s0 + $0x1f0] sm:$0xff]
    %v104 = vld [vmem:[%s0 + $0x1f8] sm:$0xff]
    %v105 = vld [vmem:[%s0 + $0x200] sm:$0xff]
    %v106 = vld [vmem:[%s0 + $0x208] sm:$0xff]
    %v107 = vld [vmem:[%s0 + $0x210] sm:$0xff]
    %v108 = vld [vmem:[%s0 + $0x218] sm:$0xff]
    %v109 = vld [vmem:[%s0 + $0x220] sm:$0xff]
    %v110 = vld [vmem:[%s0 + $0x228] sm:$0xff]
    %v111 = vld [vmem:[%s0 + $0x230] sm:$0xff]
    %v112 = vld [vmem:[%s0 + $0x238] sm:$0xff]
    %v113 = vld [vmem:[%s0 + $0x240] sm:$0xff]
    %v114 = vld [vmem:[%s0 + $0x248] sm:$0xff]
    %v115 = vld [vmem:[%s0 + $0x250] sm:$0xff]
    %v116 = vld [vmem:[%s0 + $0x258] sm:$0xff]
    %v117 = vld [vmem:[%s0 + $0x260] sm:$0xff]
    %v118 = vld [vmem:[%s0 + $0x268] sm:$0xff]
    %v119 = vld [vmem:[%s0 + $0x270] sm:$0xff]
    %v120 = vld [vmem:[%s0 + $0x278] sm:$0xff]
    %v121 = vld [vmem:[%s0 + $0x280] sm:$0xff]
    %v122 = vld [vmem:[%s0 + $0x288] sm:$0xff]
    %v123 = vld [vmem:[%s0 + $0x290] sm:$0xff]
    %v124 = vld [vmem:[%s0 + $0x298] sm:$0xff]
    %v125 = vld [vmem:[%s0 + $0x2a0] sm:$0xff]
    %v126 = vld [vmem:[%s0 + $0x2a8] sm:$0xff]
    %v127 = vld [vmem:[%s0 + $0x2b0] sm:$0xff]
    %v128 = vld [vmem:[%s0 + $0x2b8] sm:$0xff]
    %v129 = vld [vmem:[%s0 + $0x2c0] sm:$0xff]
    %v130 = vld [vmem:[%s0 + $0x2c8] sm:$0xff]
    %v131 = vld [vmem:[%s0 + $0x2d0] sm:$0xff]
    %v132 = vld [vmem:[%s0 + $0x2d8] sm:$0xff]
    %v133 = vld [vmem:[%s0 + $0x2e0] sm:$0xff]
    %v134 = vld [vmem:[%s0 + $0x2e8] sm:$0xff]
    %v135 = vld [vmem:[%s0 + $0x2f0] sm:$0xff]
    %v136 = vld [vmem:[%s0 + $0x2f8] sm:$0xff]
    %v137 = vld [vmem:[%s0 + $0x300] sm:$0xff]
    %v138 = vld [vmem:[%s0 + $0x308] sm:$0xff]
    %v139 = vld [vmem:[%s0 + $0x310] sm:$0xff]
    %v140 = vld [vmem:[%s0 + $0x318] sm:$0xff]
    %v141 = vld [vmem:[%s0 + $0x320] sm:$0xff]
    %v142 = vld [vmem:[%s0 + $0x328] sm:$0xff]
    %v143 = vld [vmem:[%s0 + $0x330] sm:$0xff]
    %v144 = vld [vmem:[%s0 + $0x338] sm:$0xff]
    %v145 = vld [vmem:[%s0 + $0x340] sm:$0xff]
    %v146 = vld [vmem:[%s0 + $0x348] sm:$0xff]
    %v147 = vld [vmem:[%s0 + $0x350] sm:$0xff]
    %v148 = vld [vmem:[%s0 + $0x358] sm:$0xff]
    %v149 = vld [vmem:[%s0 + $0x360] sm:$0xff]
    %v150 = vld [vmem:[%s0 + $0x368] sm:$0xff]
    %v151 = vld [vmem:[%s0 + $0x370] sm:$0xff]
    %v152 = vld [vmem:[%s0 + $0x378] sm:$0xff]
    %v153 = vld [vmem:[%s0 + $0x380] sm:$0xff]
    %v154 = vld [vmem:[%s0 + $0x388] sm:$0xff]
    %v155 = vld [vmem:[%s0 + $0x390] sm:$0xff]
    %v156 = vld [vmem:[%s0 + $0x398] sm:$0xff]
    %v157 = vld [vmem:[%s0 + $0x3a0] sm:$0xff]
    %v158 = vld [vmem:[%s0 + $0x3a8] sm:$0xff]
    %v159 = vld [vmem:[%s0 + $0x3b0] sm:$0xff]
    %v160 = vld [vmem:[%s0 + $0x3b8] sm:$0xff]
    %v161 = vld [vmem:[%s0 + $0x3c0] sm:$0xff]
    %v162 = vld [vmem:[%s0 + $0x3c8] sm:$0xff]
    %v163 = vld [vmem:[%s0 + $0x3d0] sm:$0xff]
    %v164 = vld [vmem:[%s0 + $0x3d8] sm:$0xff]
    %v165 = vld [vmem:[%s0 + $0x3e0] sm:$0xff]
    %v166 = vld [vmem:[%s0 + $0x3e8] sm:$0xff]
    %v167 = vld [vmem:[%s0 + $0x3f0] sm:$0xff]
    %v168 = vld [vmem:[%s0 + $0x3f8] sm:$0xff]
    %v169 = vpack.c.bf16 %v49, %v41
    %v170 = vpack.c.bf16 %v50, %v42
    %v171 = vpack.c.bf16 %v51, %v43
    %v172 = vpack.c.bf16 %v52, %v44
    %v173 = vpack.c.bf16 %v53, %v45
    %v174 = vpack.c.bf16 %v54, %v46
    %v175 = vpack.c.bf16 %v55, %v47
    %v176 = vpack.c.bf16 %v56, %v48
    %v177 = vpack.c.bf16 %v65, %v57
    %v178 = vpack.c.bf16 %v66, %v58
    %v179 = vpack.c.bf16 %v67, %v59
    %v180 = vpack.c.bf16 %v68, %v60
    %v181 = vpack.c.bf16 %v69, %v61
    %v182 = vpack.c.bf16 %v70, %v62
    %v183 = vpack.c.bf16 %v71, %v63
    %v184 = vpack.c.bf16 %v72, %v64
    %v185 = vpack.c.bf16 %v81, %v73
    %v186 = vpack.c.bf16 %v82, %v74
    %v187 = vpack.c.bf16 %v83, %v75
    %v188 = vpack.c.bf16 %v84, %v76
    %v189 = vpack.c.bf16 %v85, %v77
    %v190 = vpack.c.bf16 %v86, %v78
    %v191 = vpack.c.bf16 %v87, %v79
    %v192 = vpack.c.bf16 %v88, %v80
    %v193 = vpack.c.bf16 %v97, %v89
    %v194 = vpack.c.bf16 %v98, %v90
    %v195 = vpack.c.bf16 %v99, %v91
    %v196 = vpack.c.bf16 %v100, %v92
    %v197 = vpack.c.bf16 %v101, %v93
    %v198 = vpack.c.bf16 %v102, %v94
    %v199 = vpack.c.bf16 %v103, %v95
    %v200 = vpack.c.bf16 %v104, %v96
    %v201 = vpack.c.bf16 %v113, %v105
    %v202 = vpack.c.bf16 %v114, %v106
    %v203 = vpack.c.bf16 %v115, %v107
    %v204 = vpack.c.bf16 %v116, %v108
    %v205 = vpack.c.bf16 %v117, %v109
    %v206 = vpack.c.bf16 %v118, %v110
    %v207 = vpack.c.bf16 %v119, %v111
    %v208 = vpack.c.bf16 %v120, %v112
    %v209 = vpack.c.bf16 %v129, %v121
    %v210 = vpack.c.bf16 %v130, %v122
    %v211 = vpack.c.bf16 %v131, %v123
    %v212 = vpack.c.bf16 %v132, %v124
    %v213 = vpack.c.bf16 %v133, %v125
    %v214 = vpack.c.bf16 %v134, %v126
    %v215 = vpack.c.bf16 %v135, %v127
    %v216 = vpack.c.bf16 %v136, %v128
    %v217 = vpack.c.bf16 %v145, %v137
    %v218 = vpack.c.bf16 %v146, %v138
    %v219 = vpack.c.bf16 %v147, %v139
    %v220 = vpack.c.bf16 %v148, %v140
    %v221 = vpack.c.bf16 %v149, %v141
    %v222 = vpack.c.bf16 %v150, %v142
    %v223 = vpack.c.bf16 %v151, %v143
    %v224 = vpack.c.bf16 %v152, %v144
    %v225 = vpack.c.bf16 %v161, %v153
    %v226 = vpack.c.bf16 %v162, %v154
    %v227 = vpack.c.bf16 %v163, %v155
    %v228 = vpack.c.bf16 %v164, %v156
    %v229 = vpack.c.bf16 %v165, %v157
    %v230 = vpack.c.bf16 %v166, %v158
    %v231 = vpack.c.bf16 %v167, %v159
    %v232 = vpack.c.bf16 %v168, %v160
    %v233 = vld [vmem:[#allocation2] sm:$0xff]
    %v234 = vld [vmem:[#allocation2 + $0x8] sm:$0xff]
    %v235 = vld [vmem:[#allocation2 + $0x10] sm:$0xff]
    %v236 = vld [vmem:[#allocation2 + $0x18] sm:$0xff]
    %v237 = vld [vmem:[#allocation2 + $0x20] sm:$0xff]
    %v238 = vld [vmem:[#allocation2 + $0x28] sm:$0xff]
    %v239 = vld [vmem:[#allocation2 + $0x30] sm:$0xff]
    %v240 = vld [vmem:[#allocation2 + $0x38] sm:$0xff]
    %v241 = vld [vmem:[#allocation2 + $0x40] sm:$0xff]
    %v242 = vld [vmem:[#allocation2 + $0x48] sm:$0xff]
    %v243 = vld [vmem:[#allocation2 + $0x50] sm:$0xff]
    %v244 = vld [vmem:[#allocation2 + $0x58] sm:$0xff]
    %v245 = vld [vmem:[#allocation2 + $0x60] sm:$0xff]
    %v246 = vld [vmem:[#allocation2 + $0x68] sm:$0xff]
    %v247 = vld [vmem:[#allocation2 + $0x70] sm:$0xff]
    %v248 = vld [vmem:[#allocation2 + $0x78] sm:$0xff]
    %v249 = vld [vmem:[#allocation2 + $0x80] sm:$0xff]
    %v250 = vld [vmem:[#allocation2 + $0x88] sm:$0xff]
    %v251 = vld [vmem:[#allocation2 + $0x90] sm:$0xff]
    %v252 = vld [vmem:[#allocation2 + $0x98] sm:$0xff]
    %v253 = vld [vmem:[#allocation2 + $0xa0] sm:$0xff]
    %v254 = vld [vmem:[#allocation2 + $0xa8] sm:$0xff]
    %v255 = vld [vmem:[#allocation2 + $0xb0] sm:$0xff]
    %v256 = vld [vmem:[#allocation2 + $0xb8] sm:$0xff]
    %v257 = vld [vmem:[#allocation2 + $0xc0] sm:$0xff]
    %v258 = vld [vmem:[#allocation2 + $0xc8] sm:$0xff]
    %v259 = vld [vmem:[#allocation2 + $0xd0] sm:$0xff]
    %v260 = vld [vmem:[#allocation2 + $0xd8] sm:$0xff]
    %v261 = vld [vmem:[#allocation2 + $0xe0] sm:$0xff]
    %v262 = vld [vmem:[#allocation2 + $0xe8] sm:$0xff]
    %v263 = vld [vmem:[#allocation2 + $0xf0] sm:$0xff]
    %v264 = vld [vmem:[#allocation2 + $0xf8] sm:$0xff]
    %v265 = vld [vmem:[#allocation2 + $0x100] sm:$0xff]
    %v266 = vld [vmem:[#allocation2 + $0x108] sm:$0xff]
    %v267 = vld [vmem:[#allocation2 + $0x110] sm:$0xff]
    %v268 = vld [vmem:[#allocation2 + $0x118] sm:$0xff]
    %v269 = vld [vmem:[#allocation2 + $0x120] sm:$0xff]
    %v270 = vld [vmem:[#allocation2 + $0x128] sm:$0xff]
    %v271 = vld [vmem:[#allocation2 + $0x130] sm:$0xff]
    %v272 = vld [vmem:[#allocation2 + $0x138] sm:$0xff]
    %v273 = vld [vmem:[#allocation2 + $0x140] sm:$0xff]
    %v274 = vld [vmem:[#allocation2 + $0x148] sm:$0xff]
    %v275 = vld [vmem:[#allocation2 + $0x150] sm:$0xff]
    %v276 = vld [vmem:[#allocation2 + $0x158] sm:$0xff]
    %v277 = vld [vmem:[#allocation2 + $0x160] sm:$0xff]
    %v278 = vld [vmem:[#allocation2 + $0x168] sm:$0xff]
    %v279 = vld [vmem:[#allocation2 + $0x170] sm:$0xff]
    %v280 = vld [vmem:[#allocation2 + $0x178] sm:$0xff]
    %v281 = vld [vmem:[#allocation2 + $0x180] sm:$0xff]
    %v282 = vld [vmem:[#allocation2 + $0x188] sm:$0xff]
    %v283 = vld [vmem:[#allocation2 + $0x190] sm:$0xff]
    %v284 = vld [vmem:[#allocation2 + $0x198] sm:$0xff]
    %v285 = vld [vmem:[#allocation2 + $0x1a0] sm:$0xff]
    %v286 = vld [vmem:[#allocation2 + $0x1a8] sm:$0xff]
    %v287 = vld [vmem:[#allocation2 + $0x1b0] sm:$0xff]
    %v288 = vld [vmem:[#allocation2 + $0x1b8] sm:$0xff]
    %v289 = vld [vmem:[#allocation2 + $0x1c0] sm:$0xff]
    %v290 = vld [vmem:[#allocation2 + $0x1c8] sm:$0xff]
    %v291 = vld [vmem:[#allocation2 + $0x1d0] sm:$0xff]
    %v292 = vld [vmem:[#allocation2 + $0x1d8] sm:$0xff]
    %v293 = vld [vmem:[#allocation2 + $0x1e0] sm:$0xff]
    %v294 = vld [vmem:[#allocation2 + $0x1e8] sm:$0xff]
    %v295 = vld [vmem:[#allocation2 + $0x1f0] sm:$0xff]
    %v296 = vld [vmem:[#allocation2 + $0x1f8] sm:$0xff]
    %v297 = vld [vmem:[#allocation2 + $0x200] sm:$0xff]
    %v298 = vld [vmem:[#allocation2 + $0x208] sm:$0xff]
    %v299 = vld [vmem:[#allocation2 + $0x210] sm:$0xff]
    %v300 = vld [vmem:[#allocation2 + $0x218] sm:$0xff]
    %v301 = vld [vmem:[#allocation2 + $0x220] sm:$0xff]
    %v302 = vld [vmem:[#allocation2 + $0x228] sm:$0xff]
    %v303 = vld [vmem:[#allocation2 + $0x230] sm:$0xff]
    %v304 = vld [vmem:[#allocation2 + $0x238] sm:$0xff]
    %v305 = vld [vmem:[#allocation2 + $0x240] sm:$0xff]
    %v306 = vld [vmem:[#allocation2 + $0x248] sm:$0xff]
    %v307 = vld [vmem:[#allocation2 + $0x250] sm:$0xff]
    %v308 = vld [vmem:[#allocation2 + $0x258] sm:$0xff]
    %v309 = vld [vmem:[#allocation2 + $0x260] sm:$0xff]
    %v310 = vld [vmem:[#allocation2 + $0x268] sm:$0xff]
    %v311 = vld [vmem:[#allocation2 + $0x270] sm:$0xff]
    %v312 = vld [vmem:[#allocation2 + $0x278] sm:$0xff]
    %v313 = vld [vmem:[#allocation2 + $0x280] sm:$0xff]
    %v314 = vld [vmem:[#allocation2 + $0x288] sm:$0xff]
    %v315 = vld [vmem:[#allocation2 + $0x290] sm:$0xff]
    %v316 = vld [vmem:[#allocation2 + $0x298] sm:$0xff]
    %v317 = vld [vmem:[#allocation2 + $0x2a0] sm:$0xff]
    %v318 = vld [vmem:[#allocation2 + $0x2a8] sm:$0xff]
    %v319 = vld [vmem:[#allocation2 + $0x2b0] sm:$0xff]
    %v320 = vld [vmem:[#allocation2 + $0x2b8] sm:$0xff]
    %v321 = vld [vmem:[#allocation2 + $0x2c0] sm:$0xff]
    %v322 = vld [vmem:[#allocation2 + $0x2c8] sm:$0xff]
    %v323 = vld [vmem:[#allocation2 + $0x2d0] sm:$0xff]
    %v324 = vld [vmem:[#allocation2 + $0x2d8] sm:$0xff]
    %v325 = vld [vmem:[#allocation2 + $0x2e0] sm:$0xff]
    %v326 = vld [vmem:[#allocation2 + $0x2e8] sm:$0xff]
    %v327 = vld [vmem:[#allocation2 + $0x2f0] sm:$0xff]
    %v328 = vld [vmem:[#allocation2 + $0x2f8] sm:$0xff]
    %v329 = vld [vmem:[#allocation2 + $0x300] sm:$0xff]
    %v330 = vld [vmem:[#allocation2 + $0x308] sm:$0xff]
    %v331 = vld [vmem:[#allocation2 + $0x310] sm:$0xff]
    %v332 = vld [vmem:[#allocation2 + $0x318] sm:$0xff]
    %v333 = vld [vmem:[#allocation2 + $0x320] sm:$0xff]
    %v334 = vld [vmem:[#allocation2 + $0x328] sm:$0xff]
    %v335 = vld [vmem:[#allocation2 + $0x330] sm:$0xff]
    %v336 = vld [vmem:[#allocation2 + $0x338] sm:$0xff]
    %v337 = vld [vmem:[#allocation2 + $0x340] sm:$0xff]
    %v338 = vld [vmem:[#allocation2 + $0x348] sm:$0xff]
    %v339 = vld [vmem:[#allocation2 + $0x350] sm:$0xff]
    %v340 = vld [vmem:[#allocation2 + $0x358] sm:$0xff]
    %v341 = vld [vmem:[#allocation2 + $0x360] sm:$0xff]
    %v342 = vld [vmem:[#allocation2 + $0x368] sm:$0xff]
    %v343 = vld [vmem:[#allocation2 + $0x370] sm:$0xff]
    %v344 = vld [vmem:[#allocation2 + $0x378] sm:$0xff]
    %v345 = vld [vmem:[#allocation2 + $0x380] sm:$0xff]
    %v346 = vld [vmem:[#allocation2 + $0x388] sm:$0xff]
    %v347 = vld [vmem:[#allocation2 + $0x390] sm:$0xff]
    %v348 = vld [vmem:[#allocation2 + $0x398] sm:$0xff]
    %v349 = vld [vmem:[#allocation2 + $0x3a0] sm:$0xff]
    %v350 = vld [vmem:[#allocation2 + $0x3a8] sm:$0xff]
    %v351 = vld [vmem:[#allocation2 + $0x3b0] sm:$0xff]
    %v352 = vld [vmem:[#allocation2 + $0x3b8] sm:$0xff]
    %v353 = vld [vmem:[#allocation2 + $0x3c0] sm:$0xff]
    %v354 = vld [vmem:[#allocation2 + $0x3c8] sm:$0xff]
    %v355 = vld [vmem:[#allocation2 + $0x3d0] sm:$0xff]
    %v356 = vld [vmem:[#allocation2 + $0x3d8] sm:$0xff]
    %v357 = vld [vmem:[#allocation2 + $0x3e0] sm:$0xff]
    %v358 = vld [vmem:[#allocation2 + $0x3e8] sm:$0xff]
    %v359 = vld [vmem:[#allocation2 + $0x3f0] sm:$0xff]
    %v360 = vld [vmem:[#allocation2 + $0x3f8] sm:$0xff]
    %v361 = vld [vmem:[#allocation2 + $0x400] sm:$0xff]
    %v362 = vld [vmem:[#allocation2 + $0x408] sm:$0xff]
    %v363 = vld [vmem:[#allocation2 + $0x410] sm:$0xff]
    %v364 = vld [vmem:[#allocation2 + $0x418] sm:$0xff]
    %v365 = vld [vmem:[#allocation2 + $0x420] sm:$0xff]
    %v366 = vld [vmem:[#allocation2 + $0x428] sm:$0xff]
    %v367 = vld [vmem:[#allocation2 + $0x430] sm:$0xff]
    %v368 = vld [vmem:[#allocation2 + $0x438] sm:$0xff]
    %v369 = vld [vmem:[#allocation2 + $0x440] sm:$0xff]
    %v370 = vld [vmem:[#allocation2 + $0x448] sm:$0xff]
    %v371 = vld [vmem:[#allocation2 + $0x450] sm:$0xff]
    %v372 = vld [vmem:[#allocation2 + $0x458] sm:$0xff]
    %v373 = vld [vmem:[#allocation2 + $0x460] sm:$0xff]
    %v374 = vld [vmem:[#allocation2 + $0x468] sm:$0xff]
    %v375 = vld [vmem:[#allocation2 + $0x470] sm:$0xff]
    %v376 = vld [vmem:[#allocation2 + $0x478] sm:$0xff]
    %v377 = vld [vmem:[#allocation2 + $0x480] sm:$0xff]
    %v378 = vld [vmem:[#allocation2 + $0x488] sm:$0xff]
    %v379 = vld [vmem:[#allocation2 + $0x490] sm:$0xff]
    %v380 = vld [vmem:[#allocation2 + $0x498] sm:$0xff]
    %v381 = vld [vmem:[#allocation2 + $0x4a0] sm:$0xff]
    %v382 = vld [vmem:[#allocation2 + $0x4a8] sm:$0xff]
    %v383 = vld [vmem:[#allocation2 + $0x4b0] sm:$0xff]
    %v384 = vld [vmem:[#allocation2 + $0x4b8] sm:$0xff]
    %v385 = vld [vmem:[#allocation2 + $0x4c0] sm:$0xff]
    %v386 = vld [vmem:[#allocation2 + $0x4c8] sm:$0xff]
    %v387 = vld [vmem:[#allocation2 + $0x4d0] sm:$0xff]
    %v388 = vld [vmem:[#allocation2 + $0x4d8] sm:$0xff]
    %v389 = vld [vmem:[#allocation2 + $0x4e0] sm:$0xff]
    %v390 = vld [vmem:[#allocation2 + $0x4e8] sm:$0xff]
    %v391 = vld [vmem:[#allocation2 + $0x4f0] sm:$0xff]
    %v392 = vld [vmem:[#allocation2 + $0x4f8] sm:$0xff]
    %v393 = vld [vmem:[#allocation2 + $0x500] sm:$0xff]
    %v394 = vld [vmem:[#allocation2 + $0x508] sm:$0xff]
    %v395 = vld [vmem:[#allocation2 + $0x510] sm:$0xff]
    %v396 = vld [vmem:[#allocation2 + $0x518] sm:$0xff]
    %v397 = vld [vmem:[#allocation2 + $0x520] sm:$0xff]
    %v398 = vld [vmem:[#allocation2 + $0x528] sm:$0xff]
    %v399 = vld [vmem:[#allocation2 + $0x530] sm:$0xff]
    %v400 = vld [vmem:[#allocation2 + $0x538] sm:$0xff]
    %v401 = vld [vmem:[#allocation2 + $0x540] sm:$0xff]
    %v402 = vld [vmem:[#allocation2 + $0x548] sm:$0xff]
    %v403 = vld [vmem:[#allocation2 + $0x550] sm:$0xff]
    %v404 = vld [vmem:[#allocation2 + $0x558] sm:$0xff]
    %v405 = vld [vmem:[#allocation2 + $0x560] sm:$0xff]
    %v406 = vld [vmem:[#allocation2 + $0x568] sm:$0xff]
    %v407 = vld [vmem:[#allocation2 + $0x570] sm:$0xff]
    %v408 = vld [vmem:[#allocation2 + $0x578] sm:$0xff]
    %v409 = vld [vmem:[#allocation2 + $0x580] sm:$0xff]
    %v410 = vld [vmem:[#allocation2 + $0x588] sm:$0xff]
    %v411 = vld [vmem:[#allocation2 + $0x590] sm:$0xff]
    %v412 = vld [vmem:[#allocation2 + $0x598] sm:$0xff]
    %v413 = vld [vmem:[#allocation2 + $0x5a0] sm:$0xff]
    %v414 = vld [vmem:[#allocation2 + $0x5a8] sm:$0xff]
    %v415 = vld [vmem:[#allocation2 + $0x5b0] sm:$0xff]
    %v416 = vld [vmem:[#allocation2 + $0x5b8] sm:$0xff]
    %v417 = vld [vmem:[#allocation2 + $0x5c0] sm:$0xff]
    %v418 = vld [vmem:[#allocation2 + $0x5c8] sm:$0xff]
    %v419 = vld [vmem:[#allocation2 + $0x5d0] sm:$0xff]
    %v420 = vld [vmem:[#allocation2 + $0x5d8] sm:$0xff]
    %v421 = vld [vmem:[#allocation2 + $0x5e0] sm:$0xff]
    %v422 = vld [vmem:[#allocation2 + $0x5e8] sm:$0xff]
    %v423 = vld [vmem:[#allocation2 + $0x5f0] sm:$0xff]
    %v424 = vld [vmem:[#allocation2 + $0x5f8] sm:$0xff]
    %v425 = vld [vmem:[#allocation2 + $0x600] sm:$0xff]
    %v426 = vld [vmem:[#allocation2 + $0x608] sm:$0xff]
    %v427 = vld [vmem:[#allocation2 + $0x610] sm:$0xff]
    %v428 = vld [vmem:[#allocation2 + $0x618] sm:$0xff]
    %v429 = vld [vmem:[#allocation2 + $0x620] sm:$0xff]
    %v430 = vld [vmem:[#allocation2 + $0x628] sm:$0xff]
    %v431 = vld [vmem:[#allocation2 + $0x630] sm:$0xff]
    %v432 = vld [vmem:[#allocation2 + $0x638] sm:$0xff]
    %v433 = vld [vmem:[#allocation2 + $0x640] sm:$0xff]
    %v434 = vld [vmem:[#allocation2 + $0x648] sm:$0xff]
    %v435 = vld [vmem:[#allocation2 + $0x650] sm:$0xff]
    %v436 = vld [vmem:[#allocation2 + $0x658] sm:$0xff]
    %v437 = vld [vmem:[#allocation2 + $0x660] sm:$0xff]
    %v438 = vld [vmem:[#allocation2 + $0x668] sm:$0xff]
    %v439 = vld [vmem:[#allocation2 + $0x670] sm:$0xff]
    %v440 = vld [vmem:[#allocation2 + $0x678] sm:$0xff]
    %v441 = vld [vmem:[#allocation2 + $0x680] sm:$0xff]
    %v442 = vld [vmem:[#allocation2 + $0x688] sm:$0xff]
    %v443 = vld [vmem:[#allocation2 + $0x690] sm:$0xff]
    %v444 = vld [vmem:[#allocation2 + $0x698] sm:$0xff]
    %v445 = vld [vmem:[#allocation2 + $0x6a0] sm:$0xff]
    %v446 = vld [vmem:[#allocation2 + $0x6a8] sm:$0xff]
    %v447 = vld [vmem:[#allocation2 + $0x6b0] sm:$0xff]
    %v448 = vld [vmem:[#allocation2 + $0x6b8] sm:$0xff]
    %v449 = vld [vmem:[#allocation2 + $0x6c0] sm:$0xff]
    %v450 = vld [vmem:[#allocation2 + $0x6c8] sm:$0xff]
    %v451 = vld [vmem:[#allocation2 + $0x6d0] sm:$0xff]
    %v452 = vld [vmem:[#allocation2 + $0x6d8] sm:$0xff]
    %v453 = vld [vmem:[#allocation2 + $0x6e0] sm:$0xff]
    %v454 = vld [vmem:[#allocation2 + $0x6e8] sm:$0xff]
    %v455 = vld [vmem:[#allocation2 + $0x6f0] sm:$0xff]
    %v456 = vld [vmem:[#allocation2 + $0x6f8] sm:$0xff]
    %v457 = vld [vmem:[#allocation2 + $0x700] sm:$0xff]
    %v458 = vld [vmem:[#allocation2 + $0x708] sm:$0xff]
    %v459 = vld [vmem:[#allocation2 + $0x710] sm:$0xff]
    %v460 = vld [vmem:[#allocation2 + $0x718] sm:$0xff]
    %v461 = vld [vmem:[#allocation2 + $0x720] sm:$0xff]
    %v462 = vld [vmem:[#allocation2 + $0x728] sm:$0xff]
    %v463 = vld [vmem:[#allocation2 + $0x730] sm:$0xff]
    %v464 = vld [vmem:[#allocation2 + $0x738] sm:$0xff]
    %v465 = vld [vmem:[#allocation2 + $0x740] sm:$0xff]
    %v466 = vld [vmem:[#allocation2 + $0x748] sm:$0xff]
    %v467 = vld [vmem:[#allocation2 + $0x750] sm:$0xff]
    %v468 = vld [vmem:[#allocation2 + $0x758] sm:$0xff]
    %v469 = vld [vmem:[#allocation2 + $0x760] sm:$0xff]
    %v470 = vld [vmem:[#allocation2 + $0x768] sm:$0xff]
    %v471 = vld [vmem:[#allocation2 + $0x770] sm:$0xff]
    %v472 = vld [vmem:[#allocation2 + $0x778] sm:$0xff]
    %v473 = vld [vmem:[#allocation2 + $0x780] sm:$0xff]
    %v474 = vld [vmem:[#allocation2 + $0x788] sm:$0xff]
    %v475 = vld [vmem:[#allocation2 + $0x790] sm:$0xff]
    %v476 = vld [vmem:[#allocation2 + $0x798] sm:$0xff]
    %v477 = vld [vmem:[#allocation2 + $0x7a0] sm:$0xff]
    %v478 = vld [vmem:[#allocation2 + $0x7a8] sm:$0xff]
    %v479 = vld [vmem:[#allocation2 + $0x7b0] sm:$0xff]
    %v480 = vld [vmem:[#allocation2 + $0x7b8] sm:$0xff]
    %v481 = vld [vmem:[#allocation2 + $0x7c0] sm:$0xff]
    %v482 = vld [vmem:[#allocation2 + $0x7c8] sm:$0xff]
    %v483 = vld [vmem:[#allocation2 + $0x7d0] sm:$0xff]
    %v484 = vld [vmem:[#allocation2 + $0x7d8] sm:$0xff]
    %v485 = vld [vmem:[#allocation2 + $0x7e0] sm:$0xff]
    %v486 = vld [vmem:[#allocation2 + $0x7e8] sm:$0xff]
    %v487 = vld [vmem:[#allocation2 + $0x7f0] sm:$0xff]
    %v488 = vld [vmem:[#allocation2 + $0x7f8] sm:$0xff]
    %v489 = vld [vmem:[%s2] sm:$0xf]
    %v491 = vlaneseq
    %v492 = vshrl.u32 %v491, 7
    %v493 = vsub.s32 0, %v492
    %v494 = vrot.slane %v489, %v493
    %v495 = vlaneseq
    %v496 = vshrl.u32 %v495, 7
    %v497 = vsub.s32 1, %v496
    %v498 = vrot.slane %v489, %v497
    %v499 = vlaneseq
    %v500 = vshrl.u32 %v499, 7
    %v501 = vsub.s32 2, %v500
    %v502 = vrot.slane %v489, %v501
    %v503 = vlaneseq
    %v504 = vshrl.u32 %v503, 7
    %v505 = vsub.s32 3, %v504
    %v506 = vrot.slane %v489, %v505
    %v767 = vunpack.c.l.b16 %v233
    %v768 = vunpack.c.h.b16 %v233
    %v769 = vunpack.c.l.b16 %v234
    %v770 = vunpack.c.h.b16 %v234
    %v771 = vunpack.c.l.b16 %v235
    %v772 = vunpack.c.h.b16 %v235
    %v773 = vunpack.c.l.b16 %v236
    %v774 = vunpack.c.h.b16 %v236
    %v775 = vunpack.c.l.b16 %v237
    %v776 = vunpack.c.h.b16 %v237
    %v777 = vunpack.c.l.b16 %v238
    %v778 = vunpack.c.h.b16 %v238
    %v779 = vunpack.c.l.b16 %v239
    %v780 = vunpack.c.h.b16 %v239
    %v781 = vunpack.c.l.b16 %v240
    %v782 = vunpack.c.h.b16 %v240
    %v783 = vunpack.c.l.b16 %v241
    %v784 = vunpack.c.h.b16 %v241
    %v785 = vunpack.c.l.b16 %v242
    %v786 = vunpack.c.h.b16 %v242
    %v787 = vunpack.c.l.b16 %v243
    %v788 = vunpack.c.h.b16 %v243
    %v789 = vunpack.c.l.b16 %v244
    %v790 = vunpack.c.h.b16 %v244
    %v791 = vunpack.c.l.b16 %v245
    %v792 = vunpack.c.h.b16 %v245
    %v793 = vunpack.c.l.b16 %v246
    %v794 = vunpack.c.h.b16 %v246
    %v795 = vunpack.c.l.b16 %v247
    %v796 = vunpack.c.h.b16 %v247
    %v797 = vunpack.c.l.b16 %v248
    %v798 = vunpack.c.h.b16 %v248
    %v799 = vunpack.c.l.b16 %v249
    %v800 = vunpack.c.h.b16 %v249
    %v801 = vunpack.c.l.b16 %v250
    %v802 = vunpack.c.h.b16 %v250
    %v803 = vunpack.c.l.b16 %v251
    %v804 = vunpack.c.h.b16 %v251
    %v805 = vunpack.c.l.b16 %v252
    %v806 = vunpack.c.h.b16 %v252
    %v807 = vunpack.c.l.b16 %v253
    %v808 = vunpack.c.h.b16 %v253
    %v809 = vunpack.c.l.b16 %v254
    %v810 = vunpack.c.h.b16 %v254
    %v811 = vunpack.c.l.b16 %v255
    %v812 = vunpack.c.h.b16 %v255
    %v813 = vunpack.c.l.b16 %v256
    %v814 = vunpack.c.h.b16 %v256
    %v815 = vunpack.c.l.b16 %v257
    %v816 = vunpack.c.h.b16 %v257
    %v817 = vunpack.c.l.b16 %v258
    %v818 = vunpack.c.h.b16 %v258
    %v819 = vunpack.c.l.b16 %v259
    %v820 = vunpack.c.h.b16 %v259
    %v821 = vunpack.c.l.b16 %v260
    %v822 = vunpack.c.h.b16 %v260
    %v823 = vunpack.c.l.b16 %v261
    %v824 = vunpack.c.h.b16 %v261
    %v825 = vunpack.c.l.b16 %v262
    %v826 = vunpack.c.h.b16 %v262
    %v827 = vunpack.c.l.b16 %v263
    %v828 = vunpack.c.h.b16 %v263
    %v829 = vunpack.c.l.b16 %v264
    %v830 = vunpack.c.h.b16 %v264
    %v831 = vunpack.c.l.b16 %v265
    %v832 = vunpack.c.h.b16 %v265
    %v833 = vunpack.c.l.b16 %v266
    %v834 = vunpack.c.h.b16 %v266
    %v835 = vunpack.c.l.b16 %v267
    %v836 = vunpack.c.h.b16 %v267
    %v837 = vunpack.c.l.b16 %v268
    %v838 = vunpack.c.h.b16 %v268
    %v839 = vunpack.c.l.b16 %v269
    %v840 = vunpack.c.h.b16 %v269
    %v841 = vunpack.c.l.b16 %v270
    %v842 = vunpack.c.h.b16 %v270
    %v843 = vunpack.c.l.b16 %v271
    %v844 = vunpack.c.h.b16 %v271
    %v845 = vunpack.c.l.b16 %v272
    %v846 = vunpack.c.h.b16 %v272
    %v847 = vunpack.c.l.b16 %v273
    %v848 = vunpack.c.h.b16 %v273
    %v849 = vunpack.c.l.b16 %v274
    %v850 = vunpack.c.h.b16 %v274
    %v851 = vunpack.c.l.b16 %v275
    %v852 = vunpack.c.h.b16 %v275
    %v853 = vunpack.c.l.b16 %v276
    %v854 = vunpack.c.h.b16 %v276
    %v855 = vunpack.c.l.b16 %v277
    %v856 = vunpack.c.h.b16 %v277
    %v857 = vunpack.c.l.b16 %v278
    %v858 = vunpack.c.h.b16 %v278
    %v859 = vunpack.c.l.b16 %v279
    %v860 = vunpack.c.h.b16 %v279
    %v861 = vunpack.c.l.b16 %v280
    %v862 = vunpack.c.h.b16 %v280
    %v863 = vunpack.c.l.b16 %v281
    %v864 = vunpack.c.h.b16 %v281
    %v865 = vunpack.c.l.b16 %v282
    %v866 = vunpack.c.h.b16 %v282
    %v867 = vunpack.c.l.b16 %v283
    %v868 = vunpack.c.h.b16 %v283
    %v869 = vunpack.c.l.b16 %v284
    %v870 = vunpack.c.h.b16 %v284
    %v871 = vunpack.c.l.b16 %v285
    %v872 = vunpack.c.h.b16 %v285
    %v873 = vunpack.c.l.b16 %v286
    %v874 = vunpack.c.h.b16 %v286
    %v875 = vunpack.c.l.b16 %v287
    %v876 = vunpack.c.h.b16 %v287
    %v877 = vunpack.c.l.b16 %v288
    %v878 = vunpack.c.h.b16 %v288
    %v879 = vunpack.c.l.b16 %v289
    %v880 = vunpack.c.h.b16 %v289
    %v881 = vunpack.c.l.b16 %v290
    %v882 = vunpack.c.h.b16 %v290
    %v883 = vunpack.c.l.b16 %v291
    %v884 = vunpack.c.h.b16 %v291
    %v885 = vunpack.c.l.b16 %v292
    %v886 = vunpack.c.h.b16 %v292
    %v887 = vunpack.c.l.b16 %v293
    %v888 = vunpack.c.h.b16 %v293
    %v889 = vunpack.c.l.b16 %v294
    %v890 = vunpack.c.h.b16 %v294
    %v891 = vunpack.c.l.b16 %v295
    %v892 = vunpack.c.h.b16 %v295
    %v893 = vunpack.c.l.b16 %v296
    %v894 = vunpack.c.h.b16 %v296
    %v895 = vunpack.c.l.b16 %v297
    %v896 = vunpack.c.h.b16 %v297
    %v897 = vunpack.c.l.b16 %v298
    %v898 = vunpack.c.h.b16 %v298
    %v899 = vunpack.c.l.b16 %v299
    %v900 = vunpack.c.h.b16 %v299
    %v901 = vunpack.c.l.b16 %v300
    %v902 = vunpack.c.h.b16 %v300
    %v903 = vunpack.c.l.b16 %v301
    %v904 = vunpack.c.h.b16 %v301
    %v905 = vunpack.c.l.b16 %v302
    %v906 = vunpack.c.h.b16 %v302
    %v907 = vunpack.c.l.b16 %v303
    %v908 = vunpack.c.h.b16 %v303
    %v909 = vunpack.c.l.b16 %v304
    %v910 = vunpack.c.h.b16 %v304
    %v911 = vunpack.c.l.b16 %v305
    %v912 = vunpack.c.h.b16 %v305
    %v913 = vunpack.c.l.b16 %v306
    %v914 = vunpack.c.h.b16 %v306
    %v915 = vunpack.c.l.b16 %v307
    %v916 = vunpack.c.h.b16 %v307
    %v917 = vunpack.c.l.b16 %v308
    %v918 = vunpack.c.h.b16 %v308
    %v919 = vunpack.c.l.b16 %v309
    %v920 = vunpack.c.h.b16 %v309
    %v921 = vunpack.c.l.b16 %v310
    %v922 = vunpack.c.h.b16 %v310
    %v923 = vunpack.c.l.b16 %v311
    %v924 = vunpack.c.h.b16 %v311
    %v925 = vunpack.c.l.b16 %v312
    %v926 = vunpack.c.h.b16 %v312
    %v927 = vunpack.c.l.b16 %v313
    %v928 = vunpack.c.h.b16 %v313
    %v929 = vunpack.c.l.b16 %v314
    %v930 = vunpack.c.h.b16 %v314
    %v931 = vunpack.c.l.b16 %v315
    %v932 = vunpack.c.h.b16 %v315
    %v933 = vunpack.c.l.b16 %v316
    %v934 = vunpack.c.h.b16 %v316
    %v935 = vunpack.c.l.b16 %v317
    %v936 = vunpack.c.h.b16 %v317
    %v937 = vunpack.c.l.b16 %v318
    %v938 = vunpack.c.h.b16 %v318
    %v939 = vunpack.c.l.b16 %v319
    %v940 = vunpack.c.h.b16 %v319
    %v941 = vunpack.c.l.b16 %v320
    %v942 = vunpack.c.h.b16 %v320
    %v943 = vunpack.c.l.b16 %v321
    %v944 = vunpack.c.h.b16 %v321
    %v945 = vunpack.c.l.b16 %v322
    %v946 = vunpack.c.h.b16 %v322
    %v947 = vunpack.c.l.b16 %v323
    %v948 = vunpack.c.h.b16 %v323
    %v949 = vunpack.c.l.b16 %v324
    %v950 = vunpack.c.h.b16 %v324
    %v951 = vunpack.c.l.b16 %v325
    %v952 = vunpack.c.h.b16 %v325
    %v953 = vunpack.c.l.b16 %v326
    %v954 = vunpack.c.h.b16 %v326
    %v955 = vunpack.c.l.b16 %v327
    %v956 = vunpack.c.h.b16 %v327
    %v957 = vunpack.c.l.b16 %v328
    %v958 = vunpack.c.h.b16 %v328
    %v959 = vunpack.c.l.b16 %v329
    %v960 = vunpack.c.h.b16 %v329
    %v961 = vunpack.c.l.b16 %v330
    %v962 = vunpack.c.h.b16 %v330
    %v963 = vunpack.c.l.b16 %v331
    %v964 = vunpack.c.h.b16 %v331
    %v965 = vunpack.c.l.b16 %v332
    %v966 = vunpack.c.h.b16 %v332
    %v967 = vunpack.c.l.b16 %v333
    %v968 = vunpack.c.h.b16 %v333
    %v969 = vunpack.c.l.b16 %v334
    %v970 = vunpack.c.h.b16 %v334
    %v971 = vunpack.c.l.b16 %v335
    %v972 = vunpack.c.h.b16 %v335
    %v973 = vunpack.c.l.b16 %v336
    %v974 = vunpack.c.h.b16 %v336
    %v975 = vunpack.c.l.b16 %v337
    %v976 = vunpack.c.h.b16 %v337
    %v977 = vunpack.c.l.b16 %v338
    %v978 = vunpack.c.h.b16 %v338
    %v979 = vunpack.c.l.b16 %v339
    %v980 = vunpack.c.h.b16 %v339
    %v981 = vunpack.c.l.b16 %v340
    %v982 = vunpack.c.h.b16 %v340
    %v983 = vunpack.c.l.b16 %v341
    %v984 = vunpack.c.h.b16 %v341
    %v985 = vunpack.c.l.b16 %v342
    %v986 = vunpack.c.h.b16 %v342
    %v987 = vunpack.c.l.b16 %v343
    %v988 = vunpack.c.h.b16 %v343
    %v989 = vunpack.c.l.b16 %v344
    %v990 = vunpack.c.h.b16 %v344
    %v991 = vunpack.c.l.b16 %v345
    %v992 = vunpack.c.h.b16 %v345
    %v993 = vunpack.c.l.b16 %v346
    %v994 = vunpack.c.h.b16 %v346
    %v995 = vunpack.c.l.b16 %v347
    %v996 = vunpack.c.h.b16 %v347
    %v997 = vunpack.c.l.b16 %v348
    %v998 = vunpack.c.h.b16 %v348
    %v999 = vunpack.c.l.b16 %v349
    %v1000 = vunpack.c.h.b16 %v349
    %v1001 = vunpack.c.l.b16 %v350
    %v1002 = vunpack.c.h.b16 %v350
    %v1003 = vunpack.c.l.b16 %v351
    %v1004 = vunpack.c.h.b16 %v351
    %v1005 = vunpack.c.l.b16 %v352
    %v1006 = vunpack.c.h.b16 %v352
    %v1007 = vunpack.c.l.b16 %v353
    %v1008 = vunpack.c.h.b16 %v353
    %v1009 = vunpack.c.l.b16 %v354
    %v1010 = vunpack.c.h.b16 %v354
    %v1011 = vunpack.c.l.b16 %v355
    %v1012 = vunpack.c.h.b16 %v355
    %v1013 = vunpack.c.l.b16 %v356
    %v1014 = vunpack.c.h.b16 %v356
    %v1015 = vunpack.c.l.b16 %v357
    %v1016 = vunpack.c.h.b16 %v357
    %v1017 = vunpack.c.l.b16 %v358
    %v1018 = vunpack.c.h.b16 %v358
    %v1019 = vunpack.c.l.b16 %v359
    %v1020 = vunpack.c.h.b16 %v359
    %v1021 = vunpack.c.l.b16 %v360
    %v1022 = vunpack.c.h.b16 %v360
    %v1023 = vunpack.c.l.b16 %v361
    %v1024 = vunpack.c.h.b16 %v361
    %v1025 = vunpack.c.l.b16 %v362
    %v1026 = vunpack.c.h.b16 %v362
    %v1027 = vunpack.c.l.b16 %v363
    %v1028 = vunpack.c.h.b16 %v363
    %v1029 = vunpack.c.l.b16 %v364
    %v1030 = vunpack.c.h.b16 %v364
    %v1031 = vunpack.c.l.b16 %v365
    %v1032 = vunpack.c.h.b16 %v365
    %v1033 = vunpack.c.l.b16 %v366
    %v1034 = vunpack.c.h.b16 %v366
    %v1035 = vunpack.c.l.b16 %v367
    %v1036 = vunpack.c.h.b16 %v367
    %v1037 = vunpack.c.l.b16 %v368
    %v1038 = vunpack.c.h.b16 %v368
    %v1039 = vunpack.c.l.b16 %v369
    %v1040 = vunpack.c.h.b16 %v369
    %v1041 = vunpack.c.l.b16 %v370
    %v1042 = vunpack.c.h.b16 %v370
    %v1043 = vunpack.c.l.b16 %v371
    %v1044 = vunpack.c.h.b16 %v371
    %v1045 = vunpack.c.l.b16 %v372
    %v1046 = vunpack.c.h.b16 %v372
    %v1047 = vunpack.c.l.b16 %v373
    %v1048 = vunpack.c.h.b16 %v373
    %v1049 = vunpack.c.l.b16 %v374
    %v1050 = vunpack.c.h.b16 %v374
    %v1051 = vunpack.c.l.b16 %v375
    %v1052 = vunpack.c.h.b16 %v375
    %v1053 = vunpack.c.l.b16 %v376
    %v1054 = vunpack.c.h.b16 %v376
    %v1055 = vunpack.c.l.b16 %v377
    %v1056 = vunpack.c.h.b16 %v377
    %v1057 = vunpack.c.l.b16 %v378
    %v1058 = vunpack.c.h.b16 %v378
    %v1059 = vunpack.c.l.b16 %v379
    %v1060 = vunpack.c.h.b16 %v379
    %v1061 = vunpack.c.l.b16 %v380
    %v1062 = vunpack.c.h.b16 %v380
    %v1063 = vunpack.c.l.b16 %v381
    %v1064 = vunpack.c.h.b16 %v381
    %v1065 = vunpack.c.l.b16 %v382
    %v1066 = vunpack.c.h.b16 %v382
    %v1067 = vunpack.c.l.b16 %v383
    %v1068 = vunpack.c.h.b16 %v383
    %v1069 = vunpack.c.l.b16 %v384
    %v1070 = vunpack.c.h.b16 %v384
    %v1071 = vunpack.c.l.b16 %v385
    %v1072 = vunpack.c.h.b16 %v385
    %v1073 = vunpack.c.l.b16 %v386
    %v1074 = vunpack.c.h.b16 %v386
    %v1075 = vunpack.c.l.b16 %v387
    %v1076 = vunpack.c.h.b16 %v387
    %v1077 = vunpack.c.l.b16 %v388
    %v1078 = vunpack.c.h.b16 %v388
    %v1079 = vunpack.c.l.b16 %v389
    %v1080 = vunpack.c.h.b16 %v389
    %v1081 = vunpack.c.l.b16 %v390
    %v1082 = vunpack.c.h.b16 %v390
    %v1083 = vunpack.c.l.b16 %v391
    %v1084 = vunpack.c.h.b16 %v391
    %v1085 = vunpack.c.l.b16 %v392
    %v1086 = vunpack.c.h.b16 %v392
    %v1087 = vunpack.c.l.b16 %v393
    %v1088 = vunpack.c.h.b16 %v393
    %v1089 = vunpack.c.l.b16 %v394
    %v1090 = vunpack.c.h.b16 %v394
    %v1091 = vunpack.c.l.b16 %v395
    %v1092 = vunpack.c.h.b16 %v395
    %v1093 = vunpack.c.l.b16 %v396
    %v1094 = vunpack.c.h.b16 %v396
    %v1095 = vunpack.c.l.b16 %v397
    %v1096 = vunpack.c.h.b16 %v397
    %v1097 = vunpack.c.l.b16 %v398
    %v1098 = vunpack.c.h.b16 %v398
    %v1099 = vunpack.c.l.b16 %v399
    %v1100 = vunpack.c.h.b16 %v399
    %v1101 = vunpack.c.l.b16 %v400
    %v1102 = vunpack.c.h.b16 %v400
    %v1103 = vunpack.c.l.b16 %v401
    %v1104 = vunpack.c.h.b16 %v401
    %v1105 = vunpack.c.l.b16 %v402
    %v1106 = vunpack.c.h.b16 %v402
    %v1107 = vunpack.c.l.b16 %v403
    %v1108 = vunpack.c.h.b16 %v403
    %v1109 = vunpack.c.l.b16 %v404
    %v1110 = vunpack.c.h.b16 %v404
    %v1111 = vunpack.c.l.b16 %v405
    %v1112 = vunpack.c.h.b16 %v405
    %v1113 = vunpack.c.l.b16 %v406
    %v1114 = vunpack.c.h.b16 %v406
    %v1115 = vunpack.c.l.b16 %v407
    %v1116 = vunpack.c.h.b16 %v407
    %v1117 = vunpack.c.l.b16 %v408
    %v1118 = vunpack.c.h.b16 %v408
    %v1119 = vunpack.c.l.b16 %v409
    %v1120 = vunpack.c.h.b16 %v409
    %v1121 = vunpack.c.l.b16 %v410
    %v1122 = vunpack.c.h.b16 %v410
    %v1123 = vunpack.c.l.b16 %v411
    %v1124 = vunpack.c.h.b16 %v411
    %v1125 = vunpack.c.l.b16 %v412
    %v1126 = vunpack.c.h.b16 %v412
    %v1127 = vunpack.c.l.b16 %v413
    %v1128 = vunpack.c.h.b16 %v413
    %v1129 = vunpack.c.l.b16 %v414
    %v1130 = vunpack.c.h.b16 %v414
    %v1131 = vunpack.c.l.b16 %v415
    %v1132 = vunpack.c.h.b16 %v415
    %v1133 = vunpack.c.l.b16 %v416
    %v1134 = vunpack.c.h.b16 %v416
    %v1135 = vunpack.c.l.b16 %v417
    %v1136 = vunpack.c.h.b16 %v417
    %v1137 = vunpack.c.l.b16 %v418
    %v1138 = vunpack.c.h.b16 %v418
    %v1139 = vunpack.c.l.b16 %v419
    %v1140 = vunpack.c.h.b16 %v419
    %v1141 = vunpack.c.l.b16 %v420
    %v1142 = vunpack.c.h.b16 %v420
    %v1143 = vunpack.c.l.b16 %v421
    %v1144 = vunpack.c.h.b16 %v421
    %v1145 = vunpack.c.l.b16 %v422
    %v1146 = vunpack.c.h.b16 %v422
    %v1147 = vunpack.c.l.b16 %v423
    %v1148 = vunpack.c.h.b16 %v423
    %v1149 = vunpack.c.l.b16 %v424
    %v1150 = vunpack.c.h.b16 %v424
    %v1151 = vunpack.c.l.b16 %v425
    %v1152 = vunpack.c.h.b16 %v425
    %v1153 = vunpack.c.l.b16 %v426
    %v1154 = vunpack.c.h.b16 %v426
    %v1155 = vunpack.c.l.b16 %v427
    %v1156 = vunpack.c.h.b16 %v427
    %v1157 = vunpack.c.l.b16 %v428
    %v1158 = vunpack.c.h.b16 %v428
    %v1159 = vunpack.c.l.b16 %v429
    %v1160 = vunpack.c.h.b16 %v429
    %v1161 = vunpack.c.l.b16 %v430
    %v1162 = vunpack.c.h.b16 %v430
    %v1163 = vunpack.c.l.b16 %v431
    %v1164 = vunpack.c.h.b16 %v431
    %v1165 = vunpack.c.l.b16 %v432
    %v1166 = vunpack.c.h.b16 %v432
    %v1167 = vunpack.c.l.b16 %v433
    %v1168 = vunpack.c.h.b16 %v433
    %v1169 = vunpack.c.l.b16 %v434
    %v1170 = vunpack.c.h.b16 %v434
    %v1171 = vunpack.c.l.b16 %v435
    %v1172 = vunpack.c.h.b16 %v435
    %v1173 = vunpack.c.l.b16 %v436
    %v1174 = vunpack.c.h.b16 %v436
    %v1175 = vunpack.c.l.b16 %v437
    %v1176 = vunpack.c.h.b16 %v437
    %v1177 = vunpack.c.l.b16 %v438
    %v1178 = vunpack.c.h.b16 %v438
    %v1179 = vunpack.c.l.b16 %v439
    %v1180 = vunpack.c.h.b16 %v439
    %v1181 = vunpack.c.l.b16 %v440
    %v1182 = vunpack.c.h.b16 %v440
    %v1183 = vunpack.c.l.b16 %v441
    %v1184 = vunpack.c.h.b16 %v441
    %v1185 = vunpack.c.l.b16 %v442
    %v1186 = vunpack.c.h.b16 %v442
    %v1187 = vunpack.c.l.b16 %v443
    %v1188 = vunpack.c.h.b16 %v443
    %v1189 = vunpack.c.l.b16 %v444
    %v1190 = vunpack.c.h.b16 %v444
    %v1191 = vunpack.c.l.b16 %v445
    %v1192 = vunpack.c.h.b16 %v445
    %v1193 = vunpack.c.l.b16 %v446
    %v1194 = vunpack.c.h.b16 %v446
    %v1195 = vunpack.c.l.b16 %v447
    %v1196 = vunpack.c.h.b16 %v447
    %v1197 = vunpack.c.l.b16 %v448
    %v1198 = vunpack.c.h.b16 %v448
    %v1199 = vunpack.c.l.b16 %v449
    %v1200 = vunpack.c.h.b16 %v449
    %v1201 = vunpack.c.l.b16 %v450
    %v1202 = vunpack.c.h.b16 %v450
    %v1203 = vunpack.c.l.b16 %v451
    %v1204 = vunpack.c.h.b16 %v451
    %v1205 = vunpack.c.l.b16 %v452
    %v1206 = vunpack.c.h.b16 %v452
    %v1207 = vunpack.c.l.b16 %v453
    %v1208 = vunpack.c.h.b16 %v453
    %v1209 = vunpack.c.l.b16 %v454
    %v1210 = vunpack.c.h.b16 %v454
    %v1211 = vunpack.c.l.b16 %v455
    %v1212 = vunpack.c.h.b16 %v455
    %v1213 = vunpack.c.l.b16 %v456
    %v1214 = vunpack.c.h.b16 %v456
    %v1215 = vunpack.c.l.b16 %v457
    %v1216 = vunpack.c.h.b16 %v457
    %v1217 = vunpack.c.l.b16 %v458
    %v1218 = vunpack.c.h.b16 %v458
    %v1219 = vunpack.c.l.b16 %v459
    %v1220 = vunpack.c.h.b16 %v459
    %v1221 = vunpack.c.l.b16 %v460
    %v1222 = vunpack.c.h.b16 %v460
    %v1223 = vunpack.c.l.b16 %v461
    %v1224 = vunpack.c.h.b16 %v461
    %v1225 = vunpack.c.l.b16 %v462
    %v1226 = vunpack.c.h.b16 %v462
    %v1227 = vunpack.c.l.b16 %v463
    %v1228 = vunpack.c.h.b16 %v463
    %v1229 = vunpack.c.l.b16 %v464
    %v1230 = vunpack.c.h.b16 %v464
    %v1231 = vunpack.c.l.b16 %v465
    %v1232 = vunpack.c.h.b16 %v465
    %v1233 = vunpack.c.l.b16 %v466
    %v1234 = vunpack.c.h.b16 %v466
    %v1235 = vunpack.c.l.b16 %v467
    %v1236 = vunpack.c.h.b16 %v467
    %v1237 = vunpack.c.l.b16 %v468
    %v1238 = vunpack.c.h.b16 %v468
    %v1239 = vunpack.c.l.b16 %v469
    %v1240 = vunpack.c.h.b16 %v469
    %v1241 = vunpack.c.l.b16 %v470
    %v1242 = vunpack.c.h.b16 %v470
    %v1243 = vunpack.c.l.b16 %v471
    %v1244 = vunpack.c.h.b16 %v471
    %v1245 = vunpack.c.l.b16 %v472
    %v1246 = vunpack.c.h.b16 %v472
    %v1247 = vunpack.c.l.b16 %v473
    %v1248 = vunpack.c.h.b16 %v473
    %v1249 = vunpack.c.l.b16 %v474
    %v1250 = vunpack.c.h.b16 %v474
    %v1251 = vunpack.c.l.b16 %v475
    %v1252 = vunpack.c.h.b16 %v475
    %v1253 = vunpack.c.l.b16 %v476
    %v1254 = vunpack.c.h.b16 %v476
    %v1255 = vunpack.c.l.b16 %v477
    %v1256 = vunpack.c.h.b16 %v477
    %v1257 = vunpack.c.l.b16 %v478
    %v1258 = vunpack.c.h.b16 %v478
    %v1259 = vunpack.c.l.b16 %v479
    %v1260 = vunpack.c.h.b16 %v479
    %v1261 = vunpack.c.l.b16 %v480
    %v1262 = vunpack.c.h.b16 %v480
    %v1263 = vunpack.c.l.b16 %v481
    %v1264 = vunpack.c.h.b16 %v481
    %v1265 = vunpack.c.l.b16 %v482
    %v1266 = vunpack.c.h.b16 %v482
    %v1267 = vunpack.c.l.b16 %v483
    %v1268 = vunpack.c.h.b16 %v483
    %v1269 = vunpack.c.l.b16 %v484
    %v1270 = vunpack.c.h.b16 %v484
    %v1271 = vunpack.c.l.b16 %v485
    %v1272 = vunpack.c.h.b16 %v485
    %v1273 = vunpack.c.l.b16 %v486
    %v1274 = vunpack.c.h.b16 %v486
    %v1275 = vunpack.c.l.b16 %v487
    %v1276 = vunpack.c.h.b16 %v487
    %v1277 = vunpack.c.l.b16 %v488
    %v1278 = vunpack.c.h.b16 %v488
    %v1279 = vpack.c.b16 %v771, %v767
    %v1280 = vpack.c.b16 %v772, %v768
    %v1281 = vpack.c.b16 %v773, %v769
    %v1282 = vpack.c.b16 %v774, %v770
    %v1283 = vpack.c.b16 %v779, %v775
    %v1284 = vpack.c.b16 %v780, %v776
    %v1285 = vpack.c.b16 %v781, %v777
    %v1286 = vpack.c.b16 %v782, %v778
    %v1287 = vpack.c.b16 %v787, %v783
    %v1288 = vpack.c.b16 %v788, %v784
    %v1289 = vpack.c.b16 %v789, %v785
    %v1290 = vpack.c.b16 %v790, %v786
    %v1291 = vpack.c.b16 %v795, %v791
    %v1292 = vpack.c.b16 %v796, %v792
    %v1293 = vpack.c.b16 %v797, %v793
    %v1294 = vpack.c.b16 %v798, %v794
    %v1295 = vpack.c.b16 %v803, %v799
    %v1296 = vpack.c.b16 %v804, %v800
    %v1297 = vpack.c.b16 %v805, %v801
    %v1298 = vpack.c.b16 %v806, %v802
    %v1299 = vpack.c.b16 %v811, %v807
    %v1300 = vpack.c.b16 %v812, %v808
    %v1301 = vpack.c.b16 %v813, %v809
    %v1302 = vpack.c.b16 %v814, %v810
    %v1303 = vpack.c.b16 %v819, %v815
    %v1304 = vpack.c.b16 %v820, %v816
    %v1305 = vpack.c.b16 %v821, %v817
    %v1306 = vpack.c.b16 %v822, %v818
    %v1307 = vpack.c.b16 %v827, %v823
    %v1308 = vpack.c.b16 %v828, %v824
    %v1309 = vpack.c.b16 %v829, %v825
    %v1310 = vpack.c.b16 %v830, %v826
    %v1311 = vpack.c.b16 %v835, %v831
    %v1312 = vpack.c.b16 %v836, %v832
    %v1313 = vpack.c.b16 %v837, %v833
    %v1314 = vpack.c.b16 %v838, %v834
    %v1315 = vpack.c.b16 %v843, %v839
    %v1316 = vpack.c.b16 %v844, %v840
    %v1317 = vpack.c.b16 %v845, %v841
    %v1318 = vpack.c.b16 %v846, %v842
    %v1319 = vpack.c.b16 %v851, %v847
    %v1320 = vpack.c.b16 %v852, %v848
    %v1321 = vpack.c.b16 %v853, %v849
    %v1322 = vpack.c.b16 %v854, %v850
    %v1323 = vpack.c.b16 %v859, %v855
    %v1324 = vpack.c.b16 %v860, %v856
    %v1325 = vpack.c.b16 %v861, %v857
    %v1326 = vpack.c.b16 %v862, %v858
    %v1327 = vpack.c.b16 %v867, %v863
    %v1328 = vpack.c.b16 %v868, %v864
    %v1329 = vpack.c.b16 %v869, %v865
    %v1330 = vpack.c.b16 %v870, %v866
    %v1331 = vpack.c.b16 %v875, %v871
    %v1332 = vpack.c.b16 %v876, %v872
    %v1333 = vpack.c.b16 %v877, %v873
    %v1334 = vpack.c.b16 %v878, %v874
    %v1335 = vpack.c.b16 %v883, %v879
    %v1336 = vpack.c.b16 %v884, %v880
    %v1337 = vpack.c.b16 %v885, %v881
    %v1338 = vpack.c.b16 %v886, %v882
    %v1339 = vpack.c.b16 %v891, %v887
    %v1340 = vpack.c.b16 %v892, %v888
    %v1341 = vpack.c.b16 %v893, %v889
    %v1342 = vpack.c.b16 %v894, %v890
    %v1343 = vpack.c.b16 %v899, %v895
    %v1344 = vpack.c.b16 %v900, %v896
    %v1345 = vpack.c.b16 %v901, %v897
    %v1346 = vpack.c.b16 %v902, %v898
    %v1347 = vpack.c.b16 %v907, %v903
    %v1348 = vpack.c.b16 %v908, %v904
    %v1349 = vpack.c.b16 %v909, %v905
    %v1350 = vpack.c.b16 %v910, %v906
    %v1351 = vpack.c.b16 %v915, %v911
    %v1352 = vpack.c.b16 %v916, %v912
    %v1353 = vpack.c.b16 %v917, %v913
    %v1354 = vpack.c.b16 %v918, %v914
    %v1355 = vpack.c.b16 %v923, %v919
    %v1356 = vpack.c.b16 %v924, %v920
    %v1357 = vpack.c.b16 %v925, %v921
    %v1358 = vpack.c.b16 %v926, %v922
    %v1359 = vpack.c.b16 %v931, %v927
    %v1360 = vpack.c.b16 %v932, %v928
    %v1361 = vpack.c.b16 %v933, %v929
    %v1362 = vpack.c.b16 %v934, %v930
    %v1363 = vpack.c.b16 %v939, %v935
    %v1364 = vpack.c.b16 %v940, %v936
    %v1365 = vpack.c.b16 %v941, %v937
    %v1366 = vpack.c.b16 %v942, %v938
    %v1367 = vpack.c.b16 %v947, %v943
    %v1368 = vpack.c.b16 %v948, %v944
    %v1369 = vpack.c.b16 %v949, %v945
    %v1370 = vpack.c.b16 %v950, %v946
    %v1371 = vpack.c.b16 %v955, %v951
    %v1372 = vpack.c.b16 %v956, %v952
    %v1373 = vpack.c.b16 %v957, %v953
    %v1374 = vpack.c.b16 %v958, %v954
    %v1375 = vpack.c.b16 %v963, %v959
    %v1376 = vpack.c.b16 %v964, %v960
    %v1377 = vpack.c.b16 %v965, %v961
    %v1378 = vpack.c.b16 %v966, %v962
    %v1379 = vpack.c.b16 %v971, %v967
    %v1380 = vpack.c.b16 %v972, %v968
    %v1381 = vpack.c.b16 %v973, %v969
    %v1382 = vpack.c.b16 %v974, %v970
    %v1383 = vpack.c.b16 %v979, %v975
    %v1384 = vpack.c.b16 %v980, %v976
    %v1385 = vpack.c.b16 %v981, %v977
    %v1386 = vpack.c.b16 %v982, %v978
    %v1387 = vpack.c.b16 %v987, %v983
    %v1388 = vpack.c.b16 %v988, %v984
    %v1389 = vpack.c.b16 %v989, %v985
    %v1390 = vpack.c.b16 %v990, %v986
    %v1391 = vpack.c.b16 %v995, %v991
    %v1392 = vpack.c.b16 %v996, %v992
    %v1393 = vpack.c.b16 %v997, %v993
    %v1394 = vpack.c.b16 %v998, %v994
    %v1395 = vpack.c.b16 %v1003, %v999
    %v1396 = vpack.c.b16 %v1004, %v1000
    %v1397 = vpack.c.b16 %v1005, %v1001
    %v1398 = vpack.c.b16 %v1006, %v1002
    %v1399 = vpack.c.b16 %v1011, %v1007
    %v1400 = vpack.c.b16 %v1012, %v1008
    %v1401 = vpack.c.b16 %v1013, %v1009
    %v1402 = vpack.c.b16 %v1014, %v1010
    %v1403 = vpack.c.b16 %v1019, %v1015
    %v1404 = vpack.c.b16 %v1020, %v1016
    %v1405 = vpack.c.b16 %v1021, %v1017
    %v1406 = vpack.c.b16 %v1022, %v1018
    %v1407 = vpack.c.b16 %v1027, %v1023
    %v1408 = vpack.c.b16 %v1028, %v1024
    %v1409 = vpack.c.b16 %v1029, %v1025
    %v1410 = vpack.c.b16 %v1030, %v1026
    %v1411 = vpack.c.b16 %v1035, %v1031
    %v1412 = vpack.c.b16 %v1036, %v1032
    %v1413 = vpack.c.b16 %v1037, %v1033
    %v1414 = vpack.c.b16 %v1038, %v1034
    %v1415 = vpack.c.b16 %v1043, %v1039
    %v1416 = vpack.c.b16 %v1044, %v1040
    %v1417 = vpack.c.b16 %v1045, %v1041
    %v1418 = vpack.c.b16 %v1046, %v1042
    %v1419 = vpack.c.b16 %v1051, %v1047
    %v1420 = vpack.c.b16 %v1052, %v1048
    %v1421 = vpack.c.b16 %v1053, %v1049
    %v1422 = vpack.c.b16 %v1054, %v1050
    %v1423 = vpack.c.b16 %v1059, %v1055
    %v1424 = vpack.c.b16 %v1060, %v1056
    %v1425 = vpack.c.b16 %v1061, %v1057
    %v1426 = vpack.c.b16 %v1062, %v1058
    %v1427 = vpack.c.b16 %v1067, %v1063
    %v1428 = vpack.c.b16 %v1068, %v1064
    %v1429 = vpack.c.b16 %v1069, %v1065
    %v1430 = vpack.c.b16 %v1070, %v1066
    %v1431 = vpack.c.b16 %v1075, %v1071
    %v1432 = vpack.c.b16 %v1076, %v1072
    %v1433 = vpack.c.b16 %v1077, %v1073
    %v1434 = vpack.c.b16 %v1078, %v1074
    %v1435 = vpack.c.b16 %v1083, %v1079
    %v1436 = vpack.c.b16 %v1084, %v1080
    %v1437 = vpack.c.b16 %v1085, %v1081
    %v1438 = vpack.c.b16 %v1086, %v1082
    %v1439 = vpack.c.b16 %v1091, %v1087
    %v1440 = vpack.c.b16 %v1092, %v1088
    %v1441 = vpack.c.b16 %v1093, %v1089
    %v1442 = vpack.c.b16 %v1094, %v1090
    %v1443 = vpack.c.b16 %v1099, %v1095
    %v1444 = vpack.c.b16 %v1100, %v1096
    %v1445 = vpack.c.b16 %v1101, %v1097
    %v1446 = vpack.c.b16 %v1102, %v1098
    %v1447 = vpack.c.b16 %v1107, %v1103
    %v1448 = vpack.c.b16 %v1108, %v1104
    %v1449 = vpack.c.b16 %v1109, %v1105
    %v1450 = vpack.c.b16 %v1110, %v1106
    %v1451 = vpack.c.b16 %v1115, %v1111
    %v1452 = vpack.c.b16 %v1116, %v1112
    %v1453 = vpack.c.b16 %v1117, %v1113
    %v1454 = vpack.c.b16 %v1118, %v1114
    %v1455 = vpack.c.b16 %v1123, %v1119
    %v1456 = vpack.c.b16 %v1124, %v1120
    %v1457 = vpack.c.b16 %v1125, %v1121
    %v1458 = vpack.c.b16 %v1126, %v1122
    %v1459 = vpack.c.b16 %v1131, %v1127
    %v1460 = vpack.c.b16 %v1132, %v1128
    %v1461 = vpack.c.b16 %v1133, %v1129
    %v1462 = vpack.c.b16 %v1134, %v1130
    %v1463 = vpack.c.b16 %v1139, %v1135
    %v1464 = vpack.c.b16 %v1140, %v1136
    %v1465 = vpack.c.b16 %v1141, %v1137
    %v1466 = vpack.c.b16 %v1142, %v1138
    %v1467 = vpack.c.b16 %v1147, %v1143
    %v1468 = vpack.c.b16 %v1148, %v1144
    %v1469 = vpack.c.b16 %v1149, %v1145
    %v1470 = vpack.c.b16 %v1150, %v1146
    %v1471 = vpack.c.b16 %v1155, %v1151
    %v1472 = vpack.c.b16 %v1156, %v1152
    %v1473 = vpack.c.b16 %v1157, %v1153
    %v1474 = vpack.c.b16 %v1158, %v1154
    %v1475 = vpack.c.b16 %v1163, %v1159
    %v1476 = vpack.c.b16 %v1164, %v1160
    %v1477 = vpack.c.b16 %v1165, %v1161
    %v1478 = vpack.c.b16 %v1166, %v1162
    %v1479 = vpack.c.b16 %v1171, %v1167
    %v1480 = vpack.c.b16 %v1172, %v1168
    %v1481 = vpack.c.b16 %v1173, %v1169
    %v1482 = vpack.c.b16 %v1174, %v1170
    %v1483 = vpack.c.b16 %v1179, %v1175
    %v1484 = vpack.c.b16 %v1180, %v1176
    %v1485 = vpack.c.b16 %v1181, %v1177
    %v1486 = vpack.c.b16 %v1182, %v1178
    %v1487 = vpack.c.b16 %v1187, %v1183
    %v1488 = vpack.c.b16 %v1188, %v1184
    %v1489 = vpack.c.b16 %v1189, %v1185
    %v1490 = vpack.c.b16 %v1190, %v1186
    %v1491 = vpack.c.b16 %v1195, %v1191
    %v1492 = vpack.c.b16 %v1196, %v1192
    %v1493 = vpack.c.b16 %v1197, %v1193
    %v1494 = vpack.c.b16 %v1198, %v1194
    %v1495 = vpack.c.b16 %v1203, %v1199
    %v1496 = vpack.c.b16 %v1204, %v1200
    %v1497 = vpack.c.b16 %v1205, %v1201
    %v1498 = vpack.c.b16 %v1206, %v1202
    %v1499 = vpack.c.b16 %v1211, %v1207
    %v1500 = vpack.c.b16 %v1212, %v1208
    %v1501 = vpack.c.b16 %v1213, %v1209
    %v1502 = vpack.c.b16 %v1214, %v1210
    %v1503 = vpack.c.b16 %v1219, %v1215
    %v1504 = vpack.c.b16 %v1220, %v1216
    %v1505 = vpack.c.b16 %v1221, %v1217
    %v1506 = vpack.c.b16 %v1222, %v1218
    %v1507 = vpack.c.b16 %v1227, %v1223
    %v1508 = vpack.c.b16 %v1228, %v1224
    %v1509 = vpack.c.b16 %v1229, %v1225
    %v1510 = vpack.c.b16 %v1230, %v1226
    %v1511 = vpack.c.b16 %v1235, %v1231
    %v1512 = vpack.c.b16 %v1236, %v1232
    %v1513 = vpack.c.b16 %v1237, %v1233
    %v1514 = vpack.c.b16 %v1238, %v1234
    %v1515 = vpack.c.b16 %v1243, %v1239
    %v1516 = vpack.c.b16 %v1244, %v1240
    %v1517 = vpack.c.b16 %v1245, %v1241
    %v1518 = vpack.c.b16 %v1246, %v1242
    %v1519 = vpack.c.b16 %v1251, %v1247
    %v1520 = vpack.c.b16 %v1252, %v1248
    %v1521 = vpack.c.b16 %v1253, %v1249
    %v1522 = vpack.c.b16 %v1254, %v1250
    %v1523 = vpack.c.b16 %v1259, %v1255
    %v1524 = vpack.c.b16 %v1260, %v1256
    %v1525 = vpack.c.b16 %v1261, %v1257
    %v1526 = vpack.c.b16 %v1262, %v1258
    %v1527 = vpack.c.b16 %v1267, %v1263
    %v1528 = vpack.c.b16 %v1268, %v1264
    %v1529 = vpack.c.b16 %v1269, %v1265
    %v1530 = vpack.c.b16 %v1270, %v1266
    %v1531 = vpack.c.b16 %v1275, %v1271
    %v1532 = vpack.c.b16 %v1276, %v1272
    %v1533 = vpack.c.b16 %v1277, %v1273
    %v1534 = vpack.c.b16 %v1278, %v1274
    %1791 = vmatprep.subr.bf16.mxu0 %v1280
    %1792 = vmatpush1.bf16.msra.mxu0 %v1279
    %1793 = vmatprep.subr.bf16.mxu0 %v1284
    %1794 = vmatpush1.bf16.msra.mxu0 %v1283
    %1795 = vmatprep.subr.bf16.mxu0 %v1288
    %1796 = vmatpush1.bf16.msra.mxu0 %v1287
    %1797 = vmatprep.subr.bf16.mxu0 %v1292
    %1798 = vmatpush1.bf16.msra.mxu0 %v1291
    %1799 = vmatprep.subr.bf16.mxu0 %v1296
    %1800 = vmatpush1.bf16.msra.mxu0 %v1295
    %1801 = vmatprep.subr.bf16.mxu0 %v1300
    %1802 = vmatpush1.bf16.msra.mxu0 %v1299
    %1803 = vmatprep.subr.bf16.mxu0 %v1304
    %1804 = vmatpush1.bf16.msra.mxu0 %v1303
    %1805 = vmatprep.subr.bf16.mxu0 %v1308
    %1806 = vmatpush1.bf16.msra.mxu0 %v1307
    %1807 = vmatprep.subr.bf16.mxu0 %v1312
    %1808 = vmatpush1.bf16.msra.mxu0 %v1311
    %1809 = vmatprep.subr.bf16.mxu0 %v1316
    %1810 = vmatpush1.bf16.msra.mxu0 %v1315
    %1811 = vmatprep.subr.bf16.mxu0 %v1320
    %1812 = vmatpush1.bf16.msra.mxu0 %v1319
    %1813 = vmatprep.subr.bf16.mxu0 %v1324
    %1814 = vmatpush1.bf16.msra.mxu0 %v1323
    %1815 = vmatprep.subr.bf16.mxu0 %v1328
    %1816 = vmatpush1.bf16.msra.mxu0 %v1327
    %1817 = vmatprep.subr.bf16.mxu0 %v1332
    %1818 = vmatpush1.bf16.msra.mxu0 %v1331
    %1819 = vmatprep.subr.bf16.mxu0 %v1336
    %1820 = vmatpush1.bf16.msra.mxu0 %v1335
    %1821 = vmatprep.subr.bf16.mxu0 %v1340
    %1822 = vmatpush1.bf16.msra.mxu0 %v1339
    %1823 = vmatprep.mubr.bf16.mxu0 %v170
    %1824 = vmatmul.mubr.bf16.gmra.mrb[0].mxu0 %v169
    %v1825 = vpop.f32.mrb[0].mxu0
    %v1826 = vadd.f32 %v494, %v1825
    %v1827 = vpop.f32.mrb[0].mxu0
    %v1828 = vadd.f32 %v498, %v1827
    %v1829 = vpop.f32.mrb[0].mxu0
    %v1830 = vadd.f32 %v494, %v1829
    %v1831 = vpop.f32.mrb[0].mxu0
    %v1832 = vadd.f32 %v498, %v1831
    %1833 = vmatprep.mubr.bf16.mxu0 %v178
    %1834 = vmatmul.mubr.bf16.gmra.mrb[0].mxu0 %v177
    %v1835 = vpop.f32.mrb[0].mxu0
    %v1836 = vadd.f32 %v494, %v1835
    %v1837 = vpop.f32.mrb[0].mxu0
    %v1838 = vadd.f32 %v498, %v1837
    %v1839 = vpop.f32.mrb[0].mxu0
    %v1840 = vadd.f32 %v494, %v1839
    %v1841 = vpop.f32.mrb[0].mxu0
    %v1842 = vadd.f32 %v498, %v1841
    %1843 = vmatprep.mubr.bf16.mxu0 %v186
    %1844 = vmatmul.mubr.bf16.gmra.mrb[0].mxu0 %v185
    %v1845 = vpop.f32.mrb[0].mxu0
    %v1846 = vadd.f32 %v494, %v1845
    %v1847 = vpop.f32.mrb[0].mxu0
    %v1848 = vadd.f32 %v498, %v1847
    %v1849 = vpop.f32.mrb[0].mxu0
    %v1850 = vadd.f32 %v494, %v1849
    %v1851 = vpop.f32.mrb[0].mxu0
    %v1852 = vadd.f32 %v498, %v1851
    %1853 = vmatprep.mubr.bf16.mxu0 %v194
    %1854 = vmatmul.mubr.bf16.gmra.mrb[0].mxu0 %v193
    %v1855 = vpop.f32.mrb[0].mxu0
    %v1856 = vadd.f32 %v494, %v1855
    %v1857 = vpop.f32.mrb[0].mxu0
    %v1858 = vadd.f32 %v498, %v1857
    %v1859 = vpop.f32.mrb[0].mxu0
    %v1860 = vadd.f32 %v494, %v1859
    %v1861 = vpop.f32.mrb[0].mxu0
    %v1862 = vadd.f32 %v498, %v1861
    %1863 = vmatprep.mubr.bf16.mxu0 %v202
    %1864 = vmatmul.mubr.bf16.gmra.mrb[0].mxu0 %v201
    %v1865 = vpop.f32.mrb[0].mxu0
    %v1866 = vadd.f32 %v494, %v1865
    %v1867 = vpop.f32.mrb[0].mxu0
    %v1868 = vadd.f32 %v498, %v1867
    %v1869 = vpop.f32.mrb[0].mxu0
    %v1870 = vadd.f32 %v494, %v1869
    %v1871 = vpop.f32.mrb[0].mxu0
    %v1872 = vadd.f32 %v498, %v1871
    %1873 = vmatprep.mubr.bf16.mxu0 %v210
    %1874 = vmatmul.mubr.bf16.gmra.mrb[0].mxu0 %v209
    %v1875 = vpop.f32.mrb[0].mxu0
    %v1876 = vadd.f32 %v494, %v1875
    %v1877 = vpop.f32.mrb[0].mxu0
    %v1878 = vadd.f32 %v498, %v1877
    %v1879 = vpop.f32.mrb[0].mxu0
    %v1880 = vadd.f32 %v494, %v1879
    %v1881 = vpop.f32.mrb[0].mxu0
    %v1882 = vadd.f32 %v498, %v1881
    %1883 = vmatprep.mubr.bf16.mxu0 %v218
    %1884 = vmatmul.mubr.bf16.gmra.mrb[0].mxu0 %v217
    %v1885 = vpop.f32.mrb[0].mxu0
    %v1886 = vadd.f32 %v494, %v1885
    %v1887 = vpop.f32.mrb[0].mxu0
    %v1888 = vadd.f32 %v498, %v1887
    %v1889 = vpop.f32.mrb[0].mxu0
    %v1890 = vadd.f32 %v494, %v1889
    %v1891 = vpop.f32.mrb[0].mxu0
    %v1892 = vadd.f32 %v498, %v1891
    %1893 = vmatprep.mubr.bf16.mxu0 %v226
    %1894 = vmatmul.mubr.bf16.gmra.mrb[0].mxu0 %v225
    %v1895 = vpop.f32.mrb[0].mxu0
    %v1896 = vadd.f32 %v494, %v1895
    %v1897 = vpop.f32.mrb[0].mxu0
    %v1898 = vadd.f32 %v498, %v1897
    %v1899 = vpop.f32.mrb[0].mxu0
    %v1900 = vadd.f32 %v494, %v1899
    %v1901 = vpop.f32.mrb[0].mxu0
    %v1902 = vadd.f32 %v498, %v1901
    %1903 = vdwg.mxu0
    %1904 = vmatprep.subr.bf16.mxu0 %v1344
    %1905 = vmatpush1.bf16.msra.mxu0 %v1343
    %1906 = vmatprep.subr.bf16.mxu0 %v1348
    %1907 = vmatpush1.bf16.msra.mxu0 %v1347
    %1908 = vmatprep.subr.bf16.mxu0 %v1352
    %1909 = vmatpush1.bf16.msra.mxu0 %v1351
    %1910 = vmatprep.subr.bf16.mxu0 %v1356
    %1911 = vmatpush1.bf16.msra.mxu0 %v1355
    %1912 = vmatprep.subr.bf16.mxu0 %v1360
    %1913 = vmatpush1.bf16.msra.mxu0 %v1359
    %1914 = vmatprep.subr.bf16.mxu0 %v1364
    %1915 = vmatpush1.bf16.msra.mxu0 %v1363
    %1916 = vmatprep.subr.bf16.mxu0 %v1368
    %1917 = vmatpush1.bf16.msra.mxu0 %v1367
    %1918 = vmatprep.subr.bf16.mxu0 %v1372
    %1919 = vmatpush1.bf16.msra.mxu0 %v1371
    %1920 = vmatprep.subr.bf16.mxu0 %v1376
    %1921 = vmatpush1.bf16.msra.mxu0 %v1375
    %1922 = vmatprep.subr.bf16.mxu0 %v1380
    %1923 = vmatpush1.bf16.msra.mxu0 %v1379
    %1924 = vmatprep.subr.bf16.mxu0 %v1384
    %1925 = vmatpush1.bf16.msra.mxu0 %v1383
    %1926 = vmatprep.subr.bf16.mxu0 %v1388
    %1927 = vmatpush1.bf16.msra.mxu0 %v1387
    %1928 = vmatprep.subr.bf16.mxu0 %v1392
    %1929 = vmatpush1.bf16.msra.mxu0 %v1391
    %1930 = vmatprep.subr.bf16.mxu0 %v1396
    %1931 = vmatpush1.bf16.msra.mxu0 %v1395
    %1932 = vmatprep.subr.bf16.mxu0 %v1400
    %1933 = vmatpush1.bf16.msra.mxu0 %v1399
    %1934 = vmatprep.subr.bf16.mxu0 %v1404
    %1935 = vmatpush1.bf16.msra.mxu0 %v1403
    %1936 = vmatprep.mubr.bf16.mxu0 %v172
    %1937 = vmatmul.mubr.bf16.gmra.mrb[0].mxu0 %v171
    %v1938 = vpop.f32.mrb[0].mxu0
    %v1939 = vadd.f32 %v1826, %v1938
    %v1940 = vpop.f32.mrb[0].mxu0
    %v1941 = vadd.f32 %v1828, %v1940
    %v1942 = vpop.f32.mrb[0].mxu0
    %v1943 = vadd.f32 %v1830, %v1942
    %v1944 = vpop.f32.mrb[0].mxu0
    %v1945 = vadd.f32 %v1832, %v1944
    %1946 = vmatprep.mubr.bf16.mxu0 %v180
    %1947 = vmatmul.mubr.bf16.gmra.mrb[0].mxu0 %v179
    %v1948 = vpop.f32.mrb[0].mxu0
    %v1949 = vadd.f32 %v1836, %v1948
    %v1950 = vpop.f32.mrb[0].mxu0
    %v1951 = vadd.f32 %v1838, %v1950
    %v1952 = vpop.f32.mrb[0].mxu0
    %v1953 = vadd.f32 %v1840, %v1952
    %v1954 = vpop.f32.mrb[0].mxu0
    %v1955 = vadd.f32 %v1842, %v1954
    %1956 = vmatprep.mubr.bf16.mxu0 %v188
    %1957 = vmatmul.mubr.bf16.gmra.mrb[0].mxu0 %v187
    %v1958 = vpop.f32.mrb[0].mxu0
    %v1959 = vadd.f32 %v1846, %v1958
    %v1960 = vpop.f32.mrb[0].mxu0
    %v1961 = vadd.f32 %v1848, %v1960
    %v1962 = vpop.f32.mrb[0].mxu0
    %v1963 = vadd.f32 %v1850, %v1962
    %v1964 = vpop.f32.mrb[0].mxu0
    %v1965 = vadd.f32 %v1852, %v1964
    %1966 = vmatprep.mubr.bf16.mxu0 %v196
    %1967 = vmatmul.mubr.bf16.gmra.mrb[0].mxu0 %v195
    %v1968 = vpop.f32.mrb[0].mxu0
    %v1969 = vadd.f32 %v1856, %v1968
    %v1970 = vpop.f32.mrb[0].mxu0
    %v1971 = vadd.f32 %v1858, %v1970
    %v1972 = vpop.f32.mrb[0].mxu0
    %v1973 = vadd.f32 %v1860, %v1972
    %v1974 = vpop.f32.mrb[0].mxu0
    %v1975 = vadd.f32 %v1862, %v1974
    %1976 = vmatprep.mubr.bf16.mxu0 %v204
    %1977 = vmatmul.mubr.bf16.gmra.mrb[0].mxu0 %v203
    %v1978 = vpop.f32.mrb[0].mxu0
    %v1979 = vadd.f32 %v1866, %v1978
    %v1980 = vpop.f32.mrb[0].mxu0
    %v1981 = vadd.f32 %v1868, %v1980
    %v1982 = vpop.f32.mrb[0].mxu0
    %v1983 = vadd.f32 %v1870, %v1982
    %v1984 = vpop.f32.mrb[0].mxu0
    %v1985 = vadd.f32 %v1872, %v1984
    %1986 = vmatprep.mubr.bf16.mxu0 %v212
    %1987 = vmatmul.mubr.bf16.gmra.mrb[0].mxu0 %v211
    %v1988 = vpop.f32.mrb[0].mxu0
    %v1989 = vadd.f32 %v1876, %v1988
    %v1990 = vpop.f32.mrb[0].mxu0
    %v1991 = vadd.f32 %v1878, %v1990
    %v1992 = vpop.f32.mrb[0].mxu0
    %v1993 = vadd.f32 %v1880, %v1992
    %v1994 = vpop.f32.mrb[0].mxu0
    %v1995 = vadd.f32 %v1882, %v1994
    %1996 = vmatprep.mubr.bf16.mxu0 %v220
    %1997 = vmatmul.mubr.bf16.gmra.mrb[0].mxu0 %v219
    %v1998 = vpop.f32.mrb[0].mxu0
    %v1999 = vadd.f32 %v1886, %v1998
    %v2000 = vpop.f32.mrb[0].mxu0
    %v2001 = vadd.f32 %v1888, %v2000
    %v2002 = vpop.f32.mrb[0].mxu0
    %v2003 = vadd.f32 %v1890, %v2002
    %v2004 = vpop.f32.mrb[0].mxu0
    %v2005 = vadd.f32 %v1892, %v2004
    %2006 = vmatprep.mubr.bf16.mxu0 %v228
    %2007 = vmatmul.mubr.bf16.gmra.mrb[0].mxu0 %v227
    %v2008 = vpop.f32.mrb[0].mxu0
    %v2009 = vadd.f32 %v1896, %v2008
    %v2010 = vpop.f32.mrb[0].mxu0
    %v2011 = vadd.f32 %v1898, %v2010
    %v2012 = vpop.f32.mrb[0].mxu0
    %v2013 = vadd.f32 %v1900, %v2012
    %v2014 = vpop.f32.mrb[0].mxu0
    %v2015 = vadd.f32 %v1902, %v2014
    %2016 = vdwg.mxu0
    %2017 = vmatprep.subr.bf16.mxu0 %v1408
    %2018 = vmatpush1.bf16.msra.mxu0 %v1407
    %2019 = vmatprep.subr.bf16.mxu0 %v1412
    %2020 = vmatpush1.bf16.msra.mxu0 %v1411
    %2021 = vmatprep.subr.bf16.mxu0 %v1416
    %2022 = vmatpush1.bf16.msra.mxu0 %v1415
    %2023 = vmatprep.subr.bf16.mxu0 %v1420
    %2024 = vmatpush1.bf16.msra.mxu0 %v1419
    %2025 = vmatprep.subr.bf16.mxu0 %v1424
    %2026 = vmatpush1.bf16.msra.mxu0 %v1423
    %2027 = vmatprep.subr.bf16.mxu0 %v1428
    %2028 = vmatpush1.bf16.msra.mxu0 %v1427
    %2029 = vmatprep.subr.bf16.mxu0 %v1432
    %2030 = vmatpush1.bf16.msra.mxu0 %v1431
    %2031 = vmatprep.subr.bf16.mxu0 %v1436
    %2032 = vmatpush1.bf16.msra.mxu0 %v1435
    %2033 = vmatprep.subr.bf16.mxu0 %v1440
    %2034 = vmatpush1.bf16.msra.mxu0 %v1439
    %2035 = vmatprep.subr.bf16.mxu0 %v1444
    %2036 = vmatpush1.bf16.msra.mxu0 %v1443
    %2037 = vmatprep.subr.bf16.mxu0 %v1448
    %2038 = vmatpush1.bf16.msra.mxu0 %v1447
    %2039 = vmatprep.subr.bf16.mxu0 %v1452
    %2040 = vmatpush1.bf16.msra.mxu0 %v1451
    %2041 = vmatprep.subr.bf16.mxu0 %v1456
    %2042 = vmatpush1.bf16.msra.mxu0 %v1455
    %2043 = vmatprep.subr.bf16.mxu0 %v1460
    %2044 = vmatpush1.bf16.msra.mxu0 %v1459
    %2045 = vmatprep.subr.bf16.mxu0 %v1464
    %2046 = vmatpush1.bf16.msra.mxu0 %v1463
    %2047 = vmatprep.subr.bf16.mxu0 %v1468
    %2048 = vmatpush1.bf16.msra.mxu0 %v1467
    %2049 = vmatprep.mubr.bf16.mxu0 %v174
    %2050 = vmatmul.mubr.bf16.gmra.mrb[0].mxu0 %v173
    %v2051 = vpop.f32.mrb[0].mxu0
    %v2052 = vadd.f32 %v1939, %v2051
    %v2053 = vpop.f32.mrb[0].mxu0
    %v2054 = vadd.f32 %v1941, %v2053
    %v2055 = vpop.f32.mrb[0].mxu0
    %v2056 = vadd.f32 %v1943, %v2055
    %v2057 = vpop.f32.mrb[0].mxu0
    %v2058 = vadd.f32 %v1945, %v2057
    %2059 = vmatprep.mubr.bf16.mxu0 %v182
    %2060 = vmatmul.mubr.bf16.gmra.mrb[0].mxu0 %v181
    %v2061 = vpop.f32.mrb[0].mxu0
    %v2062 = vadd.f32 %v1949, %v2061
    %v2063 = vpop.f32.mrb[0].mxu0
    %v2064 = vadd.f32 %v1951, %v2063
    %v2065 = vpop.f32.mrb[0].mxu0
    %v2066 = vadd.f32 %v1953, %v2065
    %v2067 = vpop.f32.mrb[0].mxu0
    %v2068 = vadd.f32 %v1955, %v2067
    %2069 = vmatprep.mubr.bf16.mxu0 %v190
    %2070 = vmatmul.mubr.bf16.gmra.mrb[0].mxu0 %v189
    %v2071 = vpop.f32.mrb[0].mxu0
    %v2072 = vadd.f32 %v1959, %v2071
    %v2073 = vpop.f32.mrb[0].mxu0
    %v2074 = vadd.f32 %v1961, %v2073
    %v2075 = vpop.f32.mrb[0].mxu0
    %v2076 = vadd.f32 %v1963, %v2075
    %v2077 = vpop.f32.mrb[0].mxu0
    %v2078 = vadd.f32 %v1965, %v2077
    %2079 = vmatprep.mubr.bf16.mxu0 %v198
    %2080 = vmatmul.mubr.bf16.gmra.mrb[0].mxu0 %v197
    %v2081 = vpop.f32.mrb[0].mxu0
    %v2082 = vadd.f32 %v1969, %v2081
    %v2083 = vpop.f32.mrb[0].mxu0
    %v2084 = vadd.f32 %v1971, %v2083
    %v2085 = vpop.f32.mrb[0].mxu0
    %v2086 = vadd.f32 %v1973, %v2085
    %v2087 = vpop.f32.mrb[0].mxu0
    %v2088 = vadd.f32 %v1975, %v2087
    %2089 = vmatprep.mubr.bf16.mxu0 %v206
    %2090 = vmatmul.mubr.bf16.gmra.mrb[0].mxu0 %v205
    %v2091 = vpop.f32.mrb[0].mxu0
    %v2092 = vadd.f32 %v1979, %v2091
    %v2093 = vpop.f32.mrb[0].mxu0
    %v2094 = vadd.f32 %v1981, %v2093
    %v2095 = vpop.f32.mrb[0].mxu0
    %v2096 = vadd.f32 %v1983, %v2095
    %v2097 = vpop.f32.mrb[0].mxu0
    %v2098 = vadd.f32 %v1985, %v2097
    %2099 = vmatprep.mubr.bf16.mxu0 %v214
    %2100 = vmatmul.mubr.bf16.gmra.mrb[0].mxu0 %v213
    %v2101 = vpop.f32.mrb[0].mxu0
    %v2102 = vadd.f32 %v1989, %v2101
    %v2103 = vpop.f32.mrb[0].mxu0
    %v2104 = vadd.f32 %v1991, %v2103
    %v2105 = vpop.f32.mrb[0].mxu0
    %v2106 = vadd.f32 %v1993, %v2105
    %v2107 = vpop.f32.mrb[0].mxu0
    %v2108 = vadd.f32 %v1995, %v2107
    %2109 = vmatprep.mubr.bf16.mxu0 %v222
    %2110 = vmatmul.mubr.bf16.gmra.mrb[0].mxu0 %v221
    %v2111 = vpop.f32.mrb[0].mxu0
    %v2112 = vadd.f32 %v1999, %v2111
    %v2113 = vpop.f32.mrb[0].mxu0
    %v2114 = vadd.f32 %v2001, %v2113
    %v2115 = vpop.f32.mrb[0].mxu0
    %v2116 = vadd.f32 %v2003, %v2115
    %v2117 = vpop.f32.mrb[0].mxu0
    %v2118 = vadd.f32 %v2005, %v2117
    %2119 = vmatprep.mubr.bf16.mxu0 %v230
    %2120 = vmatmul.mubr.bf16.gmra.mrb[0].mxu0 %v229
    %v2121 = vpop.f32.mrb[0].mxu0
    %v2122 = vadd.f32 %v2009, %v2121
    %v2123 = vpop.f32.mrb[0].mxu0
    %v2124 = vadd.f32 %v2011, %v2123
    %v2125 = vpop.f32.mrb[0].mxu0
    %v2126 = vadd.f32 %v2013, %v2125
    %v2127 = vpop.f32.mrb[0].mxu0
    %v2128 = vadd.f32 %v2015, %v2127
    %2129 = vdwg.mxu0
    %2130 = vmatprep.subr.bf16.mxu0 %v1472
    %2131 = vmatpush1.bf16.msra.mxu0 %v1471
    %2132 = vmatprep.subr.bf16.mxu0 %v1476
    %2133 = vmatpush1.bf16.msra.mxu0 %v1475
    %2134 = vmatprep.subr.bf16.mxu0 %v1480
    %2135 = vmatpush1.bf16.msra.mxu0 %v1479
    %2136 = vmatprep.subr.bf16.mxu0 %v1484
    %2137 = vmatpush1.bf16.msra.mxu0 %v1483
    %2138 = vmatprep.subr.bf16.mxu0 %v1488
    %2139 = vmatpush1.bf16.msra.mxu0 %v1487
    %2140 = vmatprep.subr.bf16.mxu0 %v1492
    %2141 = vmatpush1.bf16.msra.mxu0 %v1491
    %2142 = vmatprep.subr.bf16.mxu0 %v1496
    %2143 = vmatpush1.bf16.msra.mxu0 %v1495
    %2144 = vmatprep.subr.bf16.mxu0 %v1500
    %2145 = vmatpush1.bf16.msra.mxu0 %v1499
    %2146 = vmatprep.subr.bf16.mxu0 %v1504
    %2147 = vmatpush1.bf16.msra.mxu0 %v1503
    %2148 = vmatprep.subr.bf16.mxu0 %v1508
    %2149 = vmatpush1.bf16.msra.mxu0 %v1507
    %2150 = vmatprep.subr.bf16.mxu0 %v1512
    %2151 = vmatpush1.bf16.msra.mxu0 %v1511
    %2152 = vmatprep.subr.bf16.mxu0 %v1516
    %2153 = vmatpush1.bf16.msra.mxu0 %v1515
    %2154 = vmatprep.subr.bf16.mxu0 %v1520
    %2155 = vmatpush1.bf16.msra.mxu0 %v1519
    %2156 = vmatprep.subr.bf16.mxu0 %v1524
    %2157 = vmatpush1.bf16.msra.mxu0 %v1523
    %2158 = vmatprep.subr.bf16.mxu0 %v1528
    %2159 = vmatpush1.bf16.msra.mxu0 %v1527
    %2160 = vmatprep.subr.bf16.mxu0 %v1532
    %2161 = vmatpush1.bf16.msra.mxu0 %v1531
    %2162 = vmatprep.mubr.bf16.mxu0 %v176
    %2163 = vmatmul.mubr.bf16.gmra.mrb[0].mxu0 %v175
    %v2164 = vpop.f32.mrb[0].mxu0
    %v2165 = vadd.f32 %v2052, %v2164
    %v2166 = vpop.f32.mrb[0].mxu0
    %v2167 = vadd.f32 %v2054, %v2166
    %v2168 = vpop.f32.mrb[0].mxu0
    %v2169 = vadd.f32 %v2056, %v2168
    %v2170 = vpop.f32.mrb[0].mxu0
    %v2171 = vadd.f32 %v2058, %v2170
    %2172 = vmatprep.mubr.bf16.mxu0 %v184
    %2173 = vmatmul.mubr.bf16.gmra.mrb[0].mxu0 %v183
    %v2174 = vpop.f32.mrb[0].mxu0
    %v2175 = vadd.f32 %v2062, %v2174
    %v2176 = vpop.f32.mrb[0].mxu0
    %v2177 = vadd.f32 %v2064, %v2176
    %v2178 = vpop.f32.mrb[0].mxu0
    %v2179 = vadd.f32 %v2066, %v2178
    %v2180 = vpop.f32.mrb[0].mxu0
    %v2181 = vadd.f32 %v2068, %v2180
    %2182 = vmatprep.mubr.bf16.mxu0 %v192
    %2183 = vmatmul.mubr.bf16.gmra.mrb[0].mxu0 %v191
    %v2184 = vpop.f32.mrb[0].mxu0
    %v2185 = vadd.f32 %v2072, %v2184
    %v2186 = vpop.f32.mrb[0].mxu0
    %v2187 = vadd.f32 %v2074, %v2186
    %v2188 = vpop.f32.mrb[0].mxu0
    %v2189 = vadd.f32 %v2076, %v2188
    %v2190 = vpop.f32.mrb[0].mxu0
    %v2191 = vadd.f32 %v2078, %v2190
    %2192 = vmatprep.mubr.bf16.mxu0 %v200
    %2193 = vmatmul.mubr.bf16.gmra.mrb[0].mxu0 %v199
    %v2194 = vpop.f32.mrb[0].mxu0
    %v2195 = vadd.f32 %v2082, %v2194
    %v2196 = vpop.f32.mrb[0].mxu0
    %v2197 = vadd.f32 %v2084, %v2196
    %v2198 = vpop.f32.mrb[0].mxu0
    %v2199 = vadd.f32 %v2086, %v2198
    %v2200 = vpop.f32.mrb[0].mxu0
    %v2201 = vadd.f32 %v2088, %v2200
    %2202 = vmatprep.mubr.bf16.mxu0 %v208
    %2203 = vmatmul.mubr.bf16.gmra.mrb[0].mxu0 %v207
    %v2204 = vpop.f32.mrb[0].mxu0
    %v2205 = vadd.f32 %v2092, %v2204
    %v2206 = vpop.f32.mrb[0].mxu0
    %v2207 = vadd.f32 %v2094, %v2206
    %v2208 = vpop.f32.mrb[0].mxu0
    %v2209 = vadd.f32 %v2096, %v2208
    %v2210 = vpop.f32.mrb[0].mxu0
    %v2211 = vadd.f32 %v2098, %v2210
    %2212 = vmatprep.mubr.bf16.mxu0 %v216
    %2213 = vmatmul.mubr.bf16.gmra.mrb[0].mxu0 %v215
    %v2214 = vpop.f32.mrb[0].mxu0
    %v2215 = vadd.f32 %v2102, %v2214
    %v2216 = vpop.f32.mrb[0].mxu0
    %v2217 = vadd.f32 %v2104, %v2216
    %v2218 = vpop.f32.mrb[0].mxu0
    %v2219 = vadd.f32 %v2106, %v2218
    %v2220 = vpop.f32.mrb[0].mxu0
    %v2221 = vadd.f32 %v2108, %v2220
    %2222 = vmatprep.mubr.bf16.mxu0 %v224
    %2223 = vmatmul.mubr.bf16.gmra.mrb[0].mxu0 %v223
    %v2224 = vpop.f32.mrb[0].mxu0
    %v2225 = vadd.f32 %v2112, %v2224
    %v2226 = vpop.f32.mrb[0].mxu0
    %v2227 = vadd.f32 %v2114, %v2226
    %v2228 = vpop.f32.mrb[0].mxu0
    %v2229 = vadd.f32 %v2116, %v2228
    %v2230 = vpop.f32.mrb[0].mxu0
    %v2231 = vadd.f32 %v2118, %v2230
    %2232 = vmatprep.mubr.bf16.mxu0 %v232
    %2233 = vmatmul.mubr.bf16.gmra.mrb[0].mxu0 %v231
    %v2234 = vpop.f32.mrb[0].mxu0
    %v2235 = vadd.f32 %v2122, %v2234
    %v2236 = vpop.f32.mrb[0].mxu0
    %v2237 = vadd.f32 %v2124, %v2236
    %v2238 = vpop.f32.mrb[0].mxu0
    %v2239 = vadd.f32 %v2126, %v2238
    %v2240 = vpop.f32.mrb[0].mxu0
    %v2241 = vadd.f32 %v2128, %v2240
    %2242 = vdwg.mxu0
    %2243 = vmatprep.subr.bf16.mxu0 %v1282
    %2244 = vmatpush1.bf16.msra.mxu0 %v1281
    %2245 = vmatprep.subr.bf16.mxu0 %v1286
    %2246 = vmatpush1.bf16.msra.mxu0 %v1285
    %2247 = vmatprep.subr.bf16.mxu0 %v1290
    %2248 = vmatpush1.bf16.msra.mxu0 %v1289
    %2249 = vmatprep.subr.bf16.mxu0 %v1294
    %2250 = vmatpush1.bf16.msra.mxu0 %v1293
    %2251 = vmatprep.subr.bf16.mxu0 %v1298
    %2252 = vmatpush1.bf16.msra.mxu0 %v1297
    %2253 = vmatprep.subr.bf16.mxu0 %v1302
    %2254 = vmatpush1.bf16.msra.mxu0 %v1301
    %2255 = vmatprep.subr.bf16.mxu0 %v1306
    %2256 = vmatpush1.bf16.msra.mxu0 %v1305
    %2257 = vmatprep.subr.bf16.mxu0 %v1310
    %2258 = vmatpush1.bf16.msra.mxu0 %v1309
    %2259 = vmatprep.subr.bf16.mxu0 %v1314
    %2260 = vmatpush1.bf16.msra.mxu0 %v1313
    %2261 = vmatprep.subr.bf16.mxu0 %v1318
    %2262 = vmatpush1.bf16.msra.mxu0 %v1317
    %2263 = vmatprep.subr.bf16.mxu0 %v1322
    %2264 = vmatpush1.bf16.msra.mxu0 %v1321
    %2265 = vmatprep.subr.bf16.mxu0 %v1326
    %2266 = vmatpush1.bf16.msra.mxu0 %v1325
    %2267 = vmatprep.subr.bf16.mxu0 %v1330
    %2268 = vmatpush1.bf16.msra.mxu0 %v1329
    %2269 = vmatprep.subr.bf16.mxu0 %v1334
    %2270 = vmatpush1.bf16.msra.mxu0 %v1333
    %2271 = vmatprep.subr.bf16.mxu0 %v1338
    %2272 = vmatpush1.bf16.msra.mxu0 %v1337
    %2273 = vmatprep.subr.bf16.mxu0 %v1342
    %2274 = vmatpush1.bf16.msra.mxu0 %v1341
    %2275 = vmatprep.mubr.bf16.mxu0 %v170
    %2276 = vmatmul.mubr.bf16.gmra.mrb[0].mxu0 %v169
    %v2277 = vpop.f32.mrb[0].mxu0
    %v2278 = vadd.f32 %v502, %v2277
    %v2279 = vpop.f32.mrb[0].mxu0
    %v2280 = vadd.f32 %v506, %v2279
    %v2281 = vpop.f32.mrb[0].mxu0
    %v2282 = vadd.f32 %v502, %v2281
    %v2283 = vpop.f32.mrb[0].mxu0
    %v2284 = vadd.f32 %v506, %v2283
    %2285 = vmatprep.mubr.bf16.mxu0 %v178
    %2286 = vmatmul.mubr.bf16.gmra.mrb[0].mxu0 %v177
    %v2287 = vpop.f32.mrb[0].mxu0
    %v2288 = vadd.f32 %v502, %v2287
    %v2289 = vpop.f32.mrb[0].mxu0
    %v2290 = vadd.f32 %v506, %v2289
    %v2291 = vpop.f32.mrb[0].mxu0
    %v2292 = vadd.f32 %v502, %v2291
    %v2293 = vpop.f32.mrb[0].mxu0
    %v2294 = vadd.f32 %v506, %v2293
    %2295 = vmatprep.mubr.bf16.mxu0 %v186
    %2296 = vmatmul.mubr.bf16.gmra.mrb[0].mxu0 %v185
    %v2297 = vpop.f32.mrb[0].mxu0
    %v2298 = vadd.f32 %v502, %v2297
    %v2299 = vpop.f32.mrb[0].mxu0
    %v2300 = vadd.f32 %v506, %v2299
    %v2301 = vpop.f32.mrb[0].mxu0
    %v2302 = vadd.f32 %v502, %v2301
    %v2303 = vpop.f32.mrb[0].mxu0
    %v2304 = vadd.f32 %v506, %v2303
    %2305 = vmatprep.mubr.bf16.mxu0 %v194
    %2306 = vmatmul.mubr.bf16.gmra.mrb[0].mxu0 %v193
    %v2307 = vpop.f32.mrb[0].mxu0
    %v2308 = vadd.f32 %v502, %v2307
    %v2309 = vpop.f32.mrb[0].mxu0
    %v2310 = vadd.f32 %v506, %v2309
    %v2311 = vpop.f32.mrb[0].mxu0
    %v2312 = vadd.f32 %v502, %v2311
    %v2313 = vpop.f32.mrb[0].mxu0
    %v2314 = vadd.f32 %v506, %v2313
    %2315 = vmatprep.mubr.bf16.mxu0 %v202
    %2316 = vmatmul.mubr.bf16.gmra.mrb[0].mxu0 %v201
    %v2317 = vpop.f32.mrb[0].mxu0
    %v2318 = vadd.f32 %v502, %v2317
    %v2319 = vpop.f32.mrb[0].mxu0
    %v2320 = vadd.f32 %v506, %v2319
    %v2321 = vpop.f32.mrb[0].mxu0
    %v2322 = vadd.f32 %v502, %v2321
    %v2323 = vpop.f32.mrb[0].mxu0
    %v2324 = vadd.f32 %v506, %v2323
    %2325 = vmatprep.mubr.bf16.mxu0 %v210
    %2326 = vmatmul.mubr.bf16.gmra.mrb[0].mxu0 %v209
    %v2327 = vpop.f32.mrb[0].mxu0
    %v2328 = vadd.f32 %v502, %v2327
    %v2329 = vpop.f32.mrb[0].mxu0
    %v2330 = vadd.f32 %v506, %v2329
    %v2331 = vpop.f32.mrb[0].mxu0
    %v2332 = vadd.f32 %v502, %v2331
    %v2333 = vpop.f32.mrb[0].mxu0
    %v2334 = vadd.f32 %v506, %v2333
    %2335 = vmatprep.mubr.bf16.mxu0 %v218
    %2336 = vmatmul.mubr.bf16.gmra.mrb[0].mxu0 %v217
    %v2337 = vpop.f32.mrb[0].mxu0
    %v2338 = vadd.f32 %v502, %v2337
    %v2339 = vpop.f32.mrb[0].mxu0
    %v2340 = vadd.f32 %v506, %v2339
    %v2341 = vpop.f32.mrb[0].mxu0
    %v2342 = vadd.f32 %v502, %v2341
    %v2343 = vpop.f32.mrb[0].mxu0
    %v2344 = vadd.f32 %v506, %v2343
    %2345 = vmatprep.mubr.bf16.mxu0 %v226
    %2346 = vmatmul.mubr.bf16.gmra.mrb[0].mxu0 %v225
    %v2347 = vpop.f32.mrb[0].mxu0
    %v2348 = vadd.f32 %v502, %v2347
    %v2349 = vpop.f32.mrb[0].mxu0
    %v2350 = vadd.f32 %v506, %v2349
    %v2351 = vpop.f32.mrb[0].mxu0
    %v2352 = vadd.f32 %v502, %v2351
    %v2353 = vpop.f32.mrb[0].mxu0
    %v2354 = vadd.f32 %v506, %v2353
    %2355 = vdwg.mxu0
    %2356 = vmatprep.subr.bf16.mxu0 %v1346
    %2357 = vmatpush1.bf16.msra.mxu0 %v1345
    %2358 = vmatprep.subr.bf16.mxu0 %v1350
    %2359 = vmatpush1.bf16.msra.mxu0 %v1349
    %2360 = vmatprep.subr.bf16.mxu0 %v1354
    %2361 = vmatpush1.bf16.msra.mxu0 %v1353
    %2362 = vmatprep.subr.bf16.mxu0 %v1358
    %2363 = vmatpush1.bf16.msra.mxu0 %v1357
    %2364 = vmatprep.subr.bf16.mxu0 %v1362
    %2365 = vmatpush1.bf16.msra.mxu0 %v1361
    %2366 = vmatprep.subr.bf16.mxu0 %v1366
    %2367 = vmatpush1.bf16.msra.mxu0 %v1365
    %2368 = vmatprep.subr.bf16.mxu0 %v1370
    %2369 = vmatpush1.bf16.msra.mxu0 %v1369
    %2370 = vmatprep.subr.bf16.mxu0 %v1374
    %2371 = vmatpush1.bf16.msra.mxu0 %v1373
    %2372 = vmatprep.subr.bf16.mxu0 %v1378
    %2373 = vmatpush1.bf16.msra.mxu0 %v1377
    %2374 = vmatprep.subr.bf16.mxu0 %v1382
    %2375 = vmatpush1.bf16.msra.mxu0 %v1381
    %2376 = vmatprep.subr.bf16.mxu0 %v1386
    %2377 = vmatpush1.bf16.msra.mxu0 %v1385
    %2378 = vmatprep.subr.bf16.mxu0 %v1390
    %2379 = vmatpush1.bf16.msra.mxu0 %v1389
    %2380 = vmatprep.subr.bf16.mxu0 %v1394
    %2381 = vmatpush1.bf16.msra.mxu0 %v1393
    %2382 = vmatprep.subr.bf16.mxu0 %v1398
    %2383 = vmatpush1.bf16.msra.mxu0 %v1397
    %2384 = vmatprep.subr.bf16.mxu0 %v1402
    %2385 = vmatpush1.bf16.msra.mxu0 %v1401
    %2386 = vmatprep.subr.bf16.mxu0 %v1406
    %2387 = vmatpush1.bf16.msra.mxu0 %v1405
    %2388 = vmatprep.mubr.bf16.mxu0 %v172
    %2389 = vmatmul.mubr.bf16.gmra.mrb[0].mxu0 %v171
    %v2390 = vpop.f32.mrb[0].mxu0
    %v2391 = vadd.f32 %v2278, %v2390
    %v2392 = vpop.f32.mrb[0].mxu0
    %v2393 = vadd.f32 %v2280, %v2392
    %v2394 = vpop.f32.mrb[0].mxu0
    %v2395 = vadd.f32 %v2282, %v2394
    %v2396 = vpop.f32.mrb[0].mxu0
    %v2397 = vadd.f32 %v2284, %v2396
    %2398 = vmatprep.mubr.bf16.mxu0 %v180
    %2399 = vmatmul.mubr.bf16.gmra.mrb[0].mxu0 %v179
    %v2400 = vpop.f32.mrb[0].mxu0
    %v2401 = vadd.f32 %v2288, %v2400
    %v2402 = vpop.f32.mrb[0].mxu0
    %v2403 = vadd.f32 %v2290, %v2402
    %v2404 = vpop.f32.mrb[0].mxu0
    %v2405 = vadd.f32 %v2292, %v2404
    %v2406 = vpop.f32.mrb[0].mxu0
    %v2407 = vadd.f32 %v2294, %v2406
    %2408 = vmatprep.mubr.bf16.mxu0 %v188
    %2409 = vmatmul.mubr.bf16.gmra.mrb[0].mxu0 %v187
    %v2410 = vpop.f32.mrb[0].mxu0
    %v2411 = vadd.f32 %v2298, %v2410
    %v2412 = vpop.f32.mrb[0].mxu0
    %v2413 = vadd.f32 %v2300, %v2412
    %v2414 = vpop.f32.mrb[0].mxu0
    %v2415 = vadd.f32 %v2302, %v2414
    %v2416 = vpop.f32.mrb[0].mxu0
    %v2417 = vadd.f32 %v2304, %v2416
    %2418 = vmatprep.mubr.bf16.mxu0 %v196
    %2419 = vmatmul.mubr.bf16.gmra.mrb[0].mxu0 %v195
    %v2420 = vpop.f32.mrb[0].mxu0
    %v2421 = vadd.f32 %v2308, %v2420
    %v2422 = vpop.f32.mrb[0].mxu0
    %v2423 = vadd.f32 %v2310, %v2422
    %v2424 = vpop.f32.mrb[0].mxu0
    %v2425 = vadd.f32 %v2312, %v2424
    %v2426 = vpop.f32.mrb[0].mxu0
    %v2427 = vadd.f32 %v2314, %v2426
    %2428 = vmatprep.mubr.bf16.mxu0 %v204
    %2429 = vmatmul.mubr.bf16.gmra.mrb[0].mxu0 %v203
    %v2430 = vpop.f32.mrb[0].mxu0
    %v2431 = vadd.f32 %v2318, %v2430
    %v2432 = vpop.f32.mrb[0].mxu0
    %v2433 = vadd.f32 %v2320, %v2432
    %v2434 = vpop.f32.mrb[0].mxu0
    %v2435 = vadd.f32 %v2322, %v2434
    %v2436 = vpop.f32.mrb[0].mxu0
    %v2437 = vadd.f32 %v2324, %v2436
    %2438 = vmatprep.mubr.bf16.mxu0 %v212
    %2439 = vmatmul.mubr.bf16.gmra.mrb[0].mxu0 %v211
    %v2440 = vpop.f32.mrb[0].mxu0
    %v2441 = vadd.f32 %v2328, %v2440
    %v2442 = vpop.f32.mrb[0].mxu0
    %v2443 = vadd.f32 %v2330, %v2442
    %v2444 = vpop.f32.mrb[0].mxu0
    %v2445 = vadd.f32 %v2332, %v2444
    %v2446 = vpop.f32.mrb[0].mxu0
    %v2447 = vadd.f32 %v2334, %v2446
    %2448 = vmatprep.mubr.bf16.mxu0 %v220
    %2449 = vmatmul.mubr.bf16.gmra.mrb[0].mxu0 %v219
    %v2450 = vpop.f32.mrb[0].mxu0
    %v2451 = vadd.f32 %v2338, %v2450
    %v2452 = vpop.f32.mrb[0].mxu0
    %v2453 = vadd.f32 %v2340, %v2452
    %v2454 = vpop.f32.mrb[0].mxu0
    %v2455 = vadd.f32 %v2342, %v2454
    %v2456 = vpop.f32.mrb[0].mxu0
    %v2457 = vadd.f32 %v2344, %v2456
    %2458 = vmatprep.mubr.bf16.mxu0 %v228
    %2459 = vmatmul.mubr.bf16.gmra.mrb[0].mxu0 %v227
    %v2460 = vpop.f32.mrb[0].mxu0
    %v2461 = vadd.f32 %v2348, %v2460
    %v2462 = vpop.f32.mrb[0].mxu0
    %v2463 = vadd.f32 %v2350, %v2462
    %v2464 = vpop.f32.mrb[0].mxu0
    %v2465 = vadd.f32 %v2352, %v2464
    %v2466 = vpop.f32.mrb[0].mxu0
    %v2467 = vadd.f32 %v2354, %v2466
    %2468 = vdwg.mxu0
    %2469 = vmatprep.subr.bf16.mxu0 %v1410
    %2470 = vmatpush1.bf16.msra.mxu0 %v1409
    %2471 = vmatprep.subr.bf16.mxu0 %v1414
    %2472 = vmatpush1.bf16.msra.mxu0 %v1413
    %2473 = vmatprep.subr.bf16.mxu0 %v1418
    %2474 = vmatpush1.bf16.msra.mxu0 %v1417
    %2475 = vmatprep.subr.bf16.mxu0 %v1422
    %2476 = vmatpush1.bf16.msra.mxu0 %v1421
    %2477 = vmatprep.subr.bf16.mxu0 %v1426
    %2478 = vmatpush1.bf16.msra.mxu0 %v1425
    %2479 = vmatprep.subr.bf16.mxu0 %v1430
    %2480 = vmatpush1.bf16.msra.mxu0 %v1429
    %2481 = vmatprep.subr.bf16.mxu0 %v1434
    %2482 = vmatpush1.bf16.msra.mxu0 %v1433
    %2483 = vmatprep.subr.bf16.mxu0 %v1438
    %2484 = vmatpush1.bf16.msra.mxu0 %v1437
    %2485 = vmatprep.subr.bf16.mxu0 %v1442
    %2486 = vmatpush1.bf16.msra.mxu0 %v1441
    %2487 = vmatprep.subr.bf16.mxu0 %v1446
    %2488 = vmatpush1.bf16.msra.mxu0 %v1445
    %2489 = vmatprep.subr.bf16.mxu0 %v1450
    %2490 = vmatpush1.bf16.msra.mxu0 %v1449
    %2491 = vmatprep.subr.bf16.mxu0 %v1454
    %2492 = vmatpush1.bf16.msra.mxu0 %v1453
    %2493 = vmatprep.subr.bf16.mxu0 %v1458
    %2494 = vmatpush1.bf16.msra.mxu0 %v1457
    %2495 = vmatprep.subr.bf16.mxu0 %v1462
    %2496 = vmatpush1.bf16.msra.mxu0 %v1461
    %2497 = vmatprep.subr.bf16.mxu0 %v1466
    %2498 = vmatpush1.bf16.msra.mxu0 %v1465
    %2499 = vmatprep.subr.bf16.mxu0 %v1470
    %2500 = vmatpush1.bf16.msra.mxu0 %v1469
    %2501 = vmatprep.mubr.bf16.mxu0 %v174
    %2502 = vmatmul.mubr.bf16.gmra.mrb[0].mxu0 %v173
    %v2503 = vpop.f32.mrb[0].mxu0
    %v2504 = vadd.f32 %v2391, %v2503
    %v2505 = vpop.f32.mrb[0].mxu0
    %v2506 = vadd.f32 %v2393, %v2505
    %v2507 = vpop.f32.mrb[0].mxu0
    %v2508 = vadd.f32 %v2395, %v2507
    %v2509 = vpop.f32.mrb[0].mxu0
    %v2510 = vadd.f32 %v2397, %v2509
    %2511 = vmatprep.mubr.bf16.mxu0 %v182
    %2512 = vmatmul.mubr.bf16.gmra.mrb[0].mxu0 %v181
    %v2513 = vpop.f32.mrb[0].mxu0
    %v2514 = vadd.f32 %v2401, %v2513
    %v2515 = vpop.f32.mrb[0].mxu0
    %v2516 = vadd.f32 %v2403, %v2515
    %v2517 = vpop.f32.mrb[0].mxu0
    %v2518 = vadd.f32 %v2405, %v2517
    %v2519 = vpop.f32.mrb[0].mxu0
    %v2520 = vadd.f32 %v2407, %v2519
    %2521 = vmatprep.mubr.bf16.mxu0 %v190
    %2522 = vmatmul.mubr.bf16.gmra.mrb[0].mxu0 %v189
    %v2523 = vpop.f32.mrb[0].mxu0
    %v2524 = vadd.f32 %v2411, %v2523
    %v2525 = vpop.f32.mrb[0].mxu0
    %v2526 = vadd.f32 %v2413, %v2525
    %v2527 = vpop.f32.mrb[0].mxu0
    %v2528 = vadd.f32 %v2415, %v2527
    %v2529 = vpop.f32.mrb[0].mxu0
    %v2530 = vadd.f32 %v2417, %v2529
    %2531 = vmatprep.mubr.bf16.mxu0 %v198
    %2532 = vmatmul.mubr.bf16.gmra.mrb[0].mxu0 %v197
    %v2533 = vpop.f32.mrb[0].mxu0
    %v2534 = vadd.f32 %v2421, %v2533
    %v2535 = vpop.f32.mrb[0].mxu0
    %v2536 = vadd.f32 %v2423, %v2535
    %v2537 = vpop.f32.mrb[0].mxu0
    %v2538 = vadd.f32 %v2425, %v2537
    %v2539 = vpop.f32.mrb[0].mxu0
    %v2540 = vadd.f32 %v2427, %v2539
    %2541 = vmatprep.mubr.bf16.mxu0 %v206
    %2542 = vmatmul.mubr.bf16.gmra.mrb[0].mxu0 %v205
    %v2543 = vpop.f32.mrb[0].mxu0
    %v2544 = vadd.f32 %v2431, %v2543
    %v2545 = vpop.f32.mrb[0].mxu0
    %v2546 = vadd.f32 %v2433, %v2545
    %v2547 = vpop.f32.mrb[0].mxu0
    %v2548 = vadd.f32 %v2435, %v2547
    %v2549 = vpop.f32.mrb[0].mxu0
    %v2550 = vadd.f32 %v2437, %v2549
    %2551 = vmatprep.mubr.bf16.mxu0 %v214
    %2552 = vmatmul.mubr.bf16.gmra.mrb[0].mxu0 %v213
    %v2553 = vpop.f32.mrb[0].mxu0
    %v2554 = vadd.f32 %v2441, %v2553
    %v2555 = vpop.f32.mrb[0].mxu0
    %v2556 = vadd.f32 %v2443, %v2555
    %v2557 = vpop.f32.mrb[0].mxu0
    %v2558 = vadd.f32 %v2445, %v2557
    %v2559 = vpop.f32.mrb[0].mxu0
    %v2560 = vadd.f32 %v2447, %v2559
    %2561 = vmatprep.mubr.bf16.mxu0 %v222
    %2562 = vmatmul.mubr.bf16.gmra.mrb[0].mxu0 %v221
    %v2563 = vpop.f32.mrb[0].mxu0
    %v2564 = vadd.f32 %v2451, %v2563
    %v2565 = vpop.f32.mrb[0].mxu0
    %v2566 = vadd.f32 %v2453, %v2565
    %v2567 = vpop.f32.mrb[0].mxu0
    %v2568 = vadd.f32 %v2455, %v2567
    %v2569 = vpop.f32.mrb[0].mxu0
    %v2570 = vadd.f32 %v2457, %v2569
    %2571 = vmatprep.mubr.bf16.mxu0 %v230
    %2572 = vmatmul.mubr.bf16.gmra.mrb[0].mxu0 %v229
    %v2573 = vpop.f32.mrb[0].mxu0
    %v2574 = vadd.f32 %v2461, %v2573
    %v2575 = vpop.f32.mrb[0].mxu0
    %v2576 = vadd.f32 %v2463, %v2575
    %v2577 = vpop.f32.mrb[0].mxu0
    %v2578 = vadd.f32 %v2465, %v2577
    %v2579 = vpop.f32.mrb[0].mxu0
    %v2580 = vadd.f32 %v2467, %v2579
    %2581 = vdwg.mxu0
    %2582 = vmatprep.subr.bf16.mxu0 %v1474
    %2583 = vmatpush1.bf16.msra.mxu0 %v1473
    %2584 = vmatprep.subr.bf16.mxu0 %v1478
    %2585 = vmatpush1.bf16.msra.mxu0 %v1477
    %2586 = vmatprep.subr.bf16.mxu0 %v1482
    %2587 = vmatpush1.bf16.msra.mxu0 %v1481
    %2588 = vmatprep.subr.bf16.mxu0 %v1486
    %2589 = vmatpush1.bf16.msra.mxu0 %v1485
    %2590 = vmatprep.subr.bf16.mxu0 %v1490
    %2591 = vmatpush1.bf16.msra.mxu0 %v1489
    %2592 = vmatprep.subr.bf16.mxu0 %v1494
    %2593 = vmatpush1.bf16.msra.mxu0 %v1493
    %2594 = vmatprep.subr.bf16.mxu0 %v1498
    %2595 = vmatpush1.bf16.msra.mxu0 %v1497
    %2596 = vmatprep.subr.bf16.mxu0 %v1502
    %2597 = vmatpush1.bf16.msra.mxu0 %v1501
    %2598 = vmatprep.subr.bf16.mxu0 %v1506
    %2599 = vmatpush1.bf16.msra.mxu0 %v1505
    %2600 = vmatprep.subr.bf16.mxu0 %v1510
    %2601 = vmatpush1.bf16.msra.mxu0 %v1509
    %2602 = vmatprep.subr.bf16.mxu0 %v1514
    %2603 = vmatpush1.bf16.msra.mxu0 %v1513
    %2604 = vmatprep.subr.bf16.mxu0 %v1518
    %2605 = vmatpush1.bf16.msra.mxu0 %v1517
    %2606 = vmatprep.subr.bf16.mxu0 %v1522
    %2607 = vmatpush1.bf16.msra.mxu0 %v1521
    %2608 = vmatprep.subr.bf16.mxu0 %v1526
    %2609 = vmatpush1.bf16.msra.mxu0 %v1525
    %2610 = vmatprep.subr.bf16.mxu0 %v1530
    %2611 = vmatpush1.bf16.msra.mxu0 %v1529
    %2612 = vmatprep.subr.bf16.mxu0 %v1534
    %2613 = vmatpush1.bf16.msra.mxu0 %v1533
    %2614 = vmatprep.mubr.bf16.mxu0 %v176
    %2615 = vmatmul.mubr.bf16.gmra.mrb[0].mxu0 %v175
    %v2616 = vpop.f32.mrb[0].mxu0
    %v2617 = vadd.f32 %v2504, %v2616
    %v2618 = vpop.f32.mrb[0].mxu0
    %v2619 = vadd.f32 %v2506, %v2618
    %v2620 = vpop.f32.mrb[0].mxu0
    %v2621 = vadd.f32 %v2508, %v2620
    %v2622 = vpop.f32.mrb[0].mxu0
    %v2623 = vadd.f32 %v2510, %v2622
    %2624 = vmatprep.mubr.bf16.mxu0 %v184
    %2625 = vmatmul.mubr.bf16.gmra.mrb[0].mxu0 %v183
    %v2626 = vpop.f32.mrb[0].mxu0
    %v2627 = vadd.f32 %v2514, %v2626
    %v2628 = vpop.f32.mrb[0].mxu0
    %v2629 = vadd.f32 %v2516, %v2628
    %v2630 = vpop.f32.mrb[0].mxu0
    %v2631 = vadd.f32 %v2518, %v2630
    %v2632 = vpop.f32.mrb[0].mxu0
    %v2633 = vadd.f32 %v2520, %v2632
    %2634 = vmatprep.mubr.bf16.mxu0 %v192
    %2635 = vmatmul.mubr.bf16.gmra.mrb[0].mxu0 %v191
    %v2636 = vpop.f32.mrb[0].mxu0
    %v2637 = vadd.f32 %v2524, %v2636
    %v2638 = vpop.f32.mrb[0].mxu0
    %v2639 = vadd.f32 %v2526, %v2638
    %v2640 = vpop.f32.mrb[0].mxu0
    %v2641 = vadd.f32 %v2528, %v2640
    %v2642 = vpop.f32.mrb[0].mxu0
    %v2643 = vadd.f32 %v2530, %v2642
    %2644 = vmatprep.mubr.bf16.mxu0 %v200
    %2645 = vmatmul.mubr.bf16.gmra.mrb[0].mxu0 %v199
    %v2646 = vpop.f32.mrb[0].mxu0
    %v2647 = vadd.f32 %v2534, %v2646
    %v2648 = vpop.f32.mrb[0].mxu0
    %v2649 = vadd.f32 %v2536, %v2648
    %v2650 = vpop.f32.mrb[0].mxu0
    %v2651 = vadd.f32 %v2538, %v2650
    %v2652 = vpop.f32.mrb[0].mxu0
    %v2653 = vadd.f32 %v2540, %v2652
    %2654 = vmatprep.mubr.bf16.mxu0 %v208
    %2655 = vmatmul.mubr.bf16.gmra.mrb[0].mxu0 %v207
    %v2656 = vpop.f32.mrb[0].mxu0
    %v2657 = vadd.f32 %v2544, %v2656
    %v2658 = vpop.f32.mrb[0].mxu0
    %v2659 = vadd.f32 %v2546, %v2658
    %v2660 = vpop.f32.mrb[0].mxu0
    %v2661 = vadd.f32 %v2548, %v2660
    %v2662 = vpop.f32.mrb[0].mxu0
    %v2663 = vadd.f32 %v2550, %v2662
    %2664 = vmatprep.mubr.bf16.mxu0 %v216
    %2665 = vmatmul.mubr.bf16.gmra.mrb[0].mxu0 %v215
    %v2666 = vpop.f32.mrb[0].mxu0
    %v2667 = vadd.f32 %v2554, %v2666
    %v2668 = vpop.f32.mrb[0].mxu0
    %v2669 = vadd.f32 %v2556, %v2668
    %v2670 = vpop.f32.mrb[0].mxu0
    %v2671 = vadd.f32 %v2558, %v2670
    %v2672 = vpop.f32.mrb[0].mxu0
    %v2673 = vadd.f32 %v2560, %v2672
    %2674 = vmatprep.mubr.bf16.mxu0 %v224
    %2675 = vmatmul.mubr.bf16.gmra.mrb[0].mxu0 %v223
    %v2676 = vpop.f32.mrb[0].mxu0
    %v2677 = vadd.f32 %v2564, %v2676
    %v2678 = vpop.f32.mrb[0].mxu0
    %v2679 = vadd.f32 %v2566, %v2678
    %v2680 = vpop.f32.mrb[0].mxu0
    %v2681 = vadd.f32 %v2568, %v2680
    %v2682 = vpop.f32.mrb[0].mxu0
    %v2683 = vadd.f32 %v2570, %v2682
    %2684 = vmatprep.mubr.bf16.mxu0 %v232
    %2685 = vmatmul.mubr.bf16.gmra.mrb[0].mxu0 %v231
    %v2686 = vpop.f32.mrb[0].mxu0
    %v2687 = vadd.f32 %v2574, %v2686
    %v2688 = vpop.f32.mrb[0].mxu0
    %v2689 = vadd.f32 %v2576, %v2688
    %v2690 = vpop.f32.mrb[0].mxu0
    %v2691 = vadd.f32 %v2578, %v2690
    %v2692 = vpop.f32.mrb[0].mxu0
    %v2693 = vadd.f32 %v2580, %v2692
    %2694 = vdwg.mxu0
    %v2695 = vmax.f32 %v2165, 0.0
    %v2696 = vmax.f32 %v2167, 0.0
    %v2697 = vmax.f32 %v2617, 0.0
    %v2698 = vmax.f32 %v2619, 0.0
    %v2699 = vmax.f32 %v2169, 0.0
    %v2700 = vmax.f32 %v2171, 0.0
    %v2701 = vmax.f32 %v2621, 0.0
    %v2702 = vmax.f32 %v2623, 0.0
    %v2703 = vmax.f32 %v2175, 0.0
    %v2704 = vmax.f32 %v2177, 0.0
    %v2705 = vmax.f32 %v2627, 0.0
    %v2706 = vmax.f32 %v2629, 0.0
    %v2707 = vmax.f32 %v2179, 0.0
    %v2708 = vmax.f32 %v2181, 0.0
    %v2709 = vmax.f32 %v2631, 0.0
    %v2710 = vmax.f32 %v2633, 0.0
    %v2711 = vmax.f32 %v2185, 0.0
    %v2712 = vmax.f32 %v2187, 0.0
    %v2713 = vmax.f32 %v2637, 0.0
    %v2714 = vmax.f32 %v2639, 0.0
    %v2715 = vmax.f32 %v2189, 0.0
    %v2716 = vmax.f32 %v2191, 0.0
    %v2717 = vmax.f32 %v2641, 0.0
    %v2718 = vmax.f32 %v2643, 0.0
    %v2719 = vmax.f32 %v2195, 0.0
    %v2720 = vmax.f32 %v2197, 0.0
    %v2721 = vmax.f32 %v2647, 0.0
    %v2722 = vmax.f32 %v2649, 0.0
    %v2723 = vmax.f32 %v2199, 0.0
    %v2724 = vmax.f32 %v2201, 0.0
    %v2725 = vmax.f32 %v2651, 0.0
    %v2726 = vmax.f32 %v2653, 0.0
    %v2727 = vmax.f32 %v2205, 0.0
    %v2728 = vmax.f32 %v2207, 0.0
    %v2729 = vmax.f32 %v2657, 0.0
    %v2730 = vmax.f32 %v2659, 0.0
    %v2731 = vmax.f32 %v2209, 0.0
    %v2732 = vmax.f32 %v2211, 0.0
    %v2733 = vmax.f32 %v2661, 0.0
    %v2734 = vmax.f32 %v2663, 0.0
    %v2735 = vmax.f32 %v2215, 0.0
    %v2736 = vmax.f32 %v2217, 0.0
    %v2737 = vmax.f32 %v2667, 0.0
    %v2738 = vmax.f32 %v2669, 0.0
    %v2739 = vmax.f32 %v2219, 0.0
    %v2740 = vmax.f32 %v2221, 0.0
    %v2741 = vmax.f32 %v2671, 0.0
    %v2742 = vmax.f32 %v2673, 0.0
    %v2743 = vmax.f32 %v2225, 0.0
    %v2744 = vmax.f32 %v2227, 0.0
    %v2745 = vmax.f32 %v2677, 0.0
    %v2746 = vmax.f32 %v2679, 0.0
    %v2747 = vmax.f32 %v2229, 0.0
    %v2748 = vmax.f32 %v2231, 0.0
    %v2749 = vmax.f32 %v2681, 0.0
    %v2750 = vmax.f32 %v2683, 0.0
    %v2751 = vmax.f32 %v2235, 0.0
    %v2752 = vmax.f32 %v2237, 0.0
    %v2753 = vmax.f32 %v2687, 0.0
    %v2754 = vmax.f32 %v2689, 0.0
    %v2755 = vmax.f32 %v2239, 0.0
    %v2756 = vmax.f32 %v2241, 0.0
    %v2757 = vmax.f32 %v2691, 0.0
    %v2758 = vmax.f32 %v2693, 0.0
    %v2759 = vpack.c.bf16 %v2699, %v2695
    %v2760 = vpack.c.bf16 %v2700, %v2696
    %v2761 = vpack.c.bf16 %v2701, %v2697
    %v2762 = vpack.c.bf16 %v2702, %v2698
    %v2763 = vpack.c.bf16 %v2707, %v2703
    %v2764 = vpack.c.bf16 %v2708, %v2704
    %v2765 = vpack.c.bf16 %v2709, %v2705
    %v2766 = vpack.c.bf16 %v2710, %v2706
    %v2767 = vpack.c.bf16 %v2715, %v2711
    %v2768 = vpack.c.bf16 %v2716, %v2712
    %v2769 = vpack.c.bf16 %v2717, %v2713
    %v2770 = vpack.c.bf16 %v2718, %v2714
    %v2771 = vpack.c.bf16 %v2723, %v2719
    %v2772 = vpack.c.bf16 %v2724, %v2720
    %v2773 = vpack.c.bf16 %v2725, %v2721
    %v2774 = vpack.c.bf16 %v2726, %v2722
    %v2775 = vpack.c.bf16 %v2731, %v2727
    %v2776 = vpack.c.bf16 %v2732, %v2728
    %v2777 = vpack.c.bf16 %v2733, %v2729
    %v2778 = vpack.c.bf16 %v2734, %v2730
    %v2779 = vpack.c.bf16 %v2739, %v2735
    %v2780 = vpack.c.bf16 %v2740, %v2736
    %v2781 = vpack.c.bf16 %v2741, %v2737
    %v2782 = vpack.c.bf16 %v2742, %v2738
    %v2783 = vpack.c.bf16 %v2747, %v2743
    %v2784 = vpack.c.bf16 %v2748, %v2744
    %v2785 = vpack.c.bf16 %v2749, %v2745
    %v2786 = vpack.c.bf16 %v2750, %v2746
    %v2787 = vpack.c.bf16 %v2755, %v2751
    %v2788 = vpack.c.bf16 %v2756, %v2752
    %v2789 = vpack.c.bf16 %v2757, %v2753
    %v2790 = vpack.c.bf16 %v2758, %v2754
    %v2791 = vld [vmem:[%s3] sm:$0xff]
    %v2792 = vld [vmem:[%s3 + $0x8] sm:$0xff]
    %v2793 = vld [vmem:[%s3 + $0x10] sm:$0xff]
    %v2794 = vld [vmem:[%s3 + $0x18] sm:$0xff]
    %v2795 = vld [vmem:[%s3 + $0x20] sm:$0xff]
    %v2796 = vld [vmem:[%s3 + $0x28] sm:$0xff]
    %v2797 = vld [vmem:[%s3 + $0x30] sm:$0xff]
    %v2798 = vld [vmem:[%s3 + $0x38] sm:$0xff]
    %v2799 = vld [vmem:[%s3 + $0x40] sm:$0xff]
    %v2800 = vld [vmem:[%s3 + $0x48] sm:$0xff]
    %v2801 = vld [vmem:[%s3 + $0x50] sm:$0xff]
    %v2802 = vld [vmem:[%s3 + $0x58] sm:$0xff]
    %v2803 = vld [vmem:[%s3 + $0x60] sm:$0xff]
    %v2804 = vld [vmem:[%s3 + $0x68] sm:$0xff]
    %v2805 = vld [vmem:[%s3 + $0x70] sm:$0xff]
    %v2806 = vld [vmem:[%s3 + $0x78] sm:$0xff]
    %v2807 = vld [vmem:[%s3 + $0x80] sm:$0xff]
    %v2808 = vld [vmem:[%s3 + $0x88] sm:$0xff]
    %v2809 = vld [vmem:[%s3 + $0x90] sm:$0xff]
    %v2810 = vld [vmem:[%s3 + $0x98] sm:$0xff]
    %v2811 = vld [vmem:[%s3 + $0xa0] sm:$0xff]
    %v2812 = vld [vmem:[%s3 + $0xa8] sm:$0xff]
    %v2813 = vld [vmem:[%s3 + $0xb0] sm:$0xff]
    %v2814 = vld [vmem:[%s3 + $0xb8] sm:$0xff]
    %v2815 = vld [vmem:[%s3 + $0xc0] sm:$0xff]
    %v2816 = vld [vmem:[%s3 + $0xc8] sm:$0xff]
    %v2817 = vld [vmem:[%s3 + $0xd0] sm:$0xff]
    %v2818 = vld [vmem:[%s3 + $0xd8] sm:$0xff]
    %v2819 = vld [vmem:[%s3 + $0xe0] sm:$0xff]
    %v2820 = vld [vmem:[%s3 + $0xe8] sm:$0xff]
    %v2821 = vld [vmem:[%s3 + $0xf0] sm:$0xff]
    %v2822 = vld [vmem:[%s3 + $0xf8] sm:$0xff]
    %v2823 = vld [vmem:[%s3 + $0x100] sm:$0xff]
    %v2824 = vld [vmem:[%s3 + $0x108] sm:$0xff]
    %v2825 = vld [vmem:[%s3 + $0x110] sm:$0xff]
    %v2826 = vld [vmem:[%s3 + $0x118] sm:$0xff]
    %v2827 = vld [vmem:[%s3 + $0x120] sm:$0xff]
    %v2828 = vld [vmem:[%s3 + $0x128] sm:$0xff]
    %v2829 = vld [vmem:[%s3 + $0x130] sm:$0xff]
    %v2830 = vld [vmem:[%s3 + $0x138] sm:$0xff]
    %v2831 = vld [vmem:[%s3 + $0x140] sm:$0xff]
    %v2832 = vld [vmem:[%s3 + $0x148] sm:$0xff]
    %v2833 = vld [vmem:[%s3 + $0x150] sm:$0xff]
    %v2834 = vld [vmem:[%s3 + $0x158] sm:$0xff]
    %v2835 = vld [vmem:[%s3 + $0x160] sm:$0xff]
    %v2836 = vld [vmem:[%s3 + $0x168] sm:$0xff]
    %v2837 = vld [vmem:[%s3 + $0x170] sm:$0xff]
    %v2838 = vld [vmem:[%s3 + $0x178] sm:$0xff]
    %v2839 = vld [vmem:[%s3 + $0x180] sm:$0xff]
    %v2840 = vld [vmem:[%s3 + $0x188] sm:$0xff]
    %v2841 = vld [vmem:[%s3 + $0x190] sm:$0xff]
    %v2842 = vld [vmem:[%s3 + $0x198] sm:$0xff]
    %v2843 = vld [vmem:[%s3 + $0x1a0] sm:$0xff]
    %v2844 = vld [vmem:[%s3 + $0x1a8] sm:$0xff]
    %v2845 = vld [vmem:[%s3 + $0x1b0] sm:$0xff]
    %v2846 = vld [vmem:[%s3 + $0x1b8] sm:$0xff]
    %v2847 = vld [vmem:[%s3 + $0x1c0] sm:$0xff]
    %v2848 = vld [vmem:[%s3 + $0x1c8] sm:$0xff]
    %v2849 = vld [vmem:[%s3 + $0x1d0] sm:$0xff]
    %v2850 = vld [vmem:[%s3 + $0x1d8] sm:$0xff]
    %v2851 = vld [vmem:[%s3 + $0x1e0] sm:$0xff]
    %v2852 = vld [vmem:[%s3 + $0x1e8] sm:$0xff]
    %v2853 = vld [vmem:[%s3 + $0x1f0] sm:$0xff]
    %v2854 = vld [vmem:[%s3 + $0x1f8] sm:$0xff]
    %v2855 = vld [vmem:[%s4] sm:$0x3]
    %v2857 = vlaneseq
    %v2858 = vshrl.u32 %v2857, 7
    %v2859 = vsub.s32 0, %v2858
    %v2860 = vrot.slane %v2855, %v2859
    %v2861 = vlaneseq
    %v2862 = vshrl.u32 %v2861, 7
    %v2863 = vsub.s32 1, %v2862
    %v2864 = vrot.slane %v2855, %v2863
    %v2931 = vunpack.c.l.b16 %v2791
    %v2932 = vunpack.c.h.b16 %v2791
    %v2933 = vunpack.c.l.b16 %v2792
    %v2934 = vunpack.c.h.b16 %v2792
    %v2935 = vunpack.c.l.b16 %v2793
    %v2936 = vunpack.c.h.b16 %v2793
    %v2937 = vunpack.c.l.b16 %v2794
    %v2938 = vunpack.c.h.b16 %v2794
    %v2939 = vunpack.c.l.b16 %v2795
    %v2940 = vunpack.c.h.b16 %v2795
    %v2941 = vunpack.c.l.b16 %v2796
    %v2942 = vunpack.c.h.b16 %v2796
    %v2943 = vunpack.c.l.b16 %v2797
    %v2944 = vunpack.c.h.b16 %v2797
    %v2945 = vunpack.c.l.b16 %v2798
    %v2946 = vunpack.c.h.b16 %v2798
    %v2947 = vunpack.c.l.b16 %v2799
    %v2948 = vunpack.c.h.b16 %v2799
    %v2949 = vunpack.c.l.b16 %v2800
    %v2950 = vunpack.c.h.b16 %v2800
    %v2951 = vunpack.c.l.b16 %v2801
    %v2952 = vunpack.c.h.b16 %v2801
    %v2953 = vunpack.c.l.b16 %v2802
    %v2954 = vunpack.c.h.b16 %v2802
    %v2955 = vunpack.c.l.b16 %v2803
    %v2956 = vunpack.c.h.b16 %v2803
    %v2957 = vunpack.c.l.b16 %v2804
    %v2958 = vunpack.c.h.b16 %v2804
    %v2959 = vunpack.c.l.b16 %v2805
    %v2960 = vunpack.c.h.b16 %v2805
    %v2961 = vunpack.c.l.b16 %v2806
    %v2962 = vunpack.c.h.b16 %v2806
    %v2963 = vunpack.c.l.b16 %v2807
    %v2964 = vunpack.c.h.b16 %v2807
    %v2965 = vunpack.c.l.b16 %v2808
    %v2966 = vunpack.c.h.b16 %v2808
    %v2967 = vunpack.c.l.b16 %v2809
    %v2968 = vunpack.c.h.b16 %v2809
    %v2969 = vunpack.c.l.b16 %v2810
    %v2970 = vunpack.c.h.b16 %v2810
    %v2971 = vunpack.c.l.b16 %v2811
    %v2972 = vunpack.c.h.b16 %v2811
    %v2973 = vunpack.c.l.b16 %v2812
    %v2974 = vunpack.c.h.b16 %v2812
    %v2975 = vunpack.c.l.b16 %v2813
    %v2976 = vunpack.c.h.b16 %v2813
    %v2977 = vunpack.c.l.b16 %v2814
    %v2978 = vunpack.c.h.b16 %v2814
    %v2979 = vunpack.c.l.b16 %v2815
    %v2980 = vunpack.c.h.b16 %v2815
    %v2981 = vunpack.c.l.b16 %v2816
    %v2982 = vunpack.c.h.b16 %v2816
    %v2983 = vunpack.c.l.b16 %v2817
    %v2984 = vunpack.c.h.b16 %v2817
    %v2985 = vunpack.c.l.b16 %v2818
    %v2986 = vunpack.c.h.b16 %v2818
    %v2987 = vunpack.c.l.b16 %v2819
    %v2988 = vunpack.c.h.b16 %v2819
    %v2989 = vunpack.c.l.b16 %v2820
    %v2990 = vunpack.c.h.b16 %v2820
    %v2991 = vunpack.c.l.b16 %v2821
    %v2992 = vunpack.c.h.b16 %v2821
    %v2993 = vunpack.c.l.b16 %v2822
    %v2994 = vunpack.c.h.b16 %v2822
    %v2995 = vunpack.c.l.b16 %v2823
    %v2996 = vunpack.c.h.b16 %v2823
    %v2997 = vunpack.c.l.b16 %v2824
    %v2998 = vunpack.c.h.b16 %v2824
    %v2999 = vunpack.c.l.b16 %v2825
    %v3000 = vunpack.c.h.b16 %v2825
    %v3001 = vunpack.c.l.b16 %v2826
    %v3002 = vunpack.c.h.b16 %v2826
    %v3003 = vunpack.c.l.b16 %v2827
    %v3004 = vunpack.c.h.b16 %v2827
    %v3005 = vunpack.c.l.b16 %v2828
    %v3006 = vunpack.c.h.b16 %v2828
    %v3007 = vunpack.c.l.b16 %v2829
    %v3008 = vunpack.c.h.b16 %v2829
    %v3009 = vunpack.c.l.b16 %v2830
    %v3010 = vunpack.c.h.b16 %v2830
    %v3011 = vunpack.c.l.b16 %v2831
    %v3012 = vunpack.c.h.b16 %v2831
    %v3013 = vunpack.c.l.b16 %v2832
    %v3014 = vunpack.c.h.b16 %v2832
    %v3015 = vunpack.c.l.b16 %v2833
    %v3016 = vunpack.c.h.b16 %v2833
    %v3017 = vunpack.c.l.b16 %v2834
    %v3018 = vunpack.c.h.b16 %v2834
    %v3019 = vunpack.c.l.b16 %v2835
    %v3020 = vunpack.c.h.b16 %v2835
    %v3021 = vunpack.c.l.b16 %v2836
    %v3022 = vunpack.c.h.b16 %v2836
    %v3023 = vunpack.c.l.b16 %v2837
    %v3024 = vunpack.c.h.b16 %v2837
    %v3025 = vunpack.c.l.b16 %v2838
    %v3026 = vunpack.c.h.b16 %v2838
    %v3027 = vunpack.c.l.b16 %v2839
    %v3028 = vunpack.c.h.b16 %v2839
    %v3029 = vunpack.c.l.b16 %v2840
    %v3030 = vunpack.c.h.b16 %v2840
    %v3031 = vunpack.c.l.b16 %v2841
    %v3032 = vunpack.c.h.b16 %v2841
    %v3033 = vunpack.c.l.b16 %v2842
    %v3034 = vunpack.c.h.b16 %v2842
    %v3035 = vunpack.c.l.b16 %v2843
    %v3036 = vunpack.c.h.b16 %v2843
    %v3037 = vunpack.c.l.b16 %v2844
    %v3038 = vunpack.c.h.b16 %v2844
    %v3039 = vunpack.c.l.b16 %v2845
    %v3040 = vunpack.c.h.b16 %v2845
    %v3041 = vunpack.c.l.b16 %v2846
    %v3042 = vunpack.c.h.b16 %v2846
    %v3043 = vunpack.c.l.b16 %v2847
    %v3044 = vunpack.c.h.b16 %v2847
    %v3045 = vunpack.c.l.b16 %v2848
    %v3046 = vunpack.c.h.b16 %v2848
    %v3047 = vunpack.c.l.b16 %v2849
    %v3048 = vunpack.c.h.b16 %v2849
    %v3049 = vunpack.c.l.b16 %v2850
    %v3050 = vunpack.c.h.b16 %v2850
    %v3051 = vunpack.c.l.b16 %v2851
    %v3052 = vunpack.c.h.b16 %v2851
    %v3053 = vunpack.c.l.b16 %v2852
    %v3054 = vunpack.c.h.b16 %v2852
    %v3055 = vunpack.c.l.b16 %v2853
    %v3056 = vunpack.c.h.b16 %v2853
    %v3057 = vunpack.c.l.b16 %v2854
    %v3058 = vunpack.c.h.b16 %v2854
    %v3059 = vpack.c.b16 %v2933, %v2931
    %v3060 = vpack.c.b16 %v2934, %v2932
    %v3061 = vpack.c.b16 %v2937, %v2935
    %v3062 = vpack.c.b16 %v2938, %v2936
    %v3063 = vpack.c.b16 %v2941, %v2939
    %v3064 = vpack.c.b16 %v2942, %v2940
    %v3065 = vpack.c.b16 %v2945, %v2943
    %v3066 = vpack.c.b16 %v2946, %v2944
    %v3067 = vpack.c.b16 %v2949, %v2947
    %v3068 = vpack.c.b16 %v2950, %v2948
    %v3069 = vpack.c.b16 %v2953, %v2951
    %v3070 = vpack.c.b16 %v2954, %v2952
    %v3071 = vpack.c.b16 %v2957, %v2955
    %v3072 = vpack.c.b16 %v2958, %v2956
    %v3073 = vpack.c.b16 %v2961, %v2959
    %v3074 = vpack.c.b16 %v2962, %v2960
    %v3075 = vpack.c.b16 %v2965, %v2963
    %v3076 = vpack.c.b16 %v2966, %v2964
    %v3077 = vpack.c.b16 %v2969, %v2967
    %v3078 = vpack.c.b16 %v2970, %v2968
    %v3079 = vpack.c.b16 %v2973, %v2971
    %v3080 = vpack.c.b16 %v2974, %v2972
    %v3081 = vpack.c.b16 %v2977, %v2975
    %v3082 = vpack.c.b16 %v2978, %v2976
    %v3083 = vpack.c.b16 %v2981, %v2979
    %v3084 = vpack.c.b16 %v2982, %v2980
    %v3085 = vpack.c.b16 %v2985, %v2983
    %v3086 = vpack.c.b16 %v2986, %v2984
    %v3087 = vpack.c.b16 %v2989, %v2987
    %v3088 = vpack.c.b16 %v2990, %v2988
    %v3089 = vpack.c.b16 %v2993, %v2991
    %v3090 = vpack.c.b16 %v2994, %v2992
    %v3091 = vpack.c.b16 %v2997, %v2995
    %v3092 = vpack.c.b16 %v2998, %v2996
    %v3093 = vpack.c.b16 %v3001, %v2999
    %v3094 = vpack.c.b16 %v3002, %v3000
    %v3095 = vpack.c.b16 %v3005, %v3003
    %v3096 = vpack.c.b16 %v3006, %v3004
    %v3097 = vpack.c.b16 %v3009, %v3007
    %v3098 = vpack.c.b16 %v3010, %v3008
    %v3099 = vpack.c.b16 %v3013, %v3011
    %v3100 = vpack.c.b16 %v3014, %v3012
    %v3101 = vpack.c.b16 %v3017, %v3015
    %v3102 = vpack.c.b16 %v3018, %v3016
    %v3103 = vpack.c.b16 %v3021, %v3019
    %v3104 = vpack.c.b16 %v3022, %v3020
    %v3105 = vpack.c.b16 %v3025, %v3023
    %v3106 = vpack.c.b16 %v3026, %v3024
    %v3107 = vpack.c.b16 %v3029, %v3027
    %v3108 = vpack.c.b16 %v3030, %v3028
    %v3109 = vpack.c.b16 %v3033, %v3031
    %v3110 = vpack.c.b16 %v3034, %v3032
    %v3111 = vpack.c.b16 %v3037, %v3035
    %v3112 = vpack.c.b16 %v3038, %v3036
    %v3113 = vpack.c.b16 %v3041, %v3039
    %v3114 = vpack.c.b16 %v3042, %v3040
    %v3115 = vpack.c.b16 %v3045, %v3043
    %v3116 = vpack.c.b16 %v3046, %v3044
    %v3117 = vpack.c.b16 %v3049, %v3047
    %v3118 = vpack.c.b16 %v3050, %v3048
    %v3119 = vpack.c.b16 %v3053, %v3051
    %v3120 = vpack.c.b16 %v3054, %v3052
    %v3121 = vpack.c.b16 %v3057, %v3055
    %v3122 = vpack.c.b16 %v3058, %v3056
    %3187 = vmatprep.subr.bf16.mxu0 %v3060
    %3188 = vmatpush1.bf16.msra.mxu0 %v3059
    %3189 = vmatprep.subr.bf16.mxu0 %v3062
    %3190 = vmatpush1.bf16.msra.mxu0 %v3061
    %3191 = vmatprep.subr.bf16.mxu0 %v3064
    %3192 = vmatpush1.bf16.msra.mxu0 %v3063
    %3193 = vmatprep.subr.bf16.mxu0 %v3066
    %3194 = vmatpush1.bf16.msra.mxu0 %v3065
    %3195 = vmatprep.subr.bf16.mxu0 %v3068
    %3196 = vmatpush1.bf16.msra.mxu0 %v3067
    %3197 = vmatprep.subr.bf16.mxu0 %v3070
    %3198 = vmatpush1.bf16.msra.mxu0 %v3069
    %3199 = vmatprep.subr.bf16.mxu0 %v3072
    %3200 = vmatpush1.bf16.msra.mxu0 %v3071
    %3201 = vmatprep.subr.bf16.mxu0 %v3074
    %3202 = vmatpush1.bf16.msra.mxu0 %v3073
    %3203 = vmatprep.subr.bf16.mxu0 %v3076
    %3204 = vmatpush1.bf16.msra.mxu0 %v3075
    %3205 = vmatprep.subr.bf16.mxu0 %v3078
    %3206 = vmatpush1.bf16.msra.mxu0 %v3077
    %3207 = vmatprep.subr.bf16.mxu0 %v3080
    %3208 = vmatpush1.bf16.msra.mxu0 %v3079
    %3209 = vmatprep.subr.bf16.mxu0 %v3082
    %3210 = vmatpush1.bf16.msra.mxu0 %v3081
    %3211 = vmatprep.subr.bf16.mxu0 %v3084
    %3212 = vmatpush1.bf16.msra.mxu0 %v3083
    %3213 = vmatprep.subr.bf16.mxu0 %v3086
    %3214 = vmatpush1.bf16.msra.mxu0 %v3085
    %3215 = vmatprep.subr.bf16.mxu0 %v3088
    %3216 = vmatpush1.bf16.msra.mxu0 %v3087
    %3217 = vmatprep.subr.bf16.mxu0 %v3090
    %3218 = vmatpush1.bf16.msra.mxu0 %v3089
    %3219 = vmatprep.mubr.bf16.mxu0 %v2760
    %3220 = vmatmul.mubr.bf16.gmra.mrb[0].mxu0 %v2759
    %v3221 = vpop.f32.mrb[0].mxu0
    %v3222 = vadd.f32 %v2860, %v3221
    %v3223 = vpop.f32.mrb[0].mxu0
    %v3224 = vadd.f32 %v2864, %v3223
    %v3225 = vpop.f32.mrb[0].mxu0
    %v3226 = vadd.f32 %v2860, %v3225
    %v3227 = vpop.f32.mrb[0].mxu0
    %v3228 = vadd.f32 %v2864, %v3227
    %3229 = vmatprep.mubr.bf16.mxu0 %v2764
    %3230 = vmatmul.mubr.bf16.gmra.mrb[0].mxu0 %v2763
    %v3231 = vpop.f32.mrb[0].mxu0
    %v3232 = vadd.f32 %v2860, %v3231
    %v3233 = vpop.f32.mrb[0].mxu0
    %v3234 = vadd.f32 %v2864, %v3233
    %v3235 = vpop.f32.mrb[0].mxu0
    %v3236 = vadd.f32 %v2860, %v3235
    %v3237 = vpop.f32.mrb[0].mxu0
    %v3238 = vadd.f32 %v2864, %v3237
    %3239 = vmatprep.mubr.bf16.mxu0 %v2768
    %3240 = vmatmul.mubr.bf16.gmra.mrb[0].mxu0 %v2767
    %v3241 = vpop.f32.mrb[0].mxu0
    %v3242 = vadd.f32 %v2860, %v3241
    %v3243 = vpop.f32.mrb[0].mxu0
    %v3244 = vadd.f32 %v2864, %v3243
    %v3245 = vpop.f32.mrb[0].mxu0
    %v3246 = vadd.f32 %v2860, %v3245
    %v3247 = vpop.f32.mrb[0].mxu0
    %v3248 = vadd.f32 %v2864, %v3247
    %3249 = vmatprep.mubr.bf16.mxu0 %v2772
    %3250 = vmatmul.mubr.bf16.gmra.mrb[0].mxu0 %v2771
    %v3251 = vpop.f32.mrb[0].mxu0
    %v3252 = vadd.f32 %v2860, %v3251
    %v3253 = vpop.f32.mrb[0].mxu0
    %v3254 = vadd.f32 %v2864, %v3253
    %v3255 = vpop.f32.mrb[0].mxu0
    %v3256 = vadd.f32 %v2860, %v3255
    %v3257 = vpop.f32.mrb[0].mxu0
    %v3258 = vadd.f32 %v2864, %v3257
    %3259 = vmatprep.mubr.bf16.mxu0 %v2776
    %3260 = vmatmul.mubr.bf16.gmra.mrb[0].mxu0 %v2775
    %v3261 = vpop.f32.mrb[0].mxu0
    %v3262 = vadd.f32 %v2860, %v3261
    %v3263 = vpop.f32.mrb[0].mxu0
    %v3264 = vadd.f32 %v2864, %v3263
    %v3265 = vpop.f32.mrb[0].mxu0
    %v3266 = vadd.f32 %v2860, %v3265
    %v3267 = vpop.f32.mrb[0].mxu0
    %v3268 = vadd.f32 %v2864, %v3267
    %3269 = vmatprep.mubr.bf16.mxu0 %v2780
    %3270 = vmatmul.mubr.bf16.gmra.mrb[0].mxu0 %v2779
    %v3271 = vpop.f32.mrb[0].mxu0
    %v3272 = vadd.f32 %v2860, %v3271
    %v3273 = vpop.f32.mrb[0].mxu0
    %v3274 = vadd.f32 %v2864, %v3273
    %v3275 = vpop.f32.mrb[0].mxu0
    %v3276 = vadd.f32 %v2860, %v3275
    %v3277 = vpop.f32.mrb[0].mxu0
    %v3278 = vadd.f32 %v2864, %v3277
    %3279 = vmatprep.mubr.bf16.mxu0 %v2784
    %3280 = vmatmul.mubr.bf16.gmra.mrb[0].mxu0 %v2783
    %v3281 = vpop.f32.mrb[0].mxu0
    %v3282 = vadd.f32 %v2860, %v3281
    %v3283 = vpop.f32.mrb[0].mxu0
    %v3284 = vadd.f32 %v2864, %v3283
    %v3285 = vpop.f32.mrb[0].mxu0
    %v3286 = vadd.f32 %v2860, %v3285
    %v3287 = vpop.f32.mrb[0].mxu0
    %v3288 = vadd.f32 %v2864, %v3287
    %3289 = vmatprep.mubr.bf16.mxu0 %v2788
    %3290 = vmatmul.mubr.bf16.gmra.mrb[0].mxu0 %v2787
    %v3291 = vpop.f32.mrb[0].mxu0
    %v3292 = vadd.f32 %v2860, %v3291
    %v3293 = vpop.f32.mrb[0].mxu0
    %v3294 = vadd.f32 %v2864, %v3293
    %v3295 = vpop.f32.mrb[0].mxu0
    %v3296 = vadd.f32 %v2860, %v3295
    %v3297 = vpop.f32.mrb[0].mxu0
    %v3298 = vadd.f32 %v2864, %v3297
    %3299 = vdwg.mxu0
    %3300 = vmatprep.subr.bf16.mxu0 %v3092
    %3301 = vmatpush1.bf16.msra.mxu0 %v3091
    %3302 = vmatprep.subr.bf16.mxu0 %v3094
    %3303 = vmatpush1.bf16.msra.mxu0 %v3093
    %3304 = vmatprep.subr.bf16.mxu0 %v3096
    %3305 = vmatpush1.bf16.msra.mxu0 %v3095
    %3306 = vmatprep.subr.bf16.mxu0 %v3098
    %3307 = vmatpush1.bf16.msra.mxu0 %v3097
    %3308 = vmatprep.subr.bf16.mxu0 %v3100
    %3309 = vmatpush1.bf16.msra.mxu0 %v3099
    %3310 = vmatprep.subr.bf16.mxu0 %v3102
    %3311 = vmatpush1.bf16.msra.mxu0 %v3101
    %3312 = vmatprep.subr.bf16.mxu0 %v3104
    %3313 = vmatpush1.bf16.msra.mxu0 %v3103
    %3314 = vmatprep.subr.bf16.mxu0 %v3106
    %3315 = vmatpush1.bf16.msra.mxu0 %v3105
    %3316 = vmatprep.subr.bf16.mxu0 %v3108
    %3317 = vmatpush1.bf16.msra.mxu0 %v3107
    %3318 = vmatprep.subr.bf16.mxu0 %v3110
    %3319 = vmatpush1.bf16.msra.mxu0 %v3109
    %3320 = vmatprep.subr.bf16.mxu0 %v3112
    %3321 = vmatpush1.bf16.msra.mxu0 %v3111
    %3322 = vmatprep.subr.bf16.mxu0 %v3114
    %3323 = vmatpush1.bf16.msra.mxu0 %v3113
    %3324 = vmatprep.subr.bf16.mxu0 %v3116
    %3325 = vmatpush1.bf16.msra.mxu0 %v3115
    %3326 = vmatprep.subr.bf16.mxu0 %v3118
    %3327 = vmatpush1.bf16.msra.mxu0 %v3117
    %3328 = vmatprep.subr.bf16.mxu0 %v3120
    %3329 = vmatpush1.bf16.msra.mxu0 %v3119
    %3330 = vmatprep.subr.bf16.mxu0 %v3122
    %3331 = vmatpush1.bf16.msra.mxu0 %v3121
    %3332 = vmatprep.mubr.bf16.mxu0 %v2762
    %3333 = vmatmul.mubr.bf16.gmra.mrb[0].mxu0 %v2761
    %v3334 = vpop.f32.mrb[0].mxu0
    %v3335 = vadd.f32 %v3222, %v3334
    %v3336 = vpop.f32.mrb[0].mxu0
    %v3337 = vadd.f32 %v3224, %v3336
    %v3338 = vpop.f32.mrb[0].mxu0
    %v3339 = vadd.f32 %v3226, %v3338
    %v3340 = vpop.f32.mrb[0].mxu0
    %v3341 = vadd.f32 %v3228, %v3340
    %3342 = vmatprep.mubr.bf16.mxu0 %v2766
    %3343 = vmatmul.mubr.bf16.gmra.mrb[0].mxu0 %v2765
    %v3344 = vpop.f32.mrb[0].mxu0
    %v3345 = vadd.f32 %v3232, %v3344
    %v3346 = vpop.f32.mrb[0].mxu0
    %v3347 = vadd.f32 %v3234, %v3346
    %v3348 = vpop.f32.mrb[0].mxu0
    %v3349 = vadd.f32 %v3236, %v3348
    %v3350 = vpop.f32.mrb[0].mxu0
    %v3351 = vadd.f32 %v3238, %v3350
    %3352 = vmatprep.mubr.bf16.mxu0 %v2770
    %3353 = vmatmul.mubr.bf16.gmra.mrb[0].mxu0 %v2769
    %v3354 = vpop.f32.mrb[0].mxu0
    %v3355 = vadd.f32 %v3242, %v3354
    %v3356 = vpop.f32.mrb[0].mxu0
    %v3357 = vadd.f32 %v3244, %v3356
    %v3358 = vpop.f32.mrb[0].mxu0
    %v3359 = vadd.f32 %v3246, %v3358
    %v3360 = vpop.f32.mrb[0].mxu0
    %v3361 = vadd.f32 %v3248, %v3360
    %3362 = vmatprep.mubr.bf16.mxu0 %v2774
    %3363 = vmatmul.mubr.bf16.gmra.mrb[0].mxu0 %v2773
    %v3364 = vpop.f32.mrb[0].mxu0
    %v3365 = vadd.f32 %v3252, %v3364
    %v3366 = vpop.f32.mrb[0].mxu0
    %v3367 = vadd.f32 %v3254, %v3366
    %v3368 = vpop.f32.mrb[0].mxu0
    %v3369 = vadd.f32 %v3256, %v3368
    %v3370 = vpop.f32.mrb[0].mxu0
    %v3371 = vadd.f32 %v3258, %v3370
    %3372 = vmatprep.mubr.bf16.mxu0 %v2778
    %3373 = vmatmul.mubr.bf16.gmra.mrb[0].mxu0 %v2777
    %v3374 = vpop.f32.mrb[0].mxu0
    %v3375 = vadd.f32 %v3262, %v3374
    %v3376 = vpop.f32.mrb[0].mxu0
    %v3377 = vadd.f32 %v3264, %v3376
    %v3378 = vpop.f32.mrb[0].mxu0
    %v3379 = vadd.f32 %v3266, %v3378
    %v3380 = vpop.f32.mrb[0].mxu0
    %v3381 = vadd.f32 %v3268, %v3380
    %3382 = vmatprep.mubr.bf16.mxu0 %v2782
    %3383 = vmatmul.mubr.bf16.gmra.mrb[0].mxu0 %v2781
    %v3384 = vpop.f32.mrb[0].mxu0
    %v3385 = vadd.f32 %v3272, %v3384
    %v3386 = vpop.f32.mrb[0].mxu0
    %v3387 = vadd.f32 %v3274, %v3386
    %v3388 = vpop.f32.mrb[0].mxu0
    %v3389 = vadd.f32 %v3276, %v3388
    %v3390 = vpop.f32.mrb[0].mxu0
    %v3391 = vadd.f32 %v3278, %v3390
    %3392 = vmatprep.mubr.bf16.mxu0 %v2786
    %3393 = vmatmul.mubr.bf16.gmra.mrb[0].mxu0 %v2785
    %v3394 = vpop.f32.mrb[0].mxu0
    %v3395 = vadd.f32 %v3282, %v3394
    %v3396 = vpop.f32.mrb[0].mxu0
    %v3397 = vadd.f32 %v3284, %v3396
    %v3398 = vpop.f32.mrb[0].mxu0
    %v3399 = vadd.f32 %v3286, %v3398
    %v3400 = vpop.f32.mrb[0].mxu0
    %v3401 = vadd.f32 %v3288, %v3400
    %3402 = vmatprep.mubr.bf16.mxu0 %v2790
    %3403 = vmatmul.mubr.bf16.gmra.mrb[0].mxu0 %v2789
    %v3404 = vpop.f32.mrb[0].mxu0
    %v3405 = vadd.f32 %v3292, %v3404
    %v3406 = vpop.f32.mrb[0].mxu0
    %v3407 = vadd.f32 %v3294, %v3406
    %v3408 = vpop.f32.mrb[0].mxu0
    %v3409 = vadd.f32 %v3296, %v3408
    %v3410 = vpop.f32.mrb[0].mxu0
    %v3411 = vadd.f32 %v3298, %v3410
    %3412 = vdwg.mxu0
    %v3413 = vmax.f32 %v3335, 0.0
    %v3414 = vmax.f32 %v3337, 0.0
    %v3415 = vmax.f32 %v3339, 0.0
    %v3416 = vmax.f32 %v3341, 0.0
    %v3417 = vmax.f32 %v3345, 0.0
    %v3418 = vmax.f32 %v3347, 0.0
    %v3419 = vmax.f32 %v3349, 0.0
    %v3420 = vmax.f32 %v3351, 0.0
    %v3421 = vmax.f32 %v3355, 0.0
    %v3422 = vmax.f32 %v3357, 0.0
    %v3423 = vmax.f32 %v3359, 0.0
    %v3424 = vmax.f32 %v3361, 0.0
    %v3425 = vmax.f32 %v3365, 0.0
    %v3426 = vmax.f32 %v3367, 0.0
    %v3427 = vmax.f32 %v3369, 0.0
    %v3428 = vmax.f32 %v3371, 0.0
    %v3429 = vmax.f32 %v3375, 0.0
    %v3430 = vmax.f32 %v3377, 0.0
    %v3431 = vmax.f32 %v3379, 0.0
    %v3432 = vmax.f32 %v3381, 0.0
    %v3433 = vmax.f32 %v3385, 0.0
    %v3434 = vmax.f32 %v3387, 0.0
    %v3435 = vmax.f32 %v3389, 0.0
    %v3436 = vmax.f32 %v3391, 0.0
    %v3437 = vmax.f32 %v3395, 0.0
    %v3438 = vmax.f32 %v3397, 0.0
    %v3439 = vmax.f32 %v3399, 0.0
    %v3440 = vmax.f32 %v3401, 0.0
    %v3441 = vmax.f32 %v3405, 0.0
    %v3442 = vmax.f32 %v3407, 0.0
    %v3443 = vmax.f32 %v3409, 0.0
    %v3444 = vmax.f32 %v3411, 0.0
    %v3445 = vpack.c.bf16 %v3415, %v3413
    %v3446 = vpack.c.bf16 %v3416, %v3414
    %v3447 = vpack.c.bf16 %v3419, %v3417
    %v3448 = vpack.c.bf16 %v3420, %v3418
    %v3449 = vpack.c.bf16 %v3423, %v3421
    %v3450 = vpack.c.bf16 %v3424, %v3422
    %v3451 = vpack.c.bf16 %v3427, %v3425
    %v3452 = vpack.c.bf16 %v3428, %v3426
    %v3453 = vpack.c.bf16 %v3431, %v3429
    %v3454 = vpack.c.bf16 %v3432, %v3430
    %v3455 = vpack.c.bf16 %v3435, %v3433
    %v3456 = vpack.c.bf16 %v3436, %v3434
    %v3457 = vpack.c.bf16 %v3439, %v3437
    %v3458 = vpack.c.bf16 %v3440, %v3438
    %v3459 = vpack.c.bf16 %v3443, %v3441
    %v3460 = vpack.c.bf16 %v3444, %v3442
    %v3461 = vld [vmem:[%s5] sm:$0xf]
    %v3462 = vld [vmem:[%s5 + $0x4] sm:$0xf]
    %v3463 = vld [vmem:[%s5 + $0x8] sm:$0xf]
    %v3464 = vld [vmem:[%s5 + $0xc] sm:$0xf]
    %v3465 = vld [vmem:[%s5 + $0x10] sm:$0xf]
    %v3466 = vld [vmem:[%s5 + $0x14] sm:$0xf]
    %v3467 = vld [vmem:[%s5 + $0x18] sm:$0xf]
    %v3468 = vld [vmem:[%s5 + $0x1c] sm:$0xf]
    %v3469 = vld [vmem:[%s5 + $0x20] sm:$0xf]
    %v3470 = vld [vmem:[%s5 + $0x24] sm:$0xf]
    %v3471 = vld [vmem:[%s5 + $0x28] sm:$0xf]
    %v3472 = vld [vmem:[%s5 + $0x2c] sm:$0xf]
    %v3473 = vld [vmem:[%s5 + $0x30] sm:$0xf]
    %v3474 = vld [vmem:[%s5 + $0x34] sm:$0xf]
    %v3475 = vld [vmem:[%s5 + $0x38] sm:$0xf]
    %v3476 = vld [vmem:[%s5 + $0x3c] sm:$0xf]
    %v3477 = vld [vmem:[%s5 + $0x40] sm:$0xf]
    %v3478 = vld [vmem:[%s5 + $0x44] sm:$0xf]
    %v3479 = vld [vmem:[%s5 + $0x48] sm:$0xf]
    %v3480 = vld [vmem:[%s5 + $0x4c] sm:$0xf]
    %v3481 = vld [vmem:[%s5 + $0x50] sm:$0xf]
    %v3482 = vld [vmem:[%s5 + $0x54] sm:$0xf]
    %v3483 = vld [vmem:[%s5 + $0x58] sm:$0xf]
    %v3484 = vld [vmem:[%s5 + $0x5c] sm:$0xf]
    %v3485 = vld [vmem:[%s5 + $0x60] sm:$0xf]
    %v3486 = vld [vmem:[%s5 + $0x64] sm:$0xf]
    %v3487 = vld [vmem:[%s5 + $0x68] sm:$0xf]
    %v3488 = vld [vmem:[%s5 + $0x6c] sm:$0xf]
    %v3489 = vld [vmem:[%s5 + $0x70] sm:$0xf]
    %v3490 = vld [vmem:[%s5 + $0x74] sm:$0xf]
    %v3491 = vld [vmem:[%s5 + $0x78] sm:$0xf]
    %v3492 = vld [vmem:[%s5 + $0x7c] sm:$0xf]
    %v3493 = vld [vmem:[%s6] sm:$0x1]
    %v3495 = vlaneseq
    %v3496 = vshrl.u32 %v3495, 7
    %v3497 = vsub.s32 0, %v3496
    %v3498 = vrot.slane %v3493, %v3497
    %v3532 = vunpack.c.l.b16 %v3461
    %v3533 = vunpack.c.l.b16 %v3462
    %v3534 = vunpack.c.l.b16 %v3463
    %v3535 = vunpack.c.l.b16 %v3464
    %v3536 = vunpack.c.l.b16 %v3465
    %v3537 = vunpack.c.l.b16 %v3466
    %v3538 = vunpack.c.l.b16 %v3467
    %v3539 = vunpack.c.l.b16 %v3468
    %v3540 = vunpack.c.l.b16 %v3469
    %v3541 = vunpack.c.l.b16 %v3470
    %v3542 = vunpack.c.l.b16 %v3471
    %v3543 = vunpack.c.l.b16 %v3472
    %v3544 = vunpack.c.l.b16 %v3473
    %v3545 = vunpack.c.l.b16 %v3474
    %v3546 = vunpack.c.l.b16 %v3475
    %v3547 = vunpack.c.l.b16 %v3476
    %v3548 = vunpack.c.l.b16 %v3477
    %v3549 = vunpack.c.l.b16 %v3478
    %v3550 = vunpack.c.l.b16 %v3479
    %v3551 = vunpack.c.l.b16 %v3480
    %v3552 = vunpack.c.l.b16 %v3481
    %v3553 = vunpack.c.l.b16 %v3482
    %v3554 = vunpack.c.l.b16 %v3483
    %v3555 = vunpack.c.l.b16 %v3484
    %v3556 = vunpack.c.l.b16 %v3485
    %v3557 = vunpack.c.l.b16 %v3486
    %v3558 = vunpack.c.l.b16 %v3487
    %v3559 = vunpack.c.l.b16 %v3488
    %v3560 = vunpack.c.l.b16 %v3489
    %v3561 = vunpack.c.l.b16 %v3490
    %v3562 = vunpack.c.l.b16 %v3491
    %v3563 = vunpack.c.l.b16 %v3492
    %v3564 = vpack.c.b16 %v3533, %v3532
    %v3565 = vpack.c.b16 %v3535, %v3534
    %v3566 = vpack.c.b16 %v3537, %v3536
    %v3567 = vpack.c.b16 %v3539, %v3538
    %v3568 = vpack.c.b16 %v3541, %v3540
    %v3569 = vpack.c.b16 %v3543, %v3542
    %v3570 = vpack.c.b16 %v3545, %v3544
    %v3571 = vpack.c.b16 %v3547, %v3546
    %v3572 = vpack.c.b16 %v3549, %v3548
    %v3573 = vpack.c.b16 %v3551, %v3550
    %v3574 = vpack.c.b16 %v3553, %v3552
    %v3575 = vpack.c.b16 %v3555, %v3554
    %v3576 = vpack.c.b16 %v3557, %v3556
    %v3577 = vpack.c.b16 %v3559, %v3558
    %v3578 = vpack.c.b16 %v3561, %v3560
    %v3579 = vpack.c.b16 %v3563, %v3562
    %3596 = vmatprep.subr.bf16.mxu0 0
    %3597 = vmatpush1.bf16.msra.mxu0 %v3564
    %3598 = vmatprep.subr.bf16.mxu0 0
    %3599 = vmatpush1.bf16.msra.mxu0 %v3565
    %3600 = vmatprep.subr.bf16.mxu0 0
    %3601 = vmatpush1.bf16.msra.mxu0 %v3566
    %3602 = vmatprep.subr.bf16.mxu0 0
    %3603 = vmatpush1.bf16.msra.mxu0 %v3567
    %3604 = vmatprep.subr.bf16.mxu0 0
    %3605 = vmatpush1.bf16.msra.mxu0 %v3568
    %3606 = vmatprep.subr.bf16.mxu0 0
    %3607 = vmatpush1.bf16.msra.mxu0 %v3569
    %3608 = vmatprep.subr.bf16.mxu0 0
    %3609 = vmatpush1.bf16.msra.mxu0 %v3570
    %3610 = vmatprep.subr.bf16.mxu0 0
    %3611 = vmatpush1.bf16.msra.mxu0 %v3571
    %3612 = vmatprep.subr.bf16.mxu0 0
    %3613 = vmatpush1.bf16.msra.mxu0 %v3572
    %3614 = vmatprep.subr.bf16.mxu0 0
    %3615 = vmatpush1.bf16.msra.mxu0 %v3573
    %3616 = vmatprep.subr.bf16.mxu0 0
    %3617 = vmatpush1.bf16.msra.mxu0 %v3574
    %3618 = vmatprep.subr.bf16.mxu0 0
    %3619 = vmatpush1.bf16.msra.mxu0 %v3575
    %3620 = vmatprep.subr.bf16.mxu0 0
    %3621 = vmatpush1.bf16.msra.mxu0 %v3576
    %3622 = vmatprep.subr.bf16.mxu0 0
    %3623 = vmatpush1.bf16.msra.mxu0 %v3577
    %3624 = vmatprep.subr.bf16.mxu0 0
    %3625 = vmatpush1.bf16.msra.mxu0 %v3578
    %3626 = vmatprep.subr.bf16.mxu0 0
    %3627 = vmatpush1.bf16.msra.mxu0 %v3579
    %3628 = vmatprep.mubr.bf16.mxu0 %v3446
    %3629 = vmatmul.mubr.bf16.gmra.mrb[0].mxu0 %v3445
    %v3630 = vpop.f32.mrb[0].mxu0
    %v3631 = vadd.f32 %v3498, %v3630
    %v3632 = vpop.f32.mrb[0].mxu0
    %v3633 = vpop.f32.mrb[0].mxu0
    %v3634 = vadd.f32 %v3498, %v3633
    %v3635 = vpop.f32.mrb[0].mxu0
    %3636 = vmatprep.mubr.bf16.mxu0 %v3448
    %3637 = vmatmul.mubr.bf16.gmra.mrb[0].mxu0 %v3447
    %v3638 = vpop.f32.mrb[0].mxu0
    %v3639 = vadd.f32 %v3498, %v3638
    %v3640 = vpop.f32.mrb[0].mxu0
    %v3641 = vpop.f32.mrb[0].mxu0
    %v3642 = vadd.f32 %v3498, %v3641
    %v3643 = vpop.f32.mrb[0].mxu0
    %3644 = vmatprep.mubr.bf16.mxu0 %v3450
    %3645 = vmatmul.mubr.bf16.gmra.mrb[0].mxu0 %v3449
    %v3646 = vpop.f32.mrb[0].mxu0
    %v3647 = vadd.f32 %v3498, %v3646
    %v3648 = vpop.f32.mrb[0].mxu0
    %v3649 = vpop.f32.mrb[0].mxu0
    %v3650 = vadd.f32 %v3498, %v3649
    %v3651 = vpop.f32.mrb[0].mxu0
    %3652 = vmatprep.mubr.bf16.mxu0 %v3452
    %3653 = vmatmul.mubr.bf16.gmra.mrb[0].mxu0 %v3451
    %v3654 = vpop.f32.mrb[0].mxu0
    %v3655 = vadd.f32 %v3498, %v3654
    %v3656 = vpop.f32.mrb[0].mxu0
    %v3657 = vpop.f32.mrb[0].mxu0
    %v3658 = vadd.f32 %v3498, %v3657
    %v3659 = vpop.f32.mrb[0].mxu0
    %3660 = vmatprep.mubr.bf16.mxu0 %v3454
    %3661 = vmatmul.mubr.bf16.gmra.mrb[0].mxu0 %v3453
    %v3662 = vpop.f32.mrb[0].mxu0
    %v3663 = vadd.f32 %v3498, %v3662
    %v3664 = vpop.f32.mrb[0].mxu0
    %v3665 = vpop.f32.mrb[0].mxu0
    %v3666 = vadd.f32 %v3498, %v3665
    %v3667 = vpop.f32.mrb[0].mxu0
    %3668 = vmatprep.mubr.bf16.mxu0 %v3456
    %3669 = vmatmul.mubr.bf16.gmra.mrb[0].mxu0 %v3455
    %v3670 = vpop.f32.mrb[0].mxu0
    %v3671 = vadd.f32 %v3498, %v3670
    %v3672 = vpop.f32.mrb[0].mxu0
    %v3673 = vpop.f32.mrb[0].mxu0
    %v3674 = vadd.f32 %v3498, %v3673
    %v3675 = vpop.f32.mrb[0].mxu0
    %3676 = vmatprep.mubr.bf16.mxu0 %v3458
    %3677 = vmatmul.mubr.bf16.gmra.mrb[0].mxu0 %v3457
    %v3678 = vpop.f32.mrb[0].mxu0
    %v3679 = vadd.f32 %v3498, %v3678
    %v3680 = vpop.f32.mrb[0].mxu0
    %v3681 = vpop.f32.mrb[0].mxu0
    %v3682 = vadd.f32 %v3498, %v3681
    %v3683 = vpop.f32.mrb[0].mxu0
    %3684 = vmatprep.mubr.bf16.mxu0 %v3460
    %3685 = vmatmul.mubr.bf16.gmra.mrb[0].mxu0 %v3459
    %v3686 = vpop.f32.mrb[0].mxu0
    %v3687 = vadd.f32 %v3498, %v3686
    %v3688 = vpop.f32.mrb[0].mxu0
    %v3689 = vpop.f32.mrb[0].mxu0
    %v3690 = vadd.f32 %v3498, %v3689
    %v3691 = vpop.f32.mrb[0].mxu0
    %3692 = vdwg.mxu0
    %3693 = vst [vmem:[%s7] sm:$0xff] %v3631
    %3694 = vst [vmem:[%s7 + $0x8] sm:$0xff] %v3634
    %3695 = vst [vmem:[%s7 + $0x10] sm:$0xff] %v3639
    %3696 = vst [vmem:[%s7 + $0x18] sm:$0xff] %v3642
    %3697 = vst [vmem:[%s7 + $0x20] sm:$0xff] %v3647
    %3698 = vst [vmem:[%s7 + $0x28] sm:$0xff] %v3650
    %3699 = vst [vmem:[%s7 + $0x30] sm:$0xff] %v3655
    %3700 = vst [vmem:[%s7 + $0x38] sm:$0xff] %v3658
    %3701 = vst [vmem:[%s7 + $0x40] sm:$0xff] %v3663
    %3702 = vst [vmem:[%s7 + $0x48] sm:$0xff] %v3666
    %3703 = vst [vmem:[%s7 + $0x50] sm:$0xff] %v3671
    %3704 = vst [vmem:[%s7 + $0x58] sm:$0xff] %v3674
    %3705 = vst [vmem:[%s7 + $0x60] sm:$0xff] %v3679
    %3706 = vst [vmem:[%s7 + $0x68] sm:$0xff] %v3682
    %3707 = vst [vmem:[%s7 + $0x70] sm:$0xff] %v3687
    %3708 = vst [vmem:[%s7 + $0x78] sm:$0xff] %v3690
    // Predicated region
    $region34: #{spectrum_encoder_forward.1} parent=1 // pred_check
      _
    $region35: #{spectrum_encoder_forward.1} parent=1 // pred_check_branch
      %3710 = sbr.rel (0) target = $region37
    $region36: #{spectrum_encoder_forward.1} parent=1 // pred_region
      _
    $region37: #{spectrum_encoder_forward.1} parent=1 // pred_fallthru
      _
    // Predicated region
    $region38: #{spectrum_encoder_forward.1} parent=1 // pred_check
      _
    $region39: #{spectrum_encoder_forward.1} parent=1 // pred_check_branch
      %3712 = sbr.rel (0) target = $region41
    $region40: #{spectrum_encoder_forward.1} parent=1 // pred_region
      _
    $region41: #{spectrum_encoder_forward.1} parent=1 // pred_fallthru
      _
    %3713 = vsyncpa [#allocation3], 1

</llo_original>
